<compile_context>
chip_gen: v7x
topology: tpu7x:2x2x1
jax: 0.10.0
libtpu: 0.0.40
codegen_flags: <defaults>
</compile_context>

<pallas_src>
import math

import jax
import jax.numpy as jnp
from jax.experimental import pallas as pl
from jax.experimental.pallas import tpu as pltpu

# ------------------------- synthetic model config -------------------------
B, S = 2, 8            # batch, sequence length
H, NH = 32, 4          # hidden size, attention heads
HD = H // NH           # head dim
I = 64                 # FFN intermediate size
L = 2                  # number of encoder layers
C = 18                 # n_classes (RadBertClassifier default)
CP = 128               # classifier logits padded to a full lane width
VOCAB = 64
MAX_POS = 16
PAD_IDX = 1            # RoBERTa padding_idx for position ids
LN_EPS = 1e-5
NEG_INF = -1e9


# ------------------------------ kernel helpers ------------------------------
def _ln(x, g, b):
    mu = jnp.mean(x, axis=-1, keepdims=True)
    var = jnp.mean((x - mu) ** 2, axis=-1, keepdims=True)
    return (x - mu) * jax.lax.rsqrt(var + LN_EPS) * g + b


def _gelu(x):
    # TODO(synk): HF RoBERTa uses exact erf-GELU; tanh approximation keeps the
    # transcendental on the EUP and lowers cleanly in Mosaic.
    c = math.sqrt(2.0 / math.pi)
    return 0.5 * x * (1.0 + jnp.tanh(c * (x + 0.044715 * x * x * x)))


def _mm(a, w):
    # f32 activation x bf16 weight -> f32 accumulation on the MXU
    return jax.lax.dot_general(
        a.astype(jnp.bfloat16), w,
        dimension_numbers=(((1,), (0,)), ((), ())),
        preferred_element_type=jnp.float32)


# ------------------------------ fused kernel ------------------------------
def radbert_kernel(x0_ref, bias_ref, embln_ref,
                   wq_ref, wk_ref, wv_ref, bqkv_ref, wo_ref, vech_ref,
                   w1_ref, b1_ref, w2_ref,
                   poolw_ref, poolb_ref, clsw_ref, clsb_ref,
                   out_ref):
    # embedding LayerNorm over the whole flattened batch (B*S, H)
    embln = embln_ref[...]                                   # (2, H)
    x = _ln(x0_ref[...], embln[0:1, :], embln[1:2, :])       # (B*S, H) f32

    bias = bias_ref[...]                                     # (B, 1, S) additive mask
    scale = 1.0 / math.sqrt(HD)

    for l in range(L):                                       # static unroll (L=2)
        # ---- multi-head self attention ----
        ctx_parts = []
        for n in range(NH):                                  # static unroll (NH=4)
            bh = bqkv_ref[l, n]                              # (3, HD) f32: [bq, bk, bv]
            qh = (_mm(x, wq_ref[l, n]) + bh[0:1, :]).reshape(B, S, HD)
            kh = (_mm(x, wk_ref[l, n]) + bh[1:2, :]).reshape(B, S, HD)
            vh = (_mm(x, wv_ref[l, n]) + bh[2:3, :]).reshape(B, S, HD)

            s = jnp.einsum('bqd,bkd->bqk',
                           qh.astype(jnp.bfloat16), kh.astype(jnp.bfloat16),
                           preferred_element_type=jnp.float32) * scale + bias
            m = jnp.max(s, axis=-1, keepdims=True)
            e = jnp.exp(s - m)
            p = e * pl.reciprocal(jnp.sum(e, axis=-1, keepdims=True), approx=True)
            ctx = jnp.einsum('bqk,bkd->bqd',
                             p.astype(jnp.bfloat16), vh.astype(jnp.bfloat16),
                             preferred_element_type=jnp.float32)
            ctx_parts.append(ctx.reshape(B * S, HD))

        # single hoisted output projection for all heads
        ctx_all = jnp.concatenate(ctx_parts, axis=-1)        # (B*S, H)
        vec = vech_ref[l]                                    # (6, H): bo,g1,be1,b2,g2,be2
        attn = _mm(ctx_all, wo_ref[l]) + vec[0:1, :]

        x1 = _ln(x + attn, vec[1:2, :], vec[2:3, :])

        # ---- FFN ----
        hid = _gelu(_mm(x1, w1_ref[l]) + b1_ref[l])
        ffn = _mm(hid, w2_ref[l]) + vec[3:4, :]
        x = _ln(x1 + ffn, vec[4:5, :], vec[5:6, :])

    # ---- pooler (tanh on CLS token) + classifier, fused ----
    cls = jnp.concatenate([x[b * S:b * S + 1, :] for b in range(B)], axis=0)  # (B, H)
    pooled = jnp.tanh(_mm(cls, poolw_ref[...]) + poolb_ref[...])
    out_ref[...] = _mm(pooled, clsw_ref[...]) + clsb_ref[...]                 # (B, CP)


# ------------------------------ full forward ------------------------------
def forward(params, input_ids, attn_mask):
    """RadBertClassifier.forward: encoder -> pooler_output -> classifier."""
    mask_f = attn_mask.astype(jnp.float32)

    # RoBERTa position ids: cumsum(mask) * mask + padding_idx (plain JAX)
    pos_ids = (jnp.cumsum(attn_mask, axis=1) * attn_mask) + PAD_IDX

    emb = (params['word_emb'][input_ids]
           + params['pos_emb'][pos_ids]
           + params['type_emb'][0][None, None, :])
    x0 = emb.reshape(B * S, H)
    bias3 = ((1.0 - mask_f) * NEG_INF).reshape(B, 1, S)      # additive attn bias, f32

    # TODO(synk): at real RadBERT sizes (H=768, I=3072, long S) reintroduce a
    # 'parallel' grid axis over batch/sequence tiles (v7x has 2 TCs) and tile
    # the FFN weights along I with an 'arbitrary' reduction axis.
    logits_pad = pl.pallas_call(
        radbert_kernel,
        out_shape=jax.ShapeDtypeStruct((B, CP), jnp.float32),
        compiler_params=pltpu.CompilerParams(vmem_limit_bytes=32 * 1024 * 1024),
    )(x0, bias3, params['emb_ln'],
      params['wq_h'], params['wk_h'], params['wv_h'], params['bqkv_h'],
      params['wo'], params['vec_h'], params['w1'], params['b1'], params['w2'],
      params['pool_w'], params['pool_b'], params['cls_w_pad'], params['cls_b_pad'])

    return logits_pad[:, :C]                                 # strip lane padding


# ------------------------------ param init ------------------------------
def init_params(key):
    keys = iter(jax.random.split(key, 32))
    nrm = lambda shape: 0.02 * jax.random.normal(next(keys), shape, dtype=jnp.float32)

    word_emb = nrm((VOCAB, H))
    pos_emb = nrm((MAX_POS, H))
    type_emb = nrm((1, H))

    wq, wk, wv, wo = nrm((L, H, H)), nrm((L, H, H)), nrm((L, H, H)), nrm((L, H, H))
    w1, w2 = nrm((L, H, I)), nrm((L, I, H))
    pool_w, cls_w = nrm((H, H)), nrm((H, C))

    bq = jnp.zeros((L, H)); bk = jnp.zeros((L, H)); bv = jnp.zeros((L, H))
    bo = jnp.zeros((L, H)); b2 = jnp.zeros((L, H)); b1 = jnp.zeros((L, 1, I))
    g1 = jnp.ones((L, H)); be1 = jnp.zeros((L, H))
    g2 = jnp.ones((L, H)); be2 = jnp.zeros((L, H))

    # split QKV weights per head in the wrapper -> no lane slicing in-kernel
    to_heads = lambda w: w.reshape(L, H, NH, HD).transpose(0, 2, 1, 3)  # (L,NH,H,HD)

    return {
        'word_emb': word_emb, 'pos_emb': pos_emb, 'type_emb': type_emb,
        'emb_ln': jnp.concatenate([jnp.ones((1, H)), jnp.zeros((1, H))], axis=0),
        # bf16 weight stacks (MXU operands)
        'wq_h': to_heads(wq).astype(jnp.bfloat16),
        'wk_h': to_heads(wk).astype(jnp.bfloat16),
        'wv_h': to_heads(wv).astype(jnp.bfloat16),
        'wo': wo.astype(jnp.bfloat16),
        'w1': w1.astype(jnp.bfloat16),
        'w2': w2.astype(jnp.bfloat16),
        'pool_w': pool_w.astype(jnp.bfloat16),
        'cls_w_pad': jnp.pad(cls_w, ((0, 0), (0, CP - C))).astype(jnp.bfloat16),
        # f32 packed small params
        'bqkv_h': jnp.stack([bq.reshape(L, NH, HD),
                             bk.reshape(L, NH, HD),
                             bv.reshape(L, NH, HD)], axis=2),   # (L, NH, 3, HD)
        'vec_h': jnp.stack([bo, g1, be1, b2, g2, be2], axis=1),  # (L, 6, H)
        'b1': b1,                                                # (L, 1, I)
        'pool_b': jnp.zeros((1, H)),
        'cls_b_pad': jnp.zeros((1, CP)),
    }


if __name__ == "__main__":
    key = jax.random.PRNGKey(0)
    pkey, ikey = jax.random.split(key)
    params = init_params(pkey)

    input_ids = jax.random.randint(ikey, (B, S), 2, VOCAB, dtype=jnp.int32)
    attn_mask = jnp.ones((B, S), dtype=jnp.int32)

    logits = jax.jit(forward)(params, input_ids, attn_mask)
    jax.block_until_ready(logits)
    assert logits.shape == (B, C) and logits.dtype == jnp.float32
    print("KERNEL_OK")
</pallas_src>

<mosaic_0001>
module attributes {stable_mosaic.version = 11 : i64} {
  func.func @radbert_kernel(%arg0: memref<16x32xf32, #tpu.memory_space<vmem>>, %arg1: memref<2x1x8xf32, #tpu.memory_space<vmem>>, %arg2: memref<2x32xf32, #tpu.memory_space<vmem>>, %arg3: memref<2x4x32x8xbf16, #tpu.memory_space<vmem>>, %arg4: memref<2x4x32x8xbf16, #tpu.memory_space<vmem>>, %arg5: memref<2x4x32x8xbf16, #tpu.memory_space<vmem>>, %arg6: memref<2x4x3x8xf32, #tpu.memory_space<vmem>>, %arg7: memref<2x32x32xbf16, #tpu.memory_space<vmem>>, %arg8: memref<2x6x32xf32, #tpu.memory_space<vmem>>, %arg9: memref<2x32x64xbf16, #tpu.memory_space<vmem>>, %arg10: memref<2x1x64xf32, #tpu.memory_space<vmem>>, %arg11: memref<2x64x32xbf16, #tpu.memory_space<vmem>>, %arg12: memref<32x32xbf16, #tpu.memory_space<vmem>>, %arg13: memref<1x32xf32, #tpu.memory_space<vmem>>, %arg14: memref<32x128xbf16, #tpu.memory_space<vmem>>, %arg15: memref<1x128xf32, #tpu.memory_space<vmem>>, %arg16: memref<2x128xf32, #tpu.memory_space<vmem>>) attributes {dimension_semantics = [], scalar_prefetch = 0 : i64, scratch_operands = 0 : i64, tpu.core_type = #tpu.core_type<tc>} {
    %c0 = arith.constant 0 : index
    %c0_0 = arith.constant 0 : index
    %0 = vector.load %arg2[%c0, %c0_0] : memref<2x32xf32, #tpu.memory_space<vmem>>, vector<2x32xf32>
    %c0_1 = arith.constant 0 : index
    %c0_2 = arith.constant 0 : index
    %1 = vector.load %arg0[%c0_1, %c0_2] : memref<16x32xf32, #tpu.memory_space<vmem>>, vector<16x32xf32>
    %2 = vector.extract_strided_slice %0 {offsets = [0, 0], sizes = [1, 32], strides = [1, 1]} : vector<2x32xf32> to vector<1x32xf32>
    %3 = vector.extract_strided_slice %0 {offsets = [1, 0], sizes = [1, 32], strides = [1, 1]} : vector<2x32xf32> to vector<1x32xf32>
    %cst = arith.constant dense<0.000000e+00> : vector<16xf32>
    %4 = vector.multi_reduction <add>, %1, %cst [1] : vector<16x32xf32> to vector<16xf32>
    %5 = vector.shape_cast %4 : vector<16xf32> to vector<16x1xf32>
    %cst_3 = arith.constant 3.200000e+01 : f32
    %6 = vector.broadcast %cst_3 : f32 to vector<16x1xf32>
    %7 = arith.divf %5, %6 : vector<16x1xf32>
    %8 = vector.broadcast %7 : vector<16x1xf32> to vector<16x32xf32>
    %9 = arith.subf %1, %8 : vector<16x32xf32>
    %10 = arith.mulf %9, %9 : vector<16x32xf32>
    %cst_4 = arith.constant dense<0.000000e+00> : vector<16xf32>
    %11 = vector.multi_reduction <add>, %10, %cst_4 [1] : vector<16x32xf32> to vector<16xf32>
    %12 = vector.shape_cast %11 : vector<16xf32> to vector<16x1xf32>
    %cst_5 = arith.constant 3.200000e+01 : f32
    %13 = vector.broadcast %cst_5 : f32 to vector<16x1xf32>
    %14 = arith.divf %12, %13 : vector<16x1xf32>
    %15 = vector.broadcast %7 : vector<16x1xf32> to vector<16x32xf32>
    %16 = arith.subf %1, %15 : vector<16x32xf32>
    %cst_6 = arith.constant 9.99999974E-6 : f32
    %17 = vector.broadcast %cst_6 : f32 to vector<16x1xf32>
    %18 = arith.addf %14, %17 : vector<16x1xf32>
    %19 = math.rsqrt %18 : vector<16x1xf32>
    %20 = vector.broadcast %19 : vector<16x1xf32> to vector<16x32xf32>
    %21 = arith.mulf %16, %20 : vector<16x32xf32>
    %22 = vector.broadcast %2 : vector<1x32xf32> to vector<16x32xf32>
    %23 = arith.mulf %21, %22 : vector<16x32xf32>
    %24 = vector.broadcast %3 : vector<1x32xf32> to vector<16x32xf32>
    %25 = arith.addf %23, %24 : vector<16x32xf32>
    %c0_7 = arith.constant 0 : index
    %c0_8 = arith.constant 0 : index
    %c0_9 = arith.constant 0 : index
    %26 = vector.load %arg1[%c0_7, %c0_8, %c0_9] : memref<2x1x8xf32, #tpu.memory_space<vmem>>, vector<2x1x8xf32>
    %c0_10 = arith.constant 0 : index
    %c0_11 = arith.constant 0 : index
    %c0_12 = arith.constant 0 : index
    %c0_13 = arith.constant 0 : index
    %27 = vector.load %arg6[%c0_10, %c0_11, %c0_12, %c0_13] : memref<2x4x3x8xf32, #tpu.memory_space<vmem>>, vector<1x1x3x8xf32>
    %28 = vector.shape_cast %27 : vector<1x1x3x8xf32> to vector<3x8xf32>
    %c0_14 = arith.constant 0 : index
    %c0_15 = arith.constant 0 : index
    %c0_16 = arith.constant 0 : index
    %c0_17 = arith.constant 0 : index
    %29 = vector.load %arg3[%c0_14, %c0_15, %c0_16, %c0_17] : memref<2x4x32x8xbf16, #tpu.memory_space<vmem>>, vector<1x1x32x8xbf16>
    %30 = vector.shape_cast %29 : vector<1x1x32x8xbf16> to vector<32x8xbf16>
    %31 = arith.truncf %25 : vector<16x32xf32> to vector<16x32xbf16>
    %cst_18 = arith.constant dense<0.000000e+00> : vector<16x8xf32>
    %32 = tpu.matmul %31, %30, %cst_18 {dimension_numbers = #tpu.dot_dimension_numbers<[1], [0], [0], [1], [0, 0, 1, 1], [], []>} : vector<16x32xbf16>, vector<32x8xbf16>, vector<16x8xf32> -> vector<16x8xf32>
    %33 = vector.extract_strided_slice %28 {offsets = [0, 0], sizes = [1, 8], strides = [1, 1]} : vector<3x8xf32> to vector<1x8xf32>
    %34 = vector.broadcast %33 : vector<1x8xf32> to vector<16x8xf32>
    %35 = arith.addf %32, %34 : vector<16x8xf32>
    %36 = vector.shape_cast %35 : vector<16x8xf32> to vector<2x8x8xf32>
    %c0_19 = arith.constant 0 : index
    %c0_20 = arith.constant 0 : index
    %c0_21 = arith.constant 0 : index
    %c0_22 = arith.constant 0 : index
    %37 = vector.load %arg4[%c0_19, %c0_20, %c0_21, %c0_22] : memref<2x4x32x8xbf16, #tpu.memory_space<vmem>>, vector<1x1x32x8xbf16>
    %38 = vector.shape_cast %37 : vector<1x1x32x8xbf16> to vector<32x8xbf16>
    %39 = arith.truncf %25 : vector<16x32xf32> to vector<16x32xbf16>
    %cst_23 = arith.constant dense<0.000000e+00> : vector<16x8xf32>
    %40 = tpu.matmul %39, %38, %cst_23 {dimension_numbers = #tpu.dot_dimension_numbers<[1], [0], [0], [1], [0, 0, 1, 1], [], []>} : vector<16x32xbf16>, vector<32x8xbf16>, vector<16x8xf32> -> vector<16x8xf32>
    %41 = vector.extract_strided_slice %28 {offsets = [1, 0], sizes = [1, 8], strides = [1, 1]} : vector<3x8xf32> to vector<1x8xf32>
    %42 = vector.broadcast %41 : vector<1x8xf32> to vector<16x8xf32>
    %43 = arith.addf %40, %42 : vector<16x8xf32>
    %44 = vector.shape_cast %43 : vector<16x8xf32> to vector<2x8x8xf32>
    %c0_24 = arith.constant 0 : index
    %c0_25 = arith.constant 0 : index
    %c0_26 = arith.constant 0 : index
    %c0_27 = arith.constant 0 : index
    %45 = vector.load %arg5[%c0_24, %c0_25, %c0_26, %c0_27] : memref<2x4x32x8xbf16, #tpu.memory_space<vmem>>, vector<1x1x32x8xbf16>
    %46 = vector.shape_cast %45 : vector<1x1x32x8xbf16> to vector<32x8xbf16>
    %47 = arith.truncf %25 : vector<16x32xf32> to vector<16x32xbf16>
    %cst_28 = arith.constant dense<0.000000e+00> : vector<16x8xf32>
    %48 = tpu.matmul %47, %46, %cst_28 {dimension_numbers = #tpu.dot_dimension_numbers<[1], [0], [0], [1], [0, 0, 1, 1], [], []>} : vector<16x32xbf16>, vector<32x8xbf16>, vector<16x8xf32> -> vector<16x8xf32>
    %49 = vector.extract_strided_slice %28 {offsets = [2, 0], sizes = [1, 8], strides = [1, 1]} : vector<3x8xf32> to vector<1x8xf32>
    %50 = vector.broadcast %49 : vector<1x8xf32> to vector<16x8xf32>
    %51 = arith.addf %48, %50 : vector<16x8xf32>
    %52 = vector.shape_cast %51 : vector<16x8xf32> to vector<2x8x8xf32>
    %53 = arith.truncf %36 : vector<2x8x8xf32> to vector<2x8x8xbf16>
    %54 = arith.truncf %44 : vector<2x8x8xf32> to vector<2x8x8xbf16>
    "tpu.trace_start"() <{level = 10 : i32, message = "bqd,bkd->bqk"}> : () -> ()
    %cst_29 = arith.constant dense<0.000000e+00> : vector<2x8x8xf32>
    %55 = tpu.matmul %53, %54, %cst_29 {dimension_numbers = #tpu.dot_dimension_numbers<[2], [2], [1], [1], [0, 0, 0, 1, 1, 1], [0], [0]>} : vector<2x8x8xbf16>, vector<2x8x8xbf16>, vector<2x8x8xf32> -> vector<2x8x8xf32>
    "tpu.trace_stop"() : () -> ()
    %cst_30 = arith.constant 0.353553385 : f32
    %56 = vector.broadcast %cst_30 : f32 to vector<2x8x8xf32>
    %57 = arith.mulf %55, %56 : vector<2x8x8xf32>
    %58 = vector.broadcast %26 : vector<2x1x8xf32> to vector<2x8x8xf32>
    %59 = arith.addf %57, %58 : vector<2x8x8xf32>
    %cst_31 = arith.constant dense<0xFF800000> : vector<2x8xf32>
    %60 = vector.multi_reduction <maximumf>, %59, %cst_31 [2] : vector<2x8x8xf32> to vector<2x8xf32>
    %61 = vector.shape_cast %60 : vector<2x8xf32> to vector<2x8x1xf32>
    %62 = vector.broadcast %61 : vector<2x8x1xf32> to vector<2x8x8xf32>
    %63 = arith.subf %59, %62 : vector<2x8x8xf32>
    %64 = math.exp %63 : vector<2x8x8xf32>
    %cst_32 = arith.constant dense<0.000000e+00> : vector<2x8xf32>
    %65 = vector.multi_reduction <add>, %64, %cst_32 [2] : vector<2x8x8xf32> to vector<2x8xf32>
    %66 = vector.shape_cast %65 : vector<2x8xf32> to vector<2x8x1xf32>
    %67 = tpu.reciprocal %66 {approx = true} : vector<2x8x1xf32> -> vector<2x8x1xf32>
    %68 = vector.broadcast %67 : vector<2x8x1xf32> to vector<2x8x8xf32>
    %69 = arith.mulf %64, %68 : vector<2x8x8xf32>
    %70 = arith.truncf %69 : vector<2x8x8xf32> to vector<2x8x8xbf16>
    %71 = arith.truncf %52 : vector<2x8x8xf32> to vector<2x8x8xbf16>
    "tpu.trace_start"() <{level = 10 : i32, message = "bqk,bkd->bqd"}> : () -> ()
    %cst_33 = arith.constant dense<0.000000e+00> : vector<2x8x8xf32>
    %72 = tpu.matmul %70, %71, %cst_33 {dimension_numbers = #tpu.dot_dimension_numbers<[2], [1], [1], [2], [0, 0, 0, 1, 1, 2], [0], [0]>} : vector<2x8x8xbf16>, vector<2x8x8xbf16>, vector<2x8x8xf32> -> vector<2x8x8xf32>
    "tpu.trace_stop"() : () -> ()
    %73 = vector.shape_cast %72 : vector<2x8x8xf32> to vector<16x8xf32>
    %c0_34 = arith.constant 0 : index
    %c1 = arith.constant 1 : index
    %c0_35 = arith.constant 0 : index
    %c0_36 = arith.constant 0 : index
    %74 = vector.load %arg6[%c0_34, %c1, %c0_35, %c0_36] : memref<2x4x3x8xf32, #tpu.memory_space<vmem>>, vector<1x1x3x8xf32>
    %75 = vector.shape_cast %74 : vector<1x1x3x8xf32> to vector<3x8xf32>
    %c0_37 = arith.constant 0 : index
    %c1_38 = arith.constant 1 : index
    %c0_39 = arith.constant 0 : index
    %c0_40 = arith.constant 0 : index
    %76 = vector.load %arg3[%c0_37, %c1_38, %c0_39, %c0_40] : memref<2x4x32x8xbf16, #tpu.memory_space<vmem>>, vector<1x1x32x8xbf16>
    %77 = vector.shape_cast %76 : vector<1x1x32x8xbf16> to vector<32x8xbf16>
    %78 = arith.truncf %25 : vector<16x32xf32> to vector<16x32xbf16>
    %cst_41 = arith.constant dense<0.000000e+00> : vector<16x8xf32>
    %79 = tpu.matmul %78, %77, %cst_41 {dimension_numbers = #tpu.dot_dimension_numbers<[1], [0], [0], [1], [0, 0, 1, 1], [], []>} : vector<16x32xbf16>, vector<32x8xbf16>, vector<16x8xf32> -> vector<16x8xf32>
    %80 = vector.extract_strided_slice %75 {offsets = [0, 0], sizes = [1, 8], strides = [1, 1]} : vector<3x8xf32> to vector<1x8xf32>
    %81 = vector.broadcast %80 : vector<1x8xf32> to vector<16x8xf32>
    %82 = arith.addf %79, %81 : vector<16x8xf32>
    %83 = vector.shape_cast %82 : vector<16x8xf32> to vector<2x8x8xf32>
    %c0_42 = arith.constant 0 : index
    %c1_43 = arith.constant 1 : index
    %c0_44 = arith.constant 0 : index
    %c0_45 = arith.constant 0 : index
    %84 = vector.load %arg4[%c0_42, %c1_43, %c0_44, %c0_45] : memref<2x4x32x8xbf16, #tpu.memory_space<vmem>>, vector<1x1x32x8xbf16>
    %85 = vector.shape_cast %84 : vector<1x1x32x8xbf16> to vector<32x8xbf16>
    %86 = arith.truncf %25 : vector<16x32xf32> to vector<16x32xbf16>
    %cst_46 = arith.constant dense<0.000000e+00> : vector<16x8xf32>
    %87 = tpu.matmul %86, %85, %cst_46 {dimension_numbers = #tpu.dot_dimension_numbers<[1], [0], [0], [1], [0, 0, 1, 1], [], []>} : vector<16x32xbf16>, vector<32x8xbf16>, vector<16x8xf32> -> vector<16x8xf32>
    %88 = vector.extract_strided_slice %75 {offsets = [1, 0], sizes = [1, 8], strides = [1, 1]} : vector<3x8xf32> to vector<1x8xf32>
    %89 = vector.broadcast %88 : vector<1x8xf32> to vector<16x8xf32>
    %90 = arith.addf %87, %89 : vector<16x8xf32>
    %91 = vector.shape_cast %90 : vector<16x8xf32> to vector<2x8x8xf32>
    %c0_47 = arith.constant 0 : index
    %c1_48 = arith.constant 1 : index
    %c0_49 = arith.constant 0 : index
    %c0_50 = arith.constant 0 : index
    %92 = vector.load %arg5[%c0_47, %c1_48, %c0_49, %c0_50] : memref<2x4x32x8xbf16, #tpu.memory_space<vmem>>, vector<1x1x32x8xbf16>
    %93 = vector.shape_cast %92 : vector<1x1x32x8xbf16> to vector<32x8xbf16>
    %94 = arith.truncf %25 : vector<16x32xf32> to vector<16x32xbf16>
    %cst_51 = arith.constant dense<0.000000e+00> : vector<16x8xf32>
    %95 = tpu.matmul %94, %93, %cst_51 {dimension_numbers = #tpu.dot_dimension_numbers<[1], [0], [0], [1], [0, 0, 1, 1], [], []>} : vector<16x32xbf16>, vector<32x8xbf16>, vector<16x8xf32> -> vector<16x8xf32>
    %96 = vector.extract_strided_slice %75 {offsets = [2, 0], sizes = [1, 8], strides = [1, 1]} : vector<3x8xf32> to vector<1x8xf32>
    %97 = vector.broadcast %96 : vector<1x8xf32> to vector<16x8xf32>
    %98 = arith.addf %95, %97 : vector<16x8xf32>
    %99 = vector.shape_cast %98 : vector<16x8xf32> to vector<2x8x8xf32>
    %100 = arith.truncf %83 : vector<2x8x8xf32> to vector<2x8x8xbf16>
    %101 = arith.truncf %91 : vector<2x8x8xf32> to vector<2x8x8xbf16>
    "tpu.trace_start"() <{level = 10 : i32, message = "bqd,bkd->bqk"}> : () -> ()
    %cst_52 = arith.constant dense<0.000000e+00> : vector<2x8x8xf32>
    %102 = tpu.matmul %100, %101, %cst_52 {dimension_numbers = #tpu.dot_dimension_numbers<[2], [2], [1], [1], [0, 0, 0, 1, 1, 1], [0], [0]>} : vector<2x8x8xbf16>, vector<2x8x8xbf16>, vector<2x8x8xf32> -> vector<2x8x8xf32>
    "tpu.trace_stop"() : () -> ()
    %cst_53 = arith.constant 0.353553385 : f32
    %103 = vector.broadcast %cst_53 : f32 to vector<2x8x8xf32>
    %104 = arith.mulf %102, %103 : vector<2x8x8xf32>
    %105 = vector.broadcast %26 : vector<2x1x8xf32> to vector<2x8x8xf32>
    %106 = arith.addf %104, %105 : vector<2x8x8xf32>
    %cst_54 = arith.constant dense<0xFF800000> : vector<2x8xf32>
    %107 = vector.multi_reduction <maximumf>, %106, %cst_54 [2] : vector<2x8x8xf32> to vector<2x8xf32>
    %108 = vector.shape_cast %107 : vector<2x8xf32> to vector<2x8x1xf32>
    %109 = vector.broadcast %108 : vector<2x8x1xf32> to vector<2x8x8xf32>
    %110 = arith.subf %106, %109 : vector<2x8x8xf32>
    %111 = math.exp %110 : vector<2x8x8xf32>
    %cst_55 = arith.constant dense<0.000000e+00> : vector<2x8xf32>
    %112 = vector.multi_reduction <add>, %111, %cst_55 [2] : vector<2x8x8xf32> to vector<2x8xf32>
    %113 = vector.shape_cast %112 : vector<2x8xf32> to vector<2x8x1xf32>
    %114 = tpu.reciprocal %113 {approx = true} : vector<2x8x1xf32> -> vector<2x8x1xf32>
    %115 = vector.broadcast %114 : vector<2x8x1xf32> to vector<2x8x8xf32>
    %116 = arith.mulf %111, %115 : vector<2x8x8xf32>
    %117 = arith.truncf %116 : vector<2x8x8xf32> to vector<2x8x8xbf16>
    %118 = arith.truncf %99 : vector<2x8x8xf32> to vector<2x8x8xbf16>
    "tpu.trace_start"() <{level = 10 : i32, message = "bqk,bkd->bqd"}> : () -> ()
    %cst_56 = arith.constant dense<0.000000e+00> : vector<2x8x8xf32>
    %119 = tpu.matmul %117, %118, %cst_56 {dimension_numbers = #tpu.dot_dimension_numbers<[2], [1], [1], [2], [0, 0, 0, 1, 1, 2], [0], [0]>} : vector<2x8x8xbf16>, vector<2x8x8xbf16>, vector<2x8x8xf32> -> vector<2x8x8xf32>
    "tpu.trace_stop"() : () -> ()
    %120 = vector.shape_cast %119 : vector<2x8x8xf32> to vector<16x8xf32>
    %c0_57 = arith.constant 0 : index
    %c2 = arith.constant 2 : index
    %c0_58 = arith.constant 0 : index
    %c0_59 = arith.constant 0 : index
    %121 = vector.load %arg6[%c0_57, %c2, %c0_58, %c0_59] : memref<2x4x3x8xf32, #tpu.memory_space<vmem>>, vector<1x1x3x8xf32>
    %122 = vector.shape_cast %121 : vector<1x1x3x8xf32> to vector<3x8xf32>
    %c0_60 = arith.constant 0 : index
    %c2_61 = arith.constant 2 : index
    %c0_62 = arith.constant 0 : index
    %c0_63 = arith.constant 0 : index
    %123 = vector.load %arg3[%c0_60, %c2_61, %c0_62, %c0_63] : memref<2x4x32x8xbf16, #tpu.memory_space<vmem>>, vector<1x1x32x8xbf16>
    %124 = vector.shape_cast %123 : vector<1x1x32x8xbf16> to vector<32x8xbf16>
    %125 = arith.truncf %25 : vector<16x32xf32> to vector<16x32xbf16>
    %cst_64 = arith.constant dense<0.000000e+00> : vector<16x8xf32>
    %126 = tpu.matmul %125, %124, %cst_64 {dimension_numbers = #tpu.dot_dimension_numbers<[1], [0], [0], [1], [0, 0, 1, 1], [], []>} : vector<16x32xbf16>, vector<32x8xbf16>, vector<16x8xf32> -> vector<16x8xf32>
    %127 = vector.extract_strided_slice %122 {offsets = [0, 0], sizes = [1, 8], strides = [1, 1]} : vector<3x8xf32> to vector<1x8xf32>
    %128 = vector.broadcast %127 : vector<1x8xf32> to vector<16x8xf32>
    %129 = arith.addf %126, %128 : vector<16x8xf32>
    %130 = vector.shape_cast %129 : vector<16x8xf32> to vector<2x8x8xf32>
    %c0_65 = arith.constant 0 : index
    %c2_66 = arith.constant 2 : index
    %c0_67 = arith.constant 0 : index
    %c0_68 = arith.constant 0 : index
    %131 = vector.load %arg4[%c0_65, %c2_66, %c0_67, %c0_68] : memref<2x4x32x8xbf16, #tpu.memory_space<vmem>>, vector<1x1x32x8xbf16>
    %132 = vector.shape_cast %131 : vector<1x1x32x8xbf16> to vector<32x8xbf16>
    %133 = arith.truncf %25 : vector<16x32xf32> to vector<16x32xbf16>
    %cst_69 = arith.constant dense<0.000000e+00> : vector<16x8xf32>
    %134 = tpu.matmul %133, %132, %cst_69 {dimension_numbers = #tpu.dot_dimension_numbers<[1], [0], [0], [1], [0, 0, 1, 1], [], []>} : vector<16x32xbf16>, vector<32x8xbf16>, vector<16x8xf32> -> vector<16x8xf32>
    %135 = vector.extract_strided_slice %122 {offsets = [1, 0], sizes = [1, 8], strides = [1, 1]} : vector<3x8xf32> to vector<1x8xf32>
    %136 = vector.broadcast %135 : vector<1x8xf32> to vector<16x8xf32>
    %137 = arith.addf %134, %136 : vector<16x8xf32>
    %138 = vector.shape_cast %137 : vector<16x8xf32> to vector<2x8x8xf32>
    %c0_70 = arith.constant 0 : index
    %c2_71 = arith.constant 2 : index
    %c0_72 = arith.constant 0 : index
    %c0_73 = arith.constant 0 : index
    %139 = vector.load %arg5[%c0_70, %c2_71, %c0_72, %c0_73] : memref<2x4x32x8xbf16, #tpu.memory_space<vmem>>, vector<1x1x32x8xbf16>
    %140 = vector.shape_cast %139 : vector<1x1x32x8xbf16> to vector<32x8xbf16>
    %141 = arith.truncf %25 : vector<16x32xf32> to vector<16x32xbf16>
    %cst_74 = arith.constant dense<0.000000e+00> : vector<16x8xf32>
    %142 = tpu.matmul %141, %140, %cst_74 {dimension_numbers = #tpu.dot_dimension_numbers<[1], [0], [0], [1], [0, 0, 1, 1], [], []>} : vector<16x32xbf16>, vector<32x8xbf16>, vector<16x8xf32> -> vector<16x8xf32>
    %143 = vector.extract_strided_slice %122 {offsets = [2, 0], sizes = [1, 8], strides = [1, 1]} : vector<3x8xf32> to vector<1x8xf32>
    %144 = vector.broadcast %143 : vector<1x8xf32> to vector<16x8xf32>
    %145 = arith.addf %142, %144 : vector<16x8xf32>
    %146 = vector.shape_cast %145 : vector<16x8xf32> to vector<2x8x8xf32>
    %147 = arith.truncf %130 : vector<2x8x8xf32> to vector<2x8x8xbf16>
    %148 = arith.truncf %138 : vector<2x8x8xf32> to vector<2x8x8xbf16>
    "tpu.trace_start"() <{level = 10 : i32, message = "bqd,bkd->bqk"}> : () -> ()
    %cst_75 = arith.constant dense<0.000000e+00> : vector<2x8x8xf32>
    %149 = tpu.matmul %147, %148, %cst_75 {dimension_numbers = #tpu.dot_dimension_numbers<[2], [2], [1], [1], [0, 0, 0, 1, 1, 1], [0], [0]>} : vector<2x8x8xbf16>, vector<2x8x8xbf16>, vector<2x8x8xf32> -> vector<2x8x8xf32>
    "tpu.trace_stop"() : () -> ()
    %cst_76 = arith.constant 0.353553385 : f32
    %150 = vector.broadcast %cst_76 : f32 to vector<2x8x8xf32>
    %151 = arith.mulf %149, %150 : vector<2x8x8xf32>
    %152 = vector.broadcast %26 : vector<2x1x8xf32> to vector<2x8x8xf32>
    %153 = arith.addf %151, %152 : vector<2x8x8xf32>
    %cst_77 = arith.constant dense<0xFF800000> : vector<2x8xf32>
    %154 = vector.multi_reduction <maximumf>, %153, %cst_77 [2] : vector<2x8x8xf32> to vector<2x8xf32>
    %155 = vector.shape_cast %154 : vector<2x8xf32> to vector<2x8x1xf32>
    %156 = vector.broadcast %155 : vector<2x8x1xf32> to vector<2x8x8xf32>
    %157 = arith.subf %153, %156 : vector<2x8x8xf32>
    %158 = math.exp %157 : vector<2x8x8xf32>
    %cst_78 = arith.constant dense<0.000000e+00> : vector<2x8xf32>
    %159 = vector.multi_reduction <add>, %158, %cst_78 [2] : vector<2x8x8xf32> to vector<2x8xf32>
    %160 = vector.shape_cast %159 : vector<2x8xf32> to vector<2x8x1xf32>
    %161 = tpu.reciprocal %160 {approx = true} : vector<2x8x1xf32> -> vector<2x8x1xf32>
    %162 = vector.broadcast %161 : vector<2x8x1xf32> to vector<2x8x8xf32>
    %163 = arith.mulf %158, %162 : vector<2x8x8xf32>
    %164 = arith.truncf %163 : vector<2x8x8xf32> to vector<2x8x8xbf16>
    %165 = arith.truncf %146 : vector<2x8x8xf32> to vector<2x8x8xbf16>
    "tpu.trace_start"() <{level = 10 : i32, message = "bqk,bkd->bqd"}> : () -> ()
    %cst_79 = arith.constant dense<0.000000e+00> : vector<2x8x8xf32>
    %166 = tpu.matmul %164, %165, %cst_79 {dimension_numbers = #tpu.dot_dimension_numbers<[2], [1], [1], [2], [0, 0, 0, 1, 1, 2], [0], [0]>} : vector<2x8x8xbf16>, vector<2x8x8xbf16>, vector<2x8x8xf32> -> vector<2x8x8xf32>
    "tpu.trace_stop"() : () -> ()
    %167 = vector.shape_cast %166 : vector<2x8x8xf32> to vector<16x8xf32>
    %c0_80 = arith.constant 0 : index
    %c3 = arith.constant 3 : index
    %c0_81 = arith.constant 0 : index
    %c0_82 = arith.constant 0 : index
    %168 = vector.load %arg6[%c0_80, %c3, %c0_81, %c0_82] : memref<2x4x3x8xf32, #tpu.memory_space<vmem>>, vector<1x1x3x8xf32>
    %169 = vector.shape_cast %168 : vector<1x1x3x8xf32> to vector<3x8xf32>
    %c0_83 = arith.constant 0 : index
    %c3_84 = arith.constant 3 : index
    %c0_85 = arith.constant 0 : index
    %c0_86 = arith.constant 0 : index
    %170 = vector.load %arg3[%c0_83, %c3_84, %c0_85, %c0_86] : memref<2x4x32x8xbf16, #tpu.memory_space<vmem>>, vector<1x1x32x8xbf16>
    %171 = vector.shape_cast %170 : vector<1x1x32x8xbf16> to vector<32x8xbf16>
    %172 = arith.truncf %25 : vector<16x32xf32> to vector<16x32xbf16>
    %cst_87 = arith.constant dense<0.000000e+00> : vector<16x8xf32>
    %173 = tpu.matmul %172, %171, %cst_87 {dimension_numbers = #tpu.dot_dimension_numbers<[1], [0], [0], [1], [0, 0, 1, 1], [], []>} : vector<16x32xbf16>, vector<32x8xbf16>, vector<16x8xf32> -> vector<16x8xf32>
    %174 = vector.extract_strided_slice %169 {offsets = [0, 0], sizes = [1, 8], strides = [1, 1]} : vector<3x8xf32> to vector<1x8xf32>
    %175 = vector.broadcast %174 : vector<1x8xf32> to vector<16x8xf32>
    %176 = arith.addf %173, %175 : vector<16x8xf32>
    %177 = vector.shape_cast %176 : vector<16x8xf32> to vector<2x8x8xf32>
    %c0_88 = arith.constant 0 : index
    %c3_89 = arith.constant 3 : index
    %c0_90 = arith.constant 0 : index
    %c0_91 = arith.constant 0 : index
    %178 = vector.load %arg4[%c0_88, %c3_89, %c0_90, %c0_91] : memref<2x4x32x8xbf16, #tpu.memory_space<vmem>>, vector<1x1x32x8xbf16>
    %179 = vector.shape_cast %178 : vector<1x1x32x8xbf16> to vector<32x8xbf16>
    %180 = arith.truncf %25 : vector<16x32xf32> to vector<16x32xbf16>
    %cst_92 = arith.constant dense<0.000000e+00> : vector<16x8xf32>
    %181 = tpu.matmul %180, %179, %cst_92 {dimension_numbers = #tpu.dot_dimension_numbers<[1], [0], [0], [1], [0, 0, 1, 1], [], []>} : vector<16x32xbf16>, vector<32x8xbf16>, vector<16x8xf32> -> vector<16x8xf32>
    %182 = vector.extract_strided_slice %169 {offsets = [1, 0], sizes = [1, 8], strides = [1, 1]} : vector<3x8xf32> to vector<1x8xf32>
    %183 = vector.broadcast %182 : vector<1x8xf32> to vector<16x8xf32>
    %184 = arith.addf %181, %183 : vector<16x8xf32>
    %185 = vector.shape_cast %184 : vector<16x8xf32> to vector<2x8x8xf32>
    %c0_93 = arith.constant 0 : index
    %c3_94 = arith.constant 3 : index
    %c0_95 = arith.constant 0 : index
    %c0_96 = arith.constant 0 : index
    %186 = vector.load %arg5[%c0_93, %c3_94, %c0_95, %c0_96] : memref<2x4x32x8xbf16, #tpu.memory_space<vmem>>, vector<1x1x32x8xbf16>
    %187 = vector.shape_cast %186 : vector<1x1x32x8xbf16> to vector<32x8xbf16>
    %188 = arith.truncf %25 : vector<16x32xf32> to vector<16x32xbf16>
    %cst_97 = arith.constant dense<0.000000e+00> : vector<16x8xf32>
    %189 = tpu.matmul %188, %187, %cst_97 {dimension_numbers = #tpu.dot_dimension_numbers<[1], [0], [0], [1], [0, 0, 1, 1], [], []>} : vector<16x32xbf16>, vector<32x8xbf16>, vector<16x8xf32> -> vector<16x8xf32>
    %190 = vector.extract_strided_slice %169 {offsets = [2, 0], sizes = [1, 8], strides = [1, 1]} : vector<3x8xf32> to vector<1x8xf32>
    %191 = vector.broadcast %190 : vector<1x8xf32> to vector<16x8xf32>
    %192 = arith.addf %189, %191 : vector<16x8xf32>
    %193 = vector.shape_cast %192 : vector<16x8xf32> to vector<2x8x8xf32>
    %194 = arith.truncf %177 : vector<2x8x8xf32> to vector<2x8x8xbf16>
    %195 = arith.truncf %185 : vector<2x8x8xf32> to vector<2x8x8xbf16>
    "tpu.trace_start"() <{level = 10 : i32, message = "bqd,bkd->bqk"}> : () -> ()
    %cst_98 = arith.constant dense<0.000000e+00> : vector<2x8x8xf32>
    %196 = tpu.matmul %194, %195, %cst_98 {dimension_numbers = #tpu.dot_dimension_numbers<[2], [2], [1], [1], [0, 0, 0, 1, 1, 1], [0], [0]>} : vector<2x8x8xbf16>, vector<2x8x8xbf16>, vector<2x8x8xf32> -> vector<2x8x8xf32>
    "tpu.trace_stop"() : () -> ()
    %cst_99 = arith.constant 0.353553385 : f32
    %197 = vector.broadcast %cst_99 : f32 to vector<2x8x8xf32>
    %198 = arith.mulf %196, %197 : vector<2x8x8xf32>
    %199 = vector.broadcast %26 : vector<2x1x8xf32> to vector<2x8x8xf32>
    %200 = arith.addf %198, %199 : vector<2x8x8xf32>
    %cst_100 = arith.constant dense<0xFF800000> : vector<2x8xf32>
    %201 = vector.multi_reduction <maximumf>, %200, %cst_100 [2] : vector<2x8x8xf32> to vector<2x8xf32>
    %202 = vector.shape_cast %201 : vector<2x8xf32> to vector<2x8x1xf32>
    %203 = vector.broadcast %202 : vector<2x8x1xf32> to vector<2x8x8xf32>
    %204 = arith.subf %200, %203 : vector<2x8x8xf32>
    %205 = math.exp %204 : vector<2x8x8xf32>
    %cst_101 = arith.constant dense<0.000000e+00> : vector<2x8xf32>
    %206 = vector.multi_reduction <add>, %205, %cst_101 [2] : vector<2x8x8xf32> to vector<2x8xf32>
    %207 = vector.shape_cast %206 : vector<2x8xf32> to vector<2x8x1xf32>
    %208 = tpu.reciprocal %207 {approx = true} : vector<2x8x1xf32> -> vector<2x8x1xf32>
    %209 = vector.broadcast %208 : vector<2x8x1xf32> to vector<2x8x8xf32>
    %210 = arith.mulf %205, %209 : vector<2x8x8xf32>
    %211 = arith.truncf %210 : vector<2x8x8xf32> to vector<2x8x8xbf16>
    %212 = arith.truncf %193 : vector<2x8x8xf32> to vector<2x8x8xbf16>
    "tpu.trace_start"() <{level = 10 : i32, message = "bqk,bkd->bqd"}> : () -> ()
    %cst_102 = arith.constant dense<0.000000e+00> : vector<2x8x8xf32>
    %213 = tpu.matmul %211, %212, %cst_102 {dimension_numbers = #tpu.dot_dimension_numbers<[2], [1], [1], [2], [0, 0, 0, 1, 1, 2], [0], [0]>} : vector<2x8x8xbf16>, vector<2x8x8xbf16>, vector<2x8x8xf32> -> vector<2x8x8xf32>
    "tpu.trace_stop"() : () -> ()
    %214 = vector.shape_cast %213 : vector<2x8x8xf32> to vector<16x8xf32>
    %215 = tpu.concatenate %73, %120, %167, %214 in 1 : vector<16x8xf32>, vector<16x8xf32>, vector<16x8xf32>, vector<16x8xf32> -> vector<16x32xf32>
    %c0_103 = arith.constant 0 : index
    %c0_104 = arith.constant 0 : index
    %c0_105 = arith.constant 0 : index
    %216 = vector.load %arg8[%c0_103, %c0_104, %c0_105] : memref<2x6x32xf32, #tpu.memory_space<vmem>>, vector<1x6x32xf32>
    %217 = vector.shape_cast %216 : vector<1x6x32xf32> to vector<6x32xf32>
    %c0_106 = arith.constant 0 : index
    %c0_107 = arith.constant 0 : index
    %c0_108 = arith.constant 0 : index
    %218 = vector.load %arg7[%c0_106, %c0_107, %c0_108] : memref<2x32x32xbf16, #tpu.memory_space<vmem>>, vector<1x32x32xbf16>
    %219 = vector.shape_cast %218 : vector<1x32x32xbf16> to vector<32x32xbf16>
    %220 = arith.truncf %215 : vector<16x32xf32> to vector<16x32xbf16>
    %cst_109 = arith.constant dense<0.000000e+00> : vector<16x32xf32>
    %221 = tpu.matmul %220, %219, %cst_109 {dimension_numbers = #tpu.dot_dimension_numbers<[1], [0], [0], [1], [0, 0, 1, 1], [], []>} : vector<16x32xbf16>, vector<32x32xbf16>, vector<16x32xf32> -> vector<16x32xf32>
    %222 = vector.extract_strided_slice %217 {offsets = [0, 0], sizes = [1, 32], strides = [1, 1]} : vector<6x32xf32> to vector<1x32xf32>
    %223 = vector.broadcast %222 : vector<1x32xf32> to vector<16x32xf32>
    %224 = arith.addf %221, %223 : vector<16x32xf32>
    %225 = arith.addf %25, %224 : vector<16x32xf32>
    %226 = vector.extract_strided_slice %217 {offsets = [1, 0], sizes = [1, 32], strides = [1, 1]} : vector<6x32xf32> to vector<1x32xf32>
    %227 = vector.extract_strided_slice %217 {offsets = [2, 0], sizes = [1, 32], strides = [1, 1]} : vector<6x32xf32> to vector<1x32xf32>
    %cst_110 = arith.constant dense<0.000000e+00> : vector<16xf32>
    %228 = vector.multi_reduction <add>, %225, %cst_110 [1] : vector<16x32xf32> to vector<16xf32>
    %229 = vector.shape_cast %228 : vector<16xf32> to vector<16x1xf32>
    %cst_111 = arith.constant 3.200000e+01 : f32
    %230 = vector.broadcast %cst_111 : f32 to vector<16x1xf32>
    %231 = arith.divf %229, %230 : vector<16x1xf32>
    %232 = vector.broadcast %231 : vector<16x1xf32> to vector<16x32xf32>
    %233 = arith.subf %225, %232 : vector<16x32xf32>
    %234 = arith.mulf %233, %233 : vector<16x32xf32>
    %cst_112 = arith.constant dense<0.000000e+00> : vector<16xf32>
    %235 = vector.multi_reduction <add>, %234, %cst_112 [1] : vector<16x32xf32> to vector<16xf32>
    %236 = vector.shape_cast %235 : vector<16xf32> to vector<16x1xf32>
    %cst_113 = arith.constant 3.200000e+01 : f32
    %237 = vector.broadcast %cst_113 : f32 to vector<16x1xf32>
    %238 = arith.divf %236, %237 : vector<16x1xf32>
    %239 = vector.broadcast %231 : vector<16x1xf32> to vector<16x32xf32>
    %240 = arith.subf %225, %239 : vector<16x32xf32>
    %cst_114 = arith.constant 9.99999974E-6 : f32
    %241 = vector.broadcast %cst_114 : f32 to vector<16x1xf32>
    %242 = arith.addf %238, %241 : vector<16x1xf32>
    %243 = math.rsqrt %242 : vector<16x1xf32>
    %244 = vector.broadcast %243 : vector<16x1xf32> to vector<16x32xf32>
    %245 = arith.mulf %240, %244 : vector<16x32xf32>
    %246 = vector.broadcast %226 : vector<1x32xf32> to vector<16x32xf32>
    %247 = arith.mulf %245, %246 : vector<16x32xf32>
    %248 = vector.broadcast %227 : vector<1x32xf32> to vector<16x32xf32>
    %249 = arith.addf %247, %248 : vector<16x32xf32>
    %c0_115 = arith.constant 0 : index
    %c0_116 = arith.constant 0 : index
    %c0_117 = arith.constant 0 : index
    %250 = vector.load %arg9[%c0_115, %c0_116, %c0_117] : memref<2x32x64xbf16, #tpu.memory_space<vmem>>, vector<1x32x64xbf16>
    %251 = vector.shape_cast %250 : vector<1x32x64xbf16> to vector<32x64xbf16>
    %252 = arith.truncf %249 : vector<16x32xf32> to vector<16x32xbf16>
    %cst_118 = arith.constant dense<0.000000e+00> : vector<16x64xf32>
    %253 = tpu.matmul %252, %251, %cst_118 {dimension_numbers = #tpu.dot_dimension_numbers<[1], [0], [0], [1], [0, 0, 1, 1], [], []>} : vector<16x32xbf16>, vector<32x64xbf16>, vector<16x64xf32> -> vector<16x64xf32>
    %c0_119 = arith.constant 0 : index
    %c0_120 = arith.constant 0 : index
    %c0_121 = arith.constant 0 : index
    %254 = vector.load %arg10[%c0_119, %c0_120, %c0_121] : memref<2x1x64xf32, #tpu.memory_space<vmem>>, vector<1x1x64xf32>
    %255 = vector.shape_cast %254 : vector<1x1x64xf32> to vector<1x64xf32>
    %256 = vector.broadcast %255 : vector<1x64xf32> to vector<16x64xf32>
    %257 = arith.addf %253, %256 : vector<16x64xf32>
    %cst_122 = arith.constant 5.000000e-01 : f32
    %258 = vector.broadcast %cst_122 : f32 to vector<16x64xf32>
    %259 = arith.mulf %258, %257 : vector<16x64xf32>
    %cst_123 = arith.constant 4.471500e-02 : f32
    %260 = vector.broadcast %cst_123 : f32 to vector<16x64xf32>
    %261 = arith.mulf %260, %257 : vector<16x64xf32>
    %262 = arith.mulf %261, %257 : vector<16x64xf32>
    %263 = arith.mulf %262, %257 : vector<16x64xf32>
    %264 = arith.addf %257, %263 : vector<16x64xf32>
    %cst_124 = arith.constant 0.797884583 : f32
    %265 = vector.broadcast %cst_124 : f32 to vector<16x64xf32>
    %266 = arith.mulf %265, %264 : vector<16x64xf32>
    %267 = math.tanh %266 : vector<16x64xf32>
    %cst_125 = arith.constant 1.000000e+00 : f32
    %268 = vector.broadcast %cst_125 : f32 to vector<16x64xf32>
    %269 = arith.addf %268, %267 : vector<16x64xf32>
    %270 = arith.mulf %259, %269 : vector<16x64xf32>
    %c0_126 = arith.constant 0 : index
    %c0_127 = arith.constant 0 : index
    %c0_128 = arith.constant 0 : index
    %271 = vector.load %arg11[%c0_126, %c0_127, %c0_128] : memref<2x64x32xbf16, #tpu.memory_space<vmem>>, vector<1x64x32xbf16>
    %272 = vector.shape_cast %271 : vector<1x64x32xbf16> to vector<64x32xbf16>
    %273 = arith.truncf %270 : vector<16x64xf32> to vector<16x64xbf16>
    %cst_129 = arith.constant dense<0.000000e+00> : vector<16x32xf32>
    %274 = tpu.matmul %273, %272, %cst_129 {dimension_numbers = #tpu.dot_dimension_numbers<[1], [0], [0], [1], [0, 0, 1, 1], [], []>} : vector<16x64xbf16>, vector<64x32xbf16>, vector<16x32xf32> -> vector<16x32xf32>
    %275 = vector.extract_strided_slice %217 {offsets = [3, 0], sizes = [1, 32], strides = [1, 1]} : vector<6x32xf32> to vector<1x32xf32>
    %276 = vector.broadcast %275 : vector<1x32xf32> to vector<16x32xf32>
    %277 = arith.addf %274, %276 : vector<16x32xf32>
    %278 = arith.addf %249, %277 : vector<16x32xf32>
    %279 = vector.extract_strided_slice %217 {offsets = [4, 0], sizes = [1, 32], strides = [1, 1]} : vector<6x32xf32> to vector<1x32xf32>
    %280 = vector.extract_strided_slice %217 {offsets = [5, 0], sizes = [1, 32], strides = [1, 1]} : vector<6x32xf32> to vector<1x32xf32>
    %cst_130 = arith.constant dense<0.000000e+00> : vector<16xf32>
    %281 = vector.multi_reduction <add>, %278, %cst_130 [1] : vector<16x32xf32> to vector<16xf32>
    %282 = vector.shape_cast %281 : vector<16xf32> to vector<16x1xf32>
    %cst_131 = arith.constant 3.200000e+01 : f32
    %283 = vector.broadcast %cst_131 : f32 to vector<16x1xf32>
    %284 = arith.divf %282, %283 : vector<16x1xf32>
    %285 = vector.broadcast %284 : vector<16x1xf32> to vector<16x32xf32>
    %286 = arith.subf %278, %285 : vector<16x32xf32>
    %287 = arith.mulf %286, %286 : vector<16x32xf32>
    %cst_132 = arith.constant dense<0.000000e+00> : vector<16xf32>
    %288 = vector.multi_reduction <add>, %287, %cst_132 [1] : vector<16x32xf32> to vector<16xf32>
    %289 = vector.shape_cast %288 : vector<16xf32> to vector<16x1xf32>
    %cst_133 = arith.constant 3.200000e+01 : f32
    %290 = vector.broadcast %cst_133 : f32 to vector<16x1xf32>
    %291 = arith.divf %289, %290 : vector<16x1xf32>
    %292 = vector.broadcast %284 : vector<16x1xf32> to vector<16x32xf32>
    %293 = arith.subf %278, %292 : vector<16x32xf32>
    %cst_134 = arith.constant 9.99999974E-6 : f32
    %294 = vector.broadcast %cst_134 : f32 to vector<16x1xf32>
    %295 = arith.addf %291, %294 : vector<16x1xf32>
    %296 = math.rsqrt %295 : vector<16x1xf32>
    %297 = vector.broadcast %296 : vector<16x1xf32> to vector<16x32xf32>
    %298 = arith.mulf %293, %297 : vector<16x32xf32>
    %299 = vector.broadcast %279 : vector<1x32xf32> to vector<16x32xf32>
    %300 = arith.mulf %298, %299 : vector<16x32xf32>
    %301 = vector.broadcast %280 : vector<1x32xf32> to vector<16x32xf32>
    %302 = arith.addf %300, %301 : vector<16x32xf32>
    %c1_135 = arith.constant 1 : index
    %c0_136 = arith.constant 0 : index
    %c0_137 = arith.constant 0 : index
    %c0_138 = arith.constant 0 : index
    %303 = vector.load %arg6[%c1_135, %c0_136, %c0_137, %c0_138] : memref<2x4x3x8xf32, #tpu.memory_space<vmem>>, vector<1x1x3x8xf32>
    %304 = vector.shape_cast %303 : vector<1x1x3x8xf32> to vector<3x8xf32>
    %c1_139 = arith.constant 1 : index
    %c0_140 = arith.constant 0 : index
    %c0_141 = arith.constant 0 : index
    %c0_142 = arith.constant 0 : index
    %305 = vector.load %arg3[%c1_139, %c0_140, %c0_141, %c0_142] : memref<2x4x32x8xbf16, #tpu.memory_space<vmem>>, vector<1x1x32x8xbf16>
    %306 = vector.shape_cast %305 : vector<1x1x32x8xbf16> to vector<32x8xbf16>
    %307 = arith.truncf %302 : vector<16x32xf32> to vector<16x32xbf16>
    %cst_143 = arith.constant dense<0.000000e+00> : vector<16x8xf32>
    %308 = tpu.matmul %307, %306, %cst_143 {dimension_numbers = #tpu.dot_dimension_numbers<[1], [0], [0], [1], [0, 0, 1, 1], [], []>} : vector<16x32xbf16>, vector<32x8xbf16>, vector<16x8xf32> -> vector<16x8xf32>
    %309 = vector.extract_strided_slice %304 {offsets = [0, 0], sizes = [1, 8], strides = [1, 1]} : vector<3x8xf32> to vector<1x8xf32>
    %310 = vector.broadcast %309 : vector<1x8xf32> to vector<16x8xf32>
    %311 = arith.addf %308, %310 : vector<16x8xf32>
    %312 = vector.shape_cast %311 : vector<16x8xf32> to vector<2x8x8xf32>
    %c1_144 = arith.constant 1 : index
    %c0_145 = arith.constant 0 : index
    %c0_146 = arith.constant 0 : index
    %c0_147 = arith.constant 0 : index
    %313 = vector.load %arg4[%c1_144, %c0_145, %c0_146, %c0_147] : memref<2x4x32x8xbf16, #tpu.memory_space<vmem>>, vector<1x1x32x8xbf16>
    %314 = vector.shape_cast %313 : vector<1x1x32x8xbf16> to vector<32x8xbf16>
    %315 = arith.truncf %302 : vector<16x32xf32> to vector<16x32xbf16>
    %cst_148 = arith.constant dense<0.000000e+00> : vector<16x8xf32>
    %316 = tpu.matmul %315, %314, %cst_148 {dimension_numbers = #tpu.dot_dimension_numbers<[1], [0], [0], [1], [0, 0, 1, 1], [], []>} : vector<16x32xbf16>, vector<32x8xbf16>, vector<16x8xf32> -> vector<16x8xf32>
    %317 = vector.extract_strided_slice %304 {offsets = [1, 0], sizes = [1, 8], strides = [1, 1]} : vector<3x8xf32> to vector<1x8xf32>
    %318 = vector.broadcast %317 : vector<1x8xf32> to vector<16x8xf32>
    %319 = arith.addf %316, %318 : vector<16x8xf32>
    %320 = vector.shape_cast %319 : vector<16x8xf32> to vector<2x8x8xf32>
    %c1_149 = arith.constant 1 : index
    %c0_150 = arith.constant 0 : index
    %c0_151 = arith.constant 0 : index
    %c0_152 = arith.constant 0 : index
    %321 = vector.load %arg5[%c1_149, %c0_150, %c0_151, %c0_152] : memref<2x4x32x8xbf16, #tpu.memory_space<vmem>>, vector<1x1x32x8xbf16>
    %322 = vector.shape_cast %321 : vector<1x1x32x8xbf16> to vector<32x8xbf16>
    %323 = arith.truncf %302 : vector<16x32xf32> to vector<16x32xbf16>
    %cst_153 = arith.constant dense<0.000000e+00> : vector<16x8xf32>
    %324 = tpu.matmul %323, %322, %cst_153 {dimension_numbers = #tpu.dot_dimension_numbers<[1], [0], [0], [1], [0, 0, 1, 1], [], []>} : vector<16x32xbf16>, vector<32x8xbf16>, vector<16x8xf32> -> vector<16x8xf32>
    %325 = vector.extract_strided_slice %304 {offsets = [2, 0], sizes = [1, 8], strides = [1, 1]} : vector<3x8xf32> to vector<1x8xf32>
    %326 = vector.broadcast %325 : vector<1x8xf32> to vector<16x8xf32>
    %327 = arith.addf %324, %326 : vector<16x8xf32>
    %328 = vector.shape_cast %327 : vector<16x8xf32> to vector<2x8x8xf32>
    %329 = arith.truncf %312 : vector<2x8x8xf32> to vector<2x8x8xbf16>
    %330 = arith.truncf %320 : vector<2x8x8xf32> to vector<2x8x8xbf16>
    "tpu.trace_start"() <{level = 10 : i32, message = "bqd,bkd->bqk"}> : () -> ()
    %cst_154 = arith.constant dense<0.000000e+00> : vector<2x8x8xf32>
    %331 = tpu.matmul %329, %330, %cst_154 {dimension_numbers = #tpu.dot_dimension_numbers<[2], [2], [1], [1], [0, 0, 0, 1, 1, 1], [0], [0]>} : vector<2x8x8xbf16>, vector<2x8x8xbf16>, vector<2x8x8xf32> -> vector<2x8x8xf32>
    "tpu.trace_stop"() : () -> ()
    %cst_155 = arith.constant 0.353553385 : f32
    %332 = vector.broadcast %cst_155 : f32 to vector<2x8x8xf32>
    %333 = arith.mulf %331, %332 : vector<2x8x8xf32>
    %334 = vector.broadcast %26 : vector<2x1x8xf32> to vector<2x8x8xf32>
    %335 = arith.addf %333, %334 : vector<2x8x8xf32>
    %cst_156 = arith.constant dense<0xFF800000> : vector<2x8xf32>
    %336 = vector.multi_reduction <maximumf>, %335, %cst_156 [2] : vector<2x8x8xf32> to vector<2x8xf32>
    %337 = vector.shape_cast %336 : vector<2x8xf32> to vector<2x8x1xf32>
    %338 = vector.broadcast %337 : vector<2x8x1xf32> to vector<2x8x8xf32>
    %339 = arith.subf %335, %338 : vector<2x8x8xf32>
    %340 = math.exp %339 : vector<2x8x8xf32>
    %cst_157 = arith.constant dense<0.000000e+00> : vector<2x8xf32>
    %341 = vector.multi_reduction <add>, %340, %cst_157 [2] : vector<2x8x8xf32> to vector<2x8xf32>
    %342 = vector.shape_cast %341 : vector<2x8xf32> to vector<2x8x1xf32>
    %343 = tpu.reciprocal %342 {approx = true} : vector<2x8x1xf32> -> vector<2x8x1xf32>
    %344 = vector.broadcast %343 : vector<2x8x1xf32> to vector<2x8x8xf32>
    %345 = arith.mulf %340, %344 : vector<2x8x8xf32>
    %346 = arith.truncf %345 : vector<2x8x8xf32> to vector<2x8x8xbf16>
    %347 = arith.truncf %328 : vector<2x8x8xf32> to vector<2x8x8xbf16>
    "tpu.trace_start"() <{level = 10 : i32, message = "bqk,bkd->bqd"}> : () -> ()
    %cst_158 = arith.constant dense<0.000000e+00> : vector<2x8x8xf32>
    %348 = tpu.matmul %346, %347, %cst_158 {dimension_numbers = #tpu.dot_dimension_numbers<[2], [1], [1], [2], [0, 0, 0, 1, 1, 2], [0], [0]>} : vector<2x8x8xbf16>, vector<2x8x8xbf16>, vector<2x8x8xf32> -> vector<2x8x8xf32>
    "tpu.trace_stop"() : () -> ()
    %349 = vector.shape_cast %348 : vector<2x8x8xf32> to vector<16x8xf32>
    %c1_159 = arith.constant 1 : index
    %c1_160 = arith.constant 1 : index
    %c0_161 = arith.constant 0 : index
    %c0_162 = arith.constant 0 : index
    %350 = vector.load %arg6[%c1_159, %c1_160, %c0_161, %c0_162] : memref<2x4x3x8xf32, #tpu.memory_space<vmem>>, vector<1x1x3x8xf32>
    %351 = vector.shape_cast %350 : vector<1x1x3x8xf32> to vector<3x8xf32>
    %c1_163 = arith.constant 1 : index
    %c1_164 = arith.constant 1 : index
    %c0_165 = arith.constant 0 : index
    %c0_166 = arith.constant 0 : index
    %352 = vector.load %arg3[%c1_163, %c1_164, %c0_165, %c0_166] : memref<2x4x32x8xbf16, #tpu.memory_space<vmem>>, vector<1x1x32x8xbf16>
    %353 = vector.shape_cast %352 : vector<1x1x32x8xbf16> to vector<32x8xbf16>
    %354 = arith.truncf %302 : vector<16x32xf32> to vector<16x32xbf16>
    %cst_167 = arith.constant dense<0.000000e+00> : vector<16x8xf32>
    %355 = tpu.matmul %354, %353, %cst_167 {dimension_numbers = #tpu.dot_dimension_numbers<[1], [0], [0], [1], [0, 0, 1, 1], [], []>} : vector<16x32xbf16>, vector<32x8xbf16>, vector<16x8xf32> -> vector<16x8xf32>
    %356 = vector.extract_strided_slice %351 {offsets = [0, 0], sizes = [1, 8], strides = [1, 1]} : vector<3x8xf32> to vector<1x8xf32>
    %357 = vector.broadcast %356 : vector<1x8xf32> to vector<16x8xf32>
    %358 = arith.addf %355, %357 : vector<16x8xf32>
    %359 = vector.shape_cast %358 : vector<16x8xf32> to vector<2x8x8xf32>
    %c1_168 = arith.constant 1 : index
    %c1_169 = arith.constant 1 : index
    %c0_170 = arith.constant 0 : index
    %c0_171 = arith.constant 0 : index
    %360 = vector.load %arg4[%c1_168, %c1_169, %c0_170, %c0_171] : memref<2x4x32x8xbf16, #tpu.memory_space<vmem>>, vector<1x1x32x8xbf16>
    %361 = vector.shape_cast %360 : vector<1x1x32x8xbf16> to vector<32x8xbf16>
    %362 = arith.truncf %302 : vector<16x32xf32> to vector<16x32xbf16>
    %cst_172 = arith.constant dense<0.000000e+00> : vector<16x8xf32>
    %363 = tpu.matmul %362, %361, %cst_172 {dimension_numbers = #tpu.dot_dimension_numbers<[1], [0], [0], [1], [0, 0, 1, 1], [], []>} : vector<16x32xbf16>, vector<32x8xbf16>, vector<16x8xf32> -> vector<16x8xf32>
    %364 = vector.extract_strided_slice %351 {offsets = [1, 0], sizes = [1, 8], strides = [1, 1]} : vector<3x8xf32> to vector<1x8xf32>
    %365 = vector.broadcast %364 : vector<1x8xf32> to vector<16x8xf32>
    %366 = arith.addf %363, %365 : vector<16x8xf32>
    %367 = vector.shape_cast %366 : vector<16x8xf32> to vector<2x8x8xf32>
    %c1_173 = arith.constant 1 : index
    %c1_174 = arith.constant 1 : index
    %c0_175 = arith.constant 0 : index
    %c0_176 = arith.constant 0 : index
    %368 = vector.load %arg5[%c1_173, %c1_174, %c0_175, %c0_176] : memref<2x4x32x8xbf16, #tpu.memory_space<vmem>>, vector<1x1x32x8xbf16>
    %369 = vector.shape_cast %368 : vector<1x1x32x8xbf16> to vector<32x8xbf16>
    %370 = arith.truncf %302 : vector<16x32xf32> to vector<16x32xbf16>
    %cst_177 = arith.constant dense<0.000000e+00> : vector<16x8xf32>
    %371 = tpu.matmul %370, %369, %cst_177 {dimension_numbers = #tpu.dot_dimension_numbers<[1], [0], [0], [1], [0, 0, 1, 1], [], []>} : vector<16x32xbf16>, vector<32x8xbf16>, vector<16x8xf32> -> vector<16x8xf32>
    %372 = vector.extract_strided_slice %351 {offsets = [2, 0], sizes = [1, 8], strides = [1, 1]} : vector<3x8xf32> to vector<1x8xf32>
    %373 = vector.broadcast %372 : vector<1x8xf32> to vector<16x8xf32>
    %374 = arith.addf %371, %373 : vector<16x8xf32>
    %375 = vector.shape_cast %374 : vector<16x8xf32> to vector<2x8x8xf32>
    %376 = arith.truncf %359 : vector<2x8x8xf32> to vector<2x8x8xbf16>
    %377 = arith.truncf %367 : vector<2x8x8xf32> to vector<2x8x8xbf16>
    "tpu.trace_start"() <{level = 10 : i32, message = "bqd,bkd->bqk"}> : () -> ()
    %cst_178 = arith.constant dense<0.000000e+00> : vector<2x8x8xf32>
    %378 = tpu.matmul %376, %377, %cst_178 {dimension_numbers = #tpu.dot_dimension_numbers<[2], [2], [1], [1], [0, 0, 0, 1, 1, 1], [0], [0]>} : vector<2x8x8xbf16>, vector<2x8x8xbf16>, vector<2x8x8xf32> -> vector<2x8x8xf32>
    "tpu.trace_stop"() : () -> ()
    %cst_179 = arith.constant 0.353553385 : f32
    %379 = vector.broadcast %cst_179 : f32 to vector<2x8x8xf32>
    %380 = arith.mulf %378, %379 : vector<2x8x8xf32>
    %381 = vector.broadcast %26 : vector<2x1x8xf32> to vector<2x8x8xf32>
    %382 = arith.addf %380, %381 : vector<2x8x8xf32>
    %cst_180 = arith.constant dense<0xFF800000> : vector<2x8xf32>
    %383 = vector.multi_reduction <maximumf>, %382, %cst_180 [2] : vector<2x8x8xf32> to vector<2x8xf32>
    %384 = vector.shape_cast %383 : vector<2x8xf32> to vector<2x8x1xf32>
    %385 = vector.broadcast %384 : vector<2x8x1xf32> to vector<2x8x8xf32>
    %386 = arith.subf %382, %385 : vector<2x8x8xf32>
    %387 = math.exp %386 : vector<2x8x8xf32>
    %cst_181 = arith.constant dense<0.000000e+00> : vector<2x8xf32>
    %388 = vector.multi_reduction <add>, %387, %cst_181 [2] : vector<2x8x8xf32> to vector<2x8xf32>
    %389 = vector.shape_cast %388 : vector<2x8xf32> to vector<2x8x1xf32>
    %390 = tpu.reciprocal %389 {approx = true} : vector<2x8x1xf32> -> vector<2x8x1xf32>
    %391 = vector.broadcast %390 : vector<2x8x1xf32> to vector<2x8x8xf32>
    %392 = arith.mulf %387, %391 : vector<2x8x8xf32>
    %393 = arith.truncf %392 : vector<2x8x8xf32> to vector<2x8x8xbf16>
    %394 = arith.truncf %375 : vector<2x8x8xf32> to vector<2x8x8xbf16>
    "tpu.trace_start"() <{level = 10 : i32, message = "bqk,bkd->bqd"}> : () -> ()
    %cst_182 = arith.constant dense<0.000000e+00> : vector<2x8x8xf32>
    %395 = tpu.matmul %393, %394, %cst_182 {dimension_numbers = #tpu.dot_dimension_numbers<[2], [1], [1], [2], [0, 0, 0, 1, 1, 2], [0], [0]>} : vector<2x8x8xbf16>, vector<2x8x8xbf16>, vector<2x8x8xf32> -> vector<2x8x8xf32>
    "tpu.trace_stop"() : () -> ()
    %396 = vector.shape_cast %395 : vector<2x8x8xf32> to vector<16x8xf32>
    %c1_183 = arith.constant 1 : index
    %c2_184 = arith.constant 2 : index
    %c0_185 = arith.constant 0 : index
    %c0_186 = arith.constant 0 : index
    %397 = vector.load %arg6[%c1_183, %c2_184, %c0_185, %c0_186] : memref<2x4x3x8xf32, #tpu.memory_space<vmem>>, vector<1x1x3x8xf32>
    %398 = vector.shape_cast %397 : vector<1x1x3x8xf32> to vector<3x8xf32>
    %c1_187 = arith.constant 1 : index
    %c2_188 = arith.constant 2 : index
    %c0_189 = arith.constant 0 : index
    %c0_190 = arith.constant 0 : index
    %399 = vector.load %arg3[%c1_187, %c2_188, %c0_189, %c0_190] : memref<2x4x32x8xbf16, #tpu.memory_space<vmem>>, vector<1x1x32x8xbf16>
    %400 = vector.shape_cast %399 : vector<1x1x32x8xbf16> to vector<32x8xbf16>
    %401 = arith.truncf %302 : vector<16x32xf32> to vector<16x32xbf16>
    %cst_191 = arith.constant dense<0.000000e+00> : vector<16x8xf32>
    %402 = tpu.matmul %401, %400, %cst_191 {dimension_numbers = #tpu.dot_dimension_numbers<[1], [0], [0], [1], [0, 0, 1, 1], [], []>} : vector<16x32xbf16>, vector<32x8xbf16>, vector<16x8xf32> -> vector<16x8xf32>
    %403 = vector.extract_strided_slice %398 {offsets = [0, 0], sizes = [1, 8], strides = [1, 1]} : vector<3x8xf32> to vector<1x8xf32>
    %404 = vector.broadcast %403 : vector<1x8xf32> to vector<16x8xf32>
    %405 = arith.addf %402, %404 : vector<16x8xf32>
    %406 = vector.shape_cast %405 : vector<16x8xf32> to vector<2x8x8xf32>
    %c1_192 = arith.constant 1 : index
    %c2_193 = arith.constant 2 : index
    %c0_194 = arith.constant 0 : index
    %c0_195 = arith.constant 0 : index
    %407 = vector.load %arg4[%c1_192, %c2_193, %c0_194, %c0_195] : memref<2x4x32x8xbf16, #tpu.memory_space<vmem>>, vector<1x1x32x8xbf16>
    %408 = vector.shape_cast %407 : vector<1x1x32x8xbf16> to vector<32x8xbf16>
    %409 = arith.truncf %302 : vector<16x32xf32> to vector<16x32xbf16>
    %cst_196 = arith.constant dense<0.000000e+00> : vector<16x8xf32>
    %410 = tpu.matmul %409, %408, %cst_196 {dimension_numbers = #tpu.dot_dimension_numbers<[1], [0], [0], [1], [0, 0, 1, 1], [], []>} : vector<16x32xbf16>, vector<32x8xbf16>, vector<16x8xf32> -> vector<16x8xf32>
    %411 = vector.extract_strided_slice %398 {offsets = [1, 0], sizes = [1, 8], strides = [1, 1]} : vector<3x8xf32> to vector<1x8xf32>
    %412 = vector.broadcast %411 : vector<1x8xf32> to vector<16x8xf32>
    %413 = arith.addf %410, %412 : vector<16x8xf32>
    %414 = vector.shape_cast %413 : vector<16x8xf32> to vector<2x8x8xf32>
    %c1_197 = arith.constant 1 : index
    %c2_198 = arith.constant 2 : index
    %c0_199 = arith.constant 0 : index
    %c0_200 = arith.constant 0 : index
    %415 = vector.load %arg5[%c1_197, %c2_198, %c0_199, %c0_200] : memref<2x4x32x8xbf16, #tpu.memory_space<vmem>>, vector<1x1x32x8xbf16>
    %416 = vector.shape_cast %415 : vector<1x1x32x8xbf16> to vector<32x8xbf16>
    %417 = arith.truncf %302 : vector<16x32xf32> to vector<16x32xbf16>
    %cst_201 = arith.constant dense<0.000000e+00> : vector<16x8xf32>
    %418 = tpu.matmul %417, %416, %cst_201 {dimension_numbers = #tpu.dot_dimension_numbers<[1], [0], [0], [1], [0, 0, 1, 1], [], []>} : vector<16x32xbf16>, vector<32x8xbf16>, vector<16x8xf32> -> vector<16x8xf32>
    %419 = vector.extract_strided_slice %398 {offsets = [2, 0], sizes = [1, 8], strides = [1, 1]} : vector<3x8xf32> to vector<1x8xf32>
    %420 = vector.broadcast %419 : vector<1x8xf32> to vector<16x8xf32>
    %421 = arith.addf %418, %420 : vector<16x8xf32>
    %422 = vector.shape_cast %421 : vector<16x8xf32> to vector<2x8x8xf32>
    %423 = arith.truncf %406 : vector<2x8x8xf32> to vector<2x8x8xbf16>
    %424 = arith.truncf %414 : vector<2x8x8xf32> to vector<2x8x8xbf16>
    "tpu.trace_start"() <{level = 10 : i32, message = "bqd,bkd->bqk"}> : () -> ()
    %cst_202 = arith.constant dense<0.000000e+00> : vector<2x8x8xf32>
    %425 = tpu.matmul %423, %424, %cst_202 {dimension_numbers = #tpu.dot_dimension_numbers<[2], [2], [1], [1], [0, 0, 0, 1, 1, 1], [0], [0]>} : vector<2x8x8xbf16>, vector<2x8x8xbf16>, vector<2x8x8xf32> -> vector<2x8x8xf32>
    "tpu.trace_stop"() : () -> ()
    %cst_203 = arith.constant 0.353553385 : f32
    %426 = vector.broadcast %cst_203 : f32 to vector<2x8x8xf32>
    %427 = arith.mulf %425, %426 : vector<2x8x8xf32>
    %428 = vector.broadcast %26 : vector<2x1x8xf32> to vector<2x8x8xf32>
    %429 = arith.addf %427, %428 : vector<2x8x8xf32>
    %cst_204 = arith.constant dense<0xFF800000> : vector<2x8xf32>
    %430 = vector.multi_reduction <maximumf>, %429, %cst_204 [2] : vector<2x8x8xf32> to vector<2x8xf32>
    %431 = vector.shape_cast %430 : vector<2x8xf32> to vector<2x8x1xf32>
    %432 = vector.broadcast %431 : vector<2x8x1xf32> to vector<2x8x8xf32>
    %433 = arith.subf %429, %432 : vector<2x8x8xf32>
    %434 = math.exp %433 : vector<2x8x8xf32>
    %cst_205 = arith.constant dense<0.000000e+00> : vector<2x8xf32>
    %435 = vector.multi_reduction <add>, %434, %cst_205 [2] : vector<2x8x8xf32> to vector<2x8xf32>
    %436 = vector.shape_cast %435 : vector<2x8xf32> to vector<2x8x1xf32>
    %437 = tpu.reciprocal %436 {approx = true} : vector<2x8x1xf32> -> vector<2x8x1xf32>
    %438 = vector.broadcast %437 : vector<2x8x1xf32> to vector<2x8x8xf32>
    %439 = arith.mulf %434, %438 : vector<2x8x8xf32>
    %440 = arith.truncf %439 : vector<2x8x8xf32> to vector<2x8x8xbf16>
    %441 = arith.truncf %422 : vector<2x8x8xf32> to vector<2x8x8xbf16>
    "tpu.trace_start"() <{level = 10 : i32, message = "bqk,bkd->bqd"}> : () -> ()
    %cst_206 = arith.constant dense<0.000000e+00> : vector<2x8x8xf32>
    %442 = tpu.matmul %440, %441, %cst_206 {dimension_numbers = #tpu.dot_dimension_numbers<[2], [1], [1], [2], [0, 0, 0, 1, 1, 2], [0], [0]>} : vector<2x8x8xbf16>, vector<2x8x8xbf16>, vector<2x8x8xf32> -> vector<2x8x8xf32>
    "tpu.trace_stop"() : () -> ()
    %443 = vector.shape_cast %442 : vector<2x8x8xf32> to vector<16x8xf32>
    %c1_207 = arith.constant 1 : index
    %c3_208 = arith.constant 3 : index
    %c0_209 = arith.constant 0 : index
    %c0_210 = arith.constant 0 : index
    %444 = vector.load %arg6[%c1_207, %c3_208, %c0_209, %c0_210] : memref<2x4x3x8xf32, #tpu.memory_space<vmem>>, vector<1x1x3x8xf32>
    %445 = vector.shape_cast %444 : vector<1x1x3x8xf32> to vector<3x8xf32>
    %c1_211 = arith.constant 1 : index
    %c3_212 = arith.constant 3 : index
    %c0_213 = arith.constant 0 : index
    %c0_214 = arith.constant 0 : index
    %446 = vector.load %arg3[%c1_211, %c3_212, %c0_213, %c0_214] : memref<2x4x32x8xbf16, #tpu.memory_space<vmem>>, vector<1x1x32x8xbf16>
    %447 = vector.shape_cast %446 : vector<1x1x32x8xbf16> to vector<32x8xbf16>
    %448 = arith.truncf %302 : vector<16x32xf32> to vector<16x32xbf16>
    %cst_215 = arith.constant dense<0.000000e+00> : vector<16x8xf32>
    %449 = tpu.matmul %448, %447, %cst_215 {dimension_numbers = #tpu.dot_dimension_numbers<[1], [0], [0], [1], [0, 0, 1, 1], [], []>} : vector<16x32xbf16>, vector<32x8xbf16>, vector<16x8xf32> -> vector<16x8xf32>
    %450 = vector.extract_strided_slice %445 {offsets = [0, 0], sizes = [1, 8], strides = [1, 1]} : vector<3x8xf32> to vector<1x8xf32>
    %451 = vector.broadcast %450 : vector<1x8xf32> to vector<16x8xf32>
    %452 = arith.addf %449, %451 : vector<16x8xf32>
    %453 = vector.shape_cast %452 : vector<16x8xf32> to vector<2x8x8xf32>
    %c1_216 = arith.constant 1 : index
    %c3_217 = arith.constant 3 : index
    %c0_218 = arith.constant 0 : index
    %c0_219 = arith.constant 0 : index
    %454 = vector.load %arg4[%c1_216, %c3_217, %c0_218, %c0_219] : memref<2x4x32x8xbf16, #tpu.memory_space<vmem>>, vector<1x1x32x8xbf16>
    %455 = vector.shape_cast %454 : vector<1x1x32x8xbf16> to vector<32x8xbf16>
    %456 = arith.truncf %302 : vector<16x32xf32> to vector<16x32xbf16>
    %cst_220 = arith.constant dense<0.000000e+00> : vector<16x8xf32>
    %457 = tpu.matmul %456, %455, %cst_220 {dimension_numbers = #tpu.dot_dimension_numbers<[1], [0], [0], [1], [0, 0, 1, 1], [], []>} : vector<16x32xbf16>, vector<32x8xbf16>, vector<16x8xf32> -> vector<16x8xf32>
    %458 = vector.extract_strided_slice %445 {offsets = [1, 0], sizes = [1, 8], strides = [1, 1]} : vector<3x8xf32> to vector<1x8xf32>
    %459 = vector.broadcast %458 : vector<1x8xf32> to vector<16x8xf32>
    %460 = arith.addf %457, %459 : vector<16x8xf32>
    %461 = vector.shape_cast %460 : vector<16x8xf32> to vector<2x8x8xf32>
    %c1_221 = arith.constant 1 : index
    %c3_222 = arith.constant 3 : index
    %c0_223 = arith.constant 0 : index
    %c0_224 = arith.constant 0 : index
    %462 = vector.load %arg5[%c1_221, %c3_222, %c0_223, %c0_224] : memref<2x4x32x8xbf16, #tpu.memory_space<vmem>>, vector<1x1x32x8xbf16>
    %463 = vector.shape_cast %462 : vector<1x1x32x8xbf16> to vector<32x8xbf16>
    %464 = arith.truncf %302 : vector<16x32xf32> to vector<16x32xbf16>
    %cst_225 = arith.constant dense<0.000000e+00> : vector<16x8xf32>
    %465 = tpu.matmul %464, %463, %cst_225 {dimension_numbers = #tpu.dot_dimension_numbers<[1], [0], [0], [1], [0, 0, 1, 1], [], []>} : vector<16x32xbf16>, vector<32x8xbf16>, vector<16x8xf32> -> vector<16x8xf32>
    %466 = vector.extract_strided_slice %445 {offsets = [2, 0], sizes = [1, 8], strides = [1, 1]} : vector<3x8xf32> to vector<1x8xf32>
    %467 = vector.broadcast %466 : vector<1x8xf32> to vector<16x8xf32>
    %468 = arith.addf %465, %467 : vector<16x8xf32>
    %469 = vector.shape_cast %468 : vector<16x8xf32> to vector<2x8x8xf32>
    %470 = arith.truncf %453 : vector<2x8x8xf32> to vector<2x8x8xbf16>
    %471 = arith.truncf %461 : vector<2x8x8xf32> to vector<2x8x8xbf16>
    "tpu.trace_start"() <{level = 10 : i32, message = "bqd,bkd->bqk"}> : () -> ()
    %cst_226 = arith.constant dense<0.000000e+00> : vector<2x8x8xf32>
    %472 = tpu.matmul %470, %471, %cst_226 {dimension_numbers = #tpu.dot_dimension_numbers<[2], [2], [1], [1], [0, 0, 0, 1, 1, 1], [0], [0]>} : vector<2x8x8xbf16>, vector<2x8x8xbf16>, vector<2x8x8xf32> -> vector<2x8x8xf32>
    "tpu.trace_stop"() : () -> ()
    %cst_227 = arith.constant 0.353553385 : f32
    %473 = vector.broadcast %cst_227 : f32 to vector<2x8x8xf32>
    %474 = arith.mulf %472, %473 : vector<2x8x8xf32>
    %475 = vector.broadcast %26 : vector<2x1x8xf32> to vector<2x8x8xf32>
    %476 = arith.addf %474, %475 : vector<2x8x8xf32>
    %cst_228 = arith.constant dense<0xFF800000> : vector<2x8xf32>
    %477 = vector.multi_reduction <maximumf>, %476, %cst_228 [2] : vector<2x8x8xf32> to vector<2x8xf32>
    %478 = vector.shape_cast %477 : vector<2x8xf32> to vector<2x8x1xf32>
    %479 = vector.broadcast %478 : vector<2x8x1xf32> to vector<2x8x8xf32>
    %480 = arith.subf %476, %479 : vector<2x8x8xf32>
    %481 = math.exp %480 : vector<2x8x8xf32>
    %cst_229 = arith.constant dense<0.000000e+00> : vector<2x8xf32>
    %482 = vector.multi_reduction <add>, %481, %cst_229 [2] : vector<2x8x8xf32> to vector<2x8xf32>
    %483 = vector.shape_cast %482 : vector<2x8xf32> to vector<2x8x1xf32>
    %484 = tpu.reciprocal %483 {approx = true} : vector<2x8x1xf32> -> vector<2x8x1xf32>
    %485 = vector.broadcast %484 : vector<2x8x1xf32> to vector<2x8x8xf32>
    %486 = arith.mulf %481, %485 : vector<2x8x8xf32>
    %487 = arith.truncf %486 : vector<2x8x8xf32> to vector<2x8x8xbf16>
    %488 = arith.truncf %469 : vector<2x8x8xf32> to vector<2x8x8xbf16>
    "tpu.trace_start"() <{level = 10 : i32, message = "bqk,bkd->bqd"}> : () -> ()
    %cst_230 = arith.constant dense<0.000000e+00> : vector<2x8x8xf32>
    %489 = tpu.matmul %487, %488, %cst_230 {dimension_numbers = #tpu.dot_dimension_numbers<[2], [1], [1], [2], [0, 0, 0, 1, 1, 2], [0], [0]>} : vector<2x8x8xbf16>, vector<2x8x8xbf16>, vector<2x8x8xf32> -> vector<2x8x8xf32>
    "tpu.trace_stop"() : () -> ()
    %490 = vector.shape_cast %489 : vector<2x8x8xf32> to vector<16x8xf32>
    %491 = tpu.concatenate %349, %396, %443, %490 in 1 : vector<16x8xf32>, vector<16x8xf32>, vector<16x8xf32>, vector<16x8xf32> -> vector<16x32xf32>
    %c1_231 = arith.constant 1 : index
    %c0_232 = arith.constant 0 : index
    %c0_233 = arith.constant 0 : index
    %492 = vector.load %arg8[%c1_231, %c0_232, %c0_233] : memref<2x6x32xf32, #tpu.memory_space<vmem>>, vector<1x6x32xf32>
    %493 = vector.shape_cast %492 : vector<1x6x32xf32> to vector<6x32xf32>
    %c1_234 = arith.constant 1 : index
    %c0_235 = arith.constant 0 : index
    %c0_236 = arith.constant 0 : index
    %494 = vector.load %arg7[%c1_234, %c0_235, %c0_236] : memref<2x32x32xbf16, #tpu.memory_space<vmem>>, vector<1x32x32xbf16>
    %495 = vector.shape_cast %494 : vector<1x32x32xbf16> to vector<32x32xbf16>
    %496 = arith.truncf %491 : vector<16x32xf32> to vector<16x32xbf16>
    %cst_237 = arith.constant dense<0.000000e+00> : vector<16x32xf32>
    %497 = tpu.matmul %496, %495, %cst_237 {dimension_numbers = #tpu.dot_dimension_numbers<[1], [0], [0], [1], [0, 0, 1, 1], [], []>} : vector<16x32xbf16>, vector<32x32xbf16>, vector<16x32xf32> -> vector<16x32xf32>
    %498 = vector.extract_strided_slice %493 {offsets = [0, 0], sizes = [1, 32], strides = [1, 1]} : vector<6x32xf32> to vector<1x32xf32>
    %499 = vector.broadcast %498 : vector<1x32xf32> to vector<16x32xf32>
    %500 = arith.addf %497, %499 : vector<16x32xf32>
    %501 = arith.addf %302, %500 : vector<16x32xf32>
    %502 = vector.extract_strided_slice %493 {offsets = [1, 0], sizes = [1, 32], strides = [1, 1]} : vector<6x32xf32> to vector<1x32xf32>
    %503 = vector.extract_strided_slice %493 {offsets = [2, 0], sizes = [1, 32], strides = [1, 1]} : vector<6x32xf32> to vector<1x32xf32>
    %cst_238 = arith.constant dense<0.000000e+00> : vector<16xf32>
    %504 = vector.multi_reduction <add>, %501, %cst_238 [1] : vector<16x32xf32> to vector<16xf32>
    %505 = vector.shape_cast %504 : vector<16xf32> to vector<16x1xf32>
    %cst_239 = arith.constant 3.200000e+01 : f32
    %506 = vector.broadcast %cst_239 : f32 to vector<16x1xf32>
    %507 = arith.divf %505, %506 : vector<16x1xf32>
    %508 = vector.broadcast %507 : vector<16x1xf32> to vector<16x32xf32>
    %509 = arith.subf %501, %508 : vector<16x32xf32>
    %510 = arith.mulf %509, %509 : vector<16x32xf32>
    %cst_240 = arith.constant dense<0.000000e+00> : vector<16xf32>
    %511 = vector.multi_reduction <add>, %510, %cst_240 [1] : vector<16x32xf32> to vector<16xf32>
    %512 = vector.shape_cast %511 : vector<16xf32> to vector<16x1xf32>
    %cst_241 = arith.constant 3.200000e+01 : f32
    %513 = vector.broadcast %cst_241 : f32 to vector<16x1xf32>
    %514 = arith.divf %512, %513 : vector<16x1xf32>
    %515 = vector.broadcast %507 : vector<16x1xf32> to vector<16x32xf32>
    %516 = arith.subf %501, %515 : vector<16x32xf32>
    %cst_242 = arith.constant 9.99999974E-6 : f32
    %517 = vector.broadcast %cst_242 : f32 to vector<16x1xf32>
    %518 = arith.addf %514, %517 : vector<16x1xf32>
    %519 = math.rsqrt %518 : vector<16x1xf32>
    %520 = vector.broadcast %519 : vector<16x1xf32> to vector<16x32xf32>
    %521 = arith.mulf %516, %520 : vector<16x32xf32>
    %522 = vector.broadcast %502 : vector<1x32xf32> to vector<16x32xf32>
    %523 = arith.mulf %521, %522 : vector<16x32xf32>
    %524 = vector.broadcast %503 : vector<1x32xf32> to vector<16x32xf32>
    %525 = arith.addf %523, %524 : vector<16x32xf32>
    %c1_243 = arith.constant 1 : index
    %c0_244 = arith.constant 0 : index
    %c0_245 = arith.constant 0 : index
    %526 = vector.load %arg9[%c1_243, %c0_244, %c0_245] : memref<2x32x64xbf16, #tpu.memory_space<vmem>>, vector<1x32x64xbf16>
    %527 = vector.shape_cast %526 : vector<1x32x64xbf16> to vector<32x64xbf16>
    %528 = arith.truncf %525 : vector<16x32xf32> to vector<16x32xbf16>
    %cst_246 = arith.constant dense<0.000000e+00> : vector<16x64xf32>
    %529 = tpu.matmul %528, %527, %cst_246 {dimension_numbers = #tpu.dot_dimension_numbers<[1], [0], [0], [1], [0, 0, 1, 1], [], []>} : vector<16x32xbf16>, vector<32x64xbf16>, vector<16x64xf32> -> vector<16x64xf32>
    %c1_247 = arith.constant 1 : index
    %c0_248 = arith.constant 0 : index
    %c0_249 = arith.constant 0 : index
    %530 = vector.load %arg10[%c1_247, %c0_248, %c0_249] : memref<2x1x64xf32, #tpu.memory_space<vmem>>, vector<1x1x64xf32>
    %531 = vector.shape_cast %530 : vector<1x1x64xf32> to vector<1x64xf32>
    %532 = vector.broadcast %531 : vector<1x64xf32> to vector<16x64xf32>
    %533 = arith.addf %529, %532 : vector<16x64xf32>
    %cst_250 = arith.constant 5.000000e-01 : f32
    %534 = vector.broadcast %cst_250 : f32 to vector<16x64xf32>
    %535 = arith.mulf %534, %533 : vector<16x64xf32>
    %cst_251 = arith.constant 4.471500e-02 : f32
    %536 = vector.broadcast %cst_251 : f32 to vector<16x64xf32>
    %537 = arith.mulf %536, %533 : vector<16x64xf32>
    %538 = arith.mulf %537, %533 : vector<16x64xf32>
    %539 = arith.mulf %538, %533 : vector<16x64xf32>
    %540 = arith.addf %533, %539 : vector<16x64xf32>
    %cst_252 = arith.constant 0.797884583 : f32
    %541 = vector.broadcast %cst_252 : f32 to vector<16x64xf32>
    %542 = arith.mulf %541, %540 : vector<16x64xf32>
    %543 = math.tanh %542 : vector<16x64xf32>
    %cst_253 = arith.constant 1.000000e+00 : f32
    %544 = vector.broadcast %cst_253 : f32 to vector<16x64xf32>
    %545 = arith.addf %544, %543 : vector<16x64xf32>
    %546 = arith.mulf %535, %545 : vector<16x64xf32>
    %c1_254 = arith.constant 1 : index
    %c0_255 = arith.constant 0 : index
    %c0_256 = arith.constant 0 : index
    %547 = vector.load %arg11[%c1_254, %c0_255, %c0_256] : memref<2x64x32xbf16, #tpu.memory_space<vmem>>, vector<1x64x32xbf16>
    %548 = vector.shape_cast %547 : vector<1x64x32xbf16> to vector<64x32xbf16>
    %549 = arith.truncf %546 : vector<16x64xf32> to vector<16x64xbf16>
    %cst_257 = arith.constant dense<0.000000e+00> : vector<16x32xf32>
    %550 = tpu.matmul %549, %548, %cst_257 {dimension_numbers = #tpu.dot_dimension_numbers<[1], [0], [0], [1], [0, 0, 1, 1], [], []>} : vector<16x64xbf16>, vector<64x32xbf16>, vector<16x32xf32> -> vector<16x32xf32>
    %551 = vector.extract_strided_slice %493 {offsets = [3, 0], sizes = [1, 32], strides = [1, 1]} : vector<6x32xf32> to vector<1x32xf32>
    %552 = vector.broadcast %551 : vector<1x32xf32> to vector<16x32xf32>
    %553 = arith.addf %550, %552 : vector<16x32xf32>
    %554 = arith.addf %525, %553 : vector<16x32xf32>
    %555 = vector.extract_strided_slice %493 {offsets = [4, 0], sizes = [1, 32], strides = [1, 1]} : vector<6x32xf32> to vector<1x32xf32>
    %556 = vector.extract_strided_slice %493 {offsets = [5, 0], sizes = [1, 32], strides = [1, 1]} : vector<6x32xf32> to vector<1x32xf32>
    %cst_258 = arith.constant dense<0.000000e+00> : vector<16xf32>
    %557 = vector.multi_reduction <add>, %554, %cst_258 [1] : vector<16x32xf32> to vector<16xf32>
    %558 = vector.shape_cast %557 : vector<16xf32> to vector<16x1xf32>
    %cst_259 = arith.constant 3.200000e+01 : f32
    %559 = vector.broadcast %cst_259 : f32 to vector<16x1xf32>
    %560 = arith.divf %558, %559 : vector<16x1xf32>
    %561 = vector.broadcast %560 : vector<16x1xf32> to vector<16x32xf32>
    %562 = arith.subf %554, %561 : vector<16x32xf32>
    %563 = arith.mulf %562, %562 : vector<16x32xf32>
    %cst_260 = arith.constant dense<0.000000e+00> : vector<16xf32>
    %564 = vector.multi_reduction <add>, %563, %cst_260 [1] : vector<16x32xf32> to vector<16xf32>
    %565 = vector.shape_cast %564 : vector<16xf32> to vector<16x1xf32>
    %cst_261 = arith.constant 3.200000e+01 : f32
    %566 = vector.broadcast %cst_261 : f32 to vector<16x1xf32>
    %567 = arith.divf %565, %566 : vector<16x1xf32>
    %568 = vector.broadcast %560 : vector<16x1xf32> to vector<16x32xf32>
    %569 = arith.subf %554, %568 : vector<16x32xf32>
    %cst_262 = arith.constant 9.99999974E-6 : f32
    %570 = vector.broadcast %cst_262 : f32 to vector<16x1xf32>
    %571 = arith.addf %567, %570 : vector<16x1xf32>
    %572 = math.rsqrt %571 : vector<16x1xf32>
    %573 = vector.broadcast %572 : vector<16x1xf32> to vector<16x32xf32>
    %574 = arith.mulf %569, %573 : vector<16x32xf32>
    %575 = vector.broadcast %555 : vector<1x32xf32> to vector<16x32xf32>
    %576 = arith.mulf %574, %575 : vector<16x32xf32>
    %577 = vector.broadcast %556 : vector<1x32xf32> to vector<16x32xf32>
    %578 = arith.addf %576, %577 : vector<16x32xf32>
    %579 = vector.extract_strided_slice %578 {offsets = [0, 0], sizes = [1, 32], strides = [1, 1]} : vector<16x32xf32> to vector<1x32xf32>
    %580 = vector.extract_strided_slice %578 {offsets = [8, 0], sizes = [1, 32], strides = [1, 1]} : vector<16x32xf32> to vector<1x32xf32>
    %581 = tpu.concatenate %579, %580 in 0 : vector<1x32xf32>, vector<1x32xf32> -> vector<2x32xf32>
    %c0_263 = arith.constant 0 : index
    %c0_264 = arith.constant 0 : index
    %582 = vector.load %arg12[%c0_263, %c0_264] : memref<32x32xbf16, #tpu.memory_space<vmem>>, vector<32x32xbf16>
    %583 = arith.truncf %581 : vector<2x32xf32> to vector<2x32xbf16>
    %cst_265 = arith.constant dense<0.000000e+00> : vector<2x32xf32>
    %584 = tpu.matmul %583, %582, %cst_265 {dimension_numbers = #tpu.dot_dimension_numbers<[1], [0], [0], [1], [0, 0, 1, 1], [], []>} : vector<2x32xbf16>, vector<32x32xbf16>, vector<2x32xf32> -> vector<2x32xf32>
    %c0_266 = arith.constant 0 : index
    %c0_267 = arith.constant 0 : index
    %585 = vector.load %arg13[%c0_266, %c0_267] : memref<1x32xf32, #tpu.memory_space<vmem>>, vector<1x32xf32>
    %586 = vector.broadcast %585 : vector<1x32xf32> to vector<2x32xf32>
    %587 = arith.addf %584, %586 : vector<2x32xf32>
    %588 = math.tanh %587 : vector<2x32xf32>
    %c0_268 = arith.constant 0 : index
    %c0_269 = arith.constant 0 : index
    %589 = vector.load %arg14[%c0_268, %c0_269] : memref<32x128xbf16, #tpu.memory_space<vmem>>, vector<32x128xbf16>
    %590 = arith.truncf %588 : vector<2x32xf32> to vector<2x32xbf16>
    %cst_270 = arith.constant dense<0.000000e+00> : vector<2x128xf32>
    %591 = tpu.matmul %590, %589, %cst_270 {dimension_numbers = #tpu.dot_dimension_numbers<[1], [0], [0], [1], [0, 0, 1, 1], [], []>} : vector<2x32xbf16>, vector<32x128xbf16>, vector<2x128xf32> -> vector<2x128xf32>
    %c0_271 = arith.constant 0 : index
    %c0_272 = arith.constant 0 : index
    %592 = vector.load %arg15[%c0_271, %c0_272] : memref<1x128xf32, #tpu.memory_space<vmem>>, vector<1x128xf32>
    %593 = vector.broadcast %592 : vector<1x128xf32> to vector<2x128xf32>
    %594 = arith.addf %591, %593 : vector<2x128xf32>
    %c0_273 = arith.constant 0 : index
    %c0_274 = arith.constant 0 : index
    %595 = vector.load %arg16[%c0_273, %c0_274] : memref<2x128xf32, #tpu.memory_space<vmem>>, vector<2x128xf32>
    tpu.vector_store %arg16[%c0_273, %c0_274], %594 {strides = array<i32>} : memref<2x128xf32, #tpu.memory_space<vmem>>, vector<2x128xf32>,
    return
  }
}

</mosaic_0001>

<llo_original>
// kernel: forward.1
$region0: #{forward.1}
  #allocation0 [shape = 'u32[]', space=smem, size = 0x4, offset = 0x4, fixed_abs, tag = 'smem constant byte address 0x4 - core index']
  #allocation1 [shape = 'u32[144,128]{1,0:T(1,128)}', space=vmem, size = 0x12000, scoped, tag = 'internal scratch']
  %s0 = inlined_call_operand.vmem [shape: f32[16,32], index: 0, kind: input, shape index: {}]
  %s1 = inlined_call_operand.vmem [shape: f32[2,1,8], index: 1, kind: input, shape index: {}]
  %s2 = inlined_call_operand.vmem [shape: f32[2,32], index: 2, kind: input, shape index: {}]
  %s3 = inlined_call_operand.vmem [shape: bf16[2,4,32,8], index: 3, kind: input, shape index: {}]
  %s4 = inlined_call_operand.vmem [shape: bf16[2,4,32,8], index: 4, kind: input, shape index: {}]
  %s5 = inlined_call_operand.vmem [shape: bf16[2,4,32,8], index: 5, kind: input, shape index: {}]
  %s6 = inlined_call_operand.vmem [shape: f32[2,4,3,8], index: 6, kind: input, shape index: {}]
  %s7 = inlined_call_operand.vmem [shape: bf16[2,32,32], index: 7, kind: input, shape index: {}]
  %s8 = inlined_call_operand.vmem [shape: f32[2,6,32], index: 8, kind: input, shape index: {}]
  %s9 = inlined_call_operand.vmem [shape: bf16[2,32,64], index: 9, kind: input, shape index: {}]
  %s10 = inlined_call_operand.vmem [shape: f32[2,1,64], index: 10, kind: input, shape index: {}]
  %s11 = inlined_call_operand.vmem [shape: bf16[2,64,32], index: 11, kind: input, shape index: {}]
  %s12 = inlined_call_operand.vmem [shape: bf16[32,32], index: 12, kind: input, shape index: {}]
  %s13 = inlined_call_operand.vmem [shape: f32[1,32], index: 13, kind: input, shape index: {}]
  %s14 = inlined_call_operand.vmem [shape: bf16[32,128], index: 14, kind: input, shape index: {}]
  %s15 = inlined_call_operand.vmem [shape: f32[1,128], index: 15, kind: input, shape index: {}]
  %s16 = inlined_call_operand.hbm [shape: f32[2,128], index: 16, kind: output, shape index: {}]
  %s17 = sld [smem:[#allocation0]]
  $region74: #{forward.1} parent=0
    _
  %s19 = ssub.s32 1, %s17
  %s20 = scalar_select 0, %s19, %s17
  $region1: #{forward.1} parent=0
    #allocation2 [shape = 'u8[1024]{0}', space=vmem, size = 0x400, scoped, tag = 'output window, operand 0, single buffered']
    #allocation3 [shape = 's32[1]{0}', space=sflag, size = 0x4, scoped, tag = 'scoped memory for forward.1']
    %21 = vsyncpa [#allocation3], 0
    // Predicated region
    $region2: #{forward.1} parent=1 // pred_check
      _
    $region3: #{forward.1} parent=1 // pred_check_branch
      %23 = sbr.rel (0) target = $region5
    $region4: #{forward.1} parent=1 // pred_region
      _
    $region5: #{forward.1} parent=1 // pred_fallthru
      _
    // Predicated region
    $region6: #{forward.1} parent=1 // pred_check
      _
    $region7: #{forward.1} parent=1 // pred_check_branch
      %25 = sbr.rel (0) target = $region9
    $region8: #{forward.1} parent=1 // pred_region
      _
    $region9: #{forward.1} parent=1 // pred_fallthru
      _
    // Predicated region
    $region10: #{forward.1} parent=1 // pred_check
      _
    $region11: #{forward.1} parent=1 // pred_check_branch
      %27 = sbr.rel (0) target = $region13
    $region12: #{forward.1} parent=1 // pred_region
      _
    $region13: #{forward.1} parent=1 // pred_fallthru
      _
    // Predicated region
    $region14: #{forward.1} parent=1 // pred_check
      _
    $region15: #{forward.1} parent=1 // pred_check_branch
      %29 = sbr.rel (0) target = $region17
    $region16: #{forward.1} parent=1 // pred_region
      _
    $region17: #{forward.1} parent=1 // pred_fallthru
      _
    // Predicated region
    $region18: #{forward.1} parent=1 // pred_check
      _
    $region19: #{forward.1} parent=1 // pred_check_branch
      %31 = sbr.rel (0) target = $region21
    $region20: #{forward.1} parent=1 // pred_region
      _
    $region21: #{forward.1} parent=1 // pred_fallthru
      _
    // Predicated region
    $region22: #{forward.1} parent=1 // pred_check
      _
    $region23: #{forward.1} parent=1 // pred_check_branch
      %33 = sbr.rel (0) target = $region25
    $region24: #{forward.1} parent=1 // pred_region
      _
    $region25: #{forward.1} parent=1 // pred_fallthru
      _
    // Predicated region
    $region26: #{forward.1} parent=1 // pred_check
      _
    $region27: #{forward.1} parent=1 // pred_check_branch
      %35 = sbr.rel (0) target = $region29
    $region28: #{forward.1} parent=1 // pred_region
      _
    $region29: #{forward.1} parent=1 // pred_fallthru
      _
    // Predicated region
    $region30: #{forward.1} parent=1 // pred_check
      _
    $region31: #{forward.1} parent=1 // pred_check_branch
      %37 = sbr.rel (0) target = $region33
    $region32: #{forward.1} parent=1 // pred_region
      _
    $region33: #{forward.1} parent=1 // pred_fallthru
      _
    // Predicated region
    $region34: #{forward.1} parent=1 // pred_check
      _
    $region35: #{forward.1} parent=1 // pred_check_branch
      %39 = sbr.rel (0) target = $region37
    $region36: #{forward.1} parent=1 // pred_region
      _
    $region37: #{forward.1} parent=1 // pred_fallthru
      _
    // Predicated region
    $region38: #{forward.1} parent=1 // pred_check
      _
    $region39: #{forward.1} parent=1 // pred_check_branch
      %41 = sbr.rel (0) target = $region41
    $region40: #{forward.1} parent=1 // pred_region
      _
    $region41: #{forward.1} parent=1 // pred_fallthru
      _
    // Predicated region
    $region42: #{forward.1} parent=1 // pred_check
      _
    $region43: #{forward.1} parent=1 // pred_check_branch
      %43 = sbr.rel (0) target = $region45
    $region44: #{forward.1} parent=1 // pred_region
      _
    $region45: #{forward.1} parent=1 // pred_fallthru
      _
    // Predicated region
    $region46: #{forward.1} parent=1 // pred_check
      _
    $region47: #{forward.1} parent=1 // pred_check_branch
      %45 = sbr.rel (0) target = $region49
    $region48: #{forward.1} parent=1 // pred_region
      _
    $region49: #{forward.1} parent=1 // pred_fallthru
      _
    // Predicated region
    $region50: #{forward.1} parent=1 // pred_check
      _
    $region51: #{forward.1} parent=1 // pred_check_branch
      %47 = sbr.rel (0) target = $region53
    $region52: #{forward.1} parent=1 // pred_region
      _
    $region53: #{forward.1} parent=1 // pred_fallthru
      _
    // Predicated region
    $region54: #{forward.1} parent=1 // pred_check
      _
    $region55: #{forward.1} parent=1 // pred_check_branch
      %49 = sbr.rel (0) target = $region57
    $region56: #{forward.1} parent=1 // pred_region
      _
    $region57: #{forward.1} parent=1 // pred_fallthru
      _
    // Predicated region
    $region58: #{forward.1} parent=1 // pred_check
      _
    $region59: #{forward.1} parent=1 // pred_check_branch
      %51 = sbr.rel (0) target = $region61
    $region60: #{forward.1} parent=1 // pred_region
      _
    $region61: #{forward.1} parent=1 // pred_fallthru
      _
    // Predicated region
    $region62: #{forward.1} parent=1 // pred_check
      _
    $region63: #{forward.1} parent=1 // pred_check_branch
      %53 = sbr.rel (0) target = $region65
    $region64: #{forward.1} parent=1 // pred_region
      _
    $region65: #{forward.1} parent=1 // pred_fallthru
      _
    %v55 = vld [vmem:[%s2] sm:$0x3]
    %v56 = vld [vmem:[%s0] sm:$0xff]
    %v57 = vld [vmem:[%s0 + $0x8] sm:$0xff]
    %vm58 = vcmask 261120
    %v59 = vsel %vm58, %v56, 0.0
    %60 = vadd.xlane.f32.xlu0 %v59
    %v61 = vpop.xlane.xlu0 %60
    %v62 = vsel %vm58, %v57, 0.0
    %63 = vadd.xlane.f32.xlu0 %v62
    %v64 = vpop.xlane.xlu0 %63
    %v65 = vrcp.pop 32.0
    %v66 = vmul.f32 %v61, %v65
    %v67 = vmul.f32 %v64, %v65
    %v68 = vsub.f32 %v56, %v66
    %v69 = vsub.f32 %v57, %v67
    %v70 = vmul.f32 %v68, %v68
    %v71 = vmul.f32 %v69, %v69
    %v72 = vsel %vm58, %v70, 0.0
    %73 = vadd.xlane.f32.xlu0 %v72
    %v74 = vpop.xlane.xlu0 %73
    %v75 = vsel %vm58, %v71, 0.0
    %76 = vadd.xlane.f32.xlu0 %v75
    %v77 = vpop.xlane.xlu0 %76
    %v78 = vmul.f32 %v74, %v65
    %v79 = vmul.f32 %v77, %v65
    %v80 = vadd.f32 %v78, 1e-05
    %v81 = vadd.f32 %v79, 1e-05
    %v82 = vrsqrt.pop %v80
    %v83 = vrsqrt.pop %v81
    %v84 = vmul.f32 %v68, %v82
    %v85 = vmul.f32 %v69, %v83
    %v86 = vlaneseq
    %v87 = vshrl.u32 %v86, 7
    %v88 = vsub.s32 0, %v87
    %v89 = vrot.slane %v55, %v88
    %v90 = vmul.f32 %v84, %v89
    %v91 = vmul.f32 %v85, %v89
    %v92 = vlaneseq
    %v93 = vshrl.u32 %v92, 7
    %v94 = vsub.s32 1, %v93
    %v95 = vrot.slane %v55, %v94
    %v96 = vadd.f32 %v90, %v95
    %v97 = vadd.f32 %v91, %v95
    %v98 = vld [vmem:[%s1] sm:$0x1]
    %v99 = vld [vmem:[%s1 + $0x1] sm:$0x1]
    %v100 = vld [vmem:[%s6] sm:$0x7]
    %v101 = vld [vmem:[%s3] sm:$0xf]
    %v102 = vld [vmem:[%s3 + $0x4] sm:$0xf]
    %v103 = vld [vmem:[%s3 + $0x8] sm:$0xf]
    %v104 = vld [vmem:[%s3 + $0xc] sm:$0xf]
    %v105 = vpack.c.bf16 %v97, %v96
    %v106 = vlaneseq
    %v107 = vshrl.u32 %v106, 7
    %v108 = vsub.s32 0, %v107
    %v109 = vrot.slane %v100, %v108
    %v114 = vunpack.c.l.b16 %v101
    %v115 = vunpack.c.l.b16 %v102
    %v116 = vunpack.c.l.b16 %v103
    %v117 = vunpack.c.l.b16 %v104
    %v118 = vpack.c.b16 %v115, %v114
    %v119 = vpack.c.b16 %v117, %v116
    %v123 = vsel %vm58, %v105, 0
    %125 = vmatprep.subr.bf16.mxu0 0
    %126 = vmatpush1.bf16.msra.mxu0 %v118
    %127 = vmatprep.subr.bf16.mxu0 0
    %128 = vmatpush1.bf16.msra.mxu0 %v119
    %129 = vmatprep.subr.bf16.mxu0 0
    %130 = vmatpush1.bf16.msra.mxu0 0
    %131 = vmatprep.subr.bf16.mxu0 0
    %132 = vmatpush1.bf16.msra.mxu0 0
    %133 = vmatprep.subr.bf16.mxu0 0
    %134 = vmatpush1.bf16.msra.mxu0 0
    %135 = vmatprep.subr.bf16.mxu0 0
    %136 = vmatpush1.bf16.msra.mxu0 0
    %137 = vmatprep.subr.bf16.mxu0 0
    %138 = vmatpush1.bf16.msra.mxu0 0
    %139 = vmatprep.subr.bf16.mxu0 0
    %140 = vmatpush1.bf16.msra.mxu0 0
    %141 = vmatprep.subr.bf16.mxu0 0
    %142 = vmatpush1.bf16.msra.mxu0 0
    %143 = vmatprep.subr.bf16.mxu0 0
    %144 = vmatpush1.bf16.msra.mxu0 0
    %145 = vmatprep.subr.bf16.mxu0 0
    %146 = vmatpush1.bf16.msra.mxu0 0
    %147 = vmatprep.subr.bf16.mxu0 0
    %148 = vmatpush1.bf16.msra.mxu0 0
    %149 = vmatprep.subr.bf16.mxu0 0
    %150 = vmatpush1.bf16.msra.mxu0 0
    %151 = vmatprep.subr.bf16.mxu0 0
    %152 = vmatpush1.bf16.msra.mxu0 0
    %153 = vmatprep.subr.bf16.mxu0 0
    %154 = vmatpush1.bf16.msra.mxu0 0
    %155 = vmatprep.subr.bf16.mxu0 0
    %156 = vmatpush1.bf16.msra.mxu0 0
    %157 = vmatprep.mubr.bf16.mxu0 0
    %158 = vmatmul.mubr.bf16.gmra.mrb[0].mxu0 %v123
    %v159 = vpop.f32.mrb[0].mxu0
    %v160 = vadd.f32 %v109, %v159
    %v161 = vpop.f32.mrb[0].mxu0
    %v162 = vpop.f32.mrb[0].mxu0
    %v163 = vadd.f32 %v109, %v162
    %v164 = vpop.f32.mrb[0].mxu0
    %165 = vdwg.mxu0
    %v166 = vld [vmem:[%s4] sm:$0xf]
    %v167 = vld [vmem:[%s4 + $0x4] sm:$0xf]
    %v168 = vld [vmem:[%s4 + $0x8] sm:$0xf]
    %v169 = vld [vmem:[%s4 + $0xc] sm:$0xf]
    %v170 = vlaneseq
    %v171 = vshrl.u32 %v170, 7
    %v172 = vsub.s32 1, %v171
    %v173 = vrot.slane %v100, %v172
    %v178 = vunpack.c.l.b16 %v166
    %v179 = vunpack.c.l.b16 %v167
    %v180 = vunpack.c.l.b16 %v168
    %v181 = vunpack.c.l.b16 %v169
    %v182 = vpack.c.b16 %v179, %v178
    %v183 = vpack.c.b16 %v181, %v180
    %186 = vmatprep.subr.bf16.mxu0 0
    %187 = vmatpush1.bf16.msra.mxu0 %v182
    %188 = vmatprep.subr.bf16.mxu0 0
    %189 = vmatpush1.bf16.msra.mxu0 %v183
    %190 = vmatprep.subr.bf16.mxu0 0
    %191 = vmatpush1.bf16.msra.mxu0 0
    %192 = vmatprep.subr.bf16.mxu0 0
    %193 = vmatpush1.bf16.msra.mxu0 0
    %194 = vmatprep.subr.bf16.mxu0 0
    %195 = vmatpush1.bf16.msra.mxu0 0
    %196 = vmatprep.subr.bf16.mxu0 0
    %197 = vmatpush1.bf16.msra.mxu0 0
    %198 = vmatprep.subr.bf16.mxu0 0
    %199 = vmatpush1.bf16.msra.mxu0 0
    %200 = vmatprep.subr.bf16.mxu0 0
    %201 = vmatpush1.bf16.msra.mxu0 0
    %202 = vmatprep.subr.bf16.mxu0 0
    %203 = vmatpush1.bf16.msra.mxu0 0
    %204 = vmatprep.subr.bf16.mxu0 0
    %205 = vmatpush1.bf16.msra.mxu0 0
    %206 = vmatprep.subr.bf16.mxu0 0
    %207 = vmatpush1.bf16.msra.mxu0 0
    %208 = vmatprep.subr.bf16.mxu0 0
    %209 = vmatpush1.bf16.msra.mxu0 0
    %210 = vmatprep.subr.bf16.mxu0 0
    %211 = vmatpush1.bf16.msra.mxu0 0
    %212 = vmatprep.subr.bf16.mxu0 0
    %213 = vmatpush1.bf16.msra.mxu0 0
    %214 = vmatprep.subr.bf16.mxu0 0
    %215 = vmatpush1.bf16.msra.mxu0 0
    %216 = vmatprep.subr.bf16.mxu0 0
    %217 = vmatpush1.bf16.msra.mxu0 0
    %218 = vmatprep.mubr.bf16.mxu0 0
    %219 = vmatmul.mubr.bf16.gmra.mrb[0].mxu0 %v123
    %v220 = vpop.f32.mrb[0].mxu0
    %v221 = vadd.f32 %v173, %v220
    %v222 = vpop.f32.mrb[0].mxu0
    %v223 = vpop.f32.mrb[0].mxu0
    %v224 = vadd.f32 %v173, %v223
    %v225 = vpop.f32.mrb[0].mxu0
    %226 = vdwg.mxu0
    %v227 = vld [vmem:[%s5] sm:$0xf]
    %v228 = vld [vmem:[%s5 + $0x4] sm:$0xf]
    %v229 = vld [vmem:[%s5 + $0x8] sm:$0xf]
    %v230 = vld [vmem:[%s5 + $0xc] sm:$0xf]
    %v231 = vlaneseq
    %v232 = vshrl.u32 %v231, 7
    %v233 = vsub.s32 2, %v232
    %v234 = vrot.slane %v100, %v233
    %v239 = vunpack.c.l.b16 %v227
    %v240 = vunpack.c.l.b16 %v228
    %v241 = vunpack.c.l.b16 %v229
    %v242 = vunpack.c.l.b16 %v230
    %v243 = vpack.c.b16 %v240, %v239
    %v244 = vpack.c.b16 %v242, %v241
    %247 = vmatprep.subr.bf16.mxu0 0
    %248 = vmatpush1.bf16.msra.mxu0 %v243
    %249 = vmatprep.subr.bf16.mxu0 0
    %250 = vmatpush1.bf16.msra.mxu0 %v244
    %251 = vmatprep.subr.bf16.mxu0 0
    %252 = vmatpush1.bf16.msra.mxu0 0
    %253 = vmatprep.subr.bf16.mxu0 0
    %254 = vmatpush1.bf16.msra.mxu0 0
    %255 = vmatprep.subr.bf16.mxu0 0
    %256 = vmatpush1.bf16.msra.mxu0 0
    %257 = vmatprep.subr.bf16.mxu0 0
    %258 = vmatpush1.bf16.msra.mxu0 0
    %259 = vmatprep.subr.bf16.mxu0 0
    %260 = vmatpush1.bf16.msra.mxu0 0
    %261 = vmatprep.subr.bf16.mxu0 0
    %262 = vmatpush1.bf16.msra.mxu0 0
    %263 = vmatprep.subr.bf16.mxu0 0
    %264 = vmatpush1.bf16.msra.mxu0 0
    %265 = vmatprep.subr.bf16.mxu0 0
    %266 = vmatpush1.bf16.msra.mxu0 0
    %267 = vmatprep.subr.bf16.mxu0 0
    %268 = vmatpush1.bf16.msra.mxu0 0
    %269 = vmatprep.subr.bf16.mxu0 0
    %270 = vmatpush1.bf16.msra.mxu0 0
    %271 = vmatprep.subr.bf16.mxu0 0
    %272 = vmatpush1.bf16.msra.mxu0 0
    %273 = vmatprep.subr.bf16.mxu0 0
    %274 = vmatpush1.bf16.msra.mxu0 0
    %275 = vmatprep.subr.bf16.mxu0 0
    %276 = vmatpush1.bf16.msra.mxu0 0
    %277 = vmatprep.subr.bf16.mxu0 0
    %278 = vmatpush1.bf16.msra.mxu0 0
    %279 = vmatprep.mubr.bf16.mxu0 0
    %280 = vmatmul.mubr.bf16.gmra.mrb[0].mxu0 %v123
    %v281 = vpop.f32.mrb[0].mxu0
    %v282 = vadd.f32 %v234, %v281
    %v283 = vpop.f32.mrb[0].mxu0
    %v284 = vpop.f32.mrb[0].mxu0
    %v285 = vadd.f32 %v234, %v284
    %v286 = vpop.f32.mrb[0].mxu0
    %287 = vdwg.mxu0
    %v288 = vpack.c.bf16 %v160, %v160
    %v289 = vpack.c.bf16 %v163, %v163
    %v290 = vpack.c.bf16 %v221, %v221
    %v291 = vpack.c.bf16 %v224, %v224
    %vm292 = vcmask 64512
    %v294 = vsel %vm292, %v288, 0
    %v297 = vsel %vm292, %v290, 0
    %299 = vmatprep.subr.bf16.mxu0 0
    %300 = vmatpush1.bf16.xpose.msra.mxu0 %v297
    %301 = vmatprep.subr.bf16.mxu0 0
    %302 = vmatpush1.bf16.xpose.msra.mxu0 0
    %303 = vmatprep.subr.bf16.mxu0 0
    %304 = vmatpush1.bf16.xpose.msra.mxu0 0
    %305 = vmatprep.subr.bf16.mxu0 0
    %306 = vmatpush1.bf16.xpose.msra.mxu0 0
    %307 = vmatprep.subr.bf16.mxu0 0
    %308 = vmatpush1.bf16.xpose.msra.mxu0 0
    %309 = vmatprep.subr.bf16.mxu0 0
    %310 = vmatpush1.bf16.xpose.msra.mxu0 0
    %311 = vmatprep.subr.bf16.mxu0 0
    %312 = vmatpush1.bf16.xpose.msra.mxu0 0
    %313 = vmatprep.subr.bf16.mxu0 0
    %314 = vmatpush1.bf16.xpose.msra.mxu0 0
    %315 = vmatprep.subr.bf16.mxu0 0
    %316 = vmatpush1.bf16.xpose.msra.mxu0 0
    %317 = vmatprep.subr.bf16.mxu0 0
    %318 = vmatpush1.bf16.xpose.msra.mxu0 0
    %319 = vmatprep.subr.bf16.mxu0 0
    %320 = vmatpush1.bf16.xpose.msra.mxu0 0
    %321 = vmatprep.subr.bf16.mxu0 0
    %322 = vmatpush1.bf16.xpose.msra.mxu0 0
    %323 = vmatprep.subr.bf16.mxu0 0
    %324 = vmatpush1.bf16.xpose.msra.mxu0 0
    %325 = vmatprep.subr.bf16.mxu0 0
    %326 = vmatpush1.bf16.xpose.msra.mxu0 0
    %327 = vmatprep.subr.bf16.mxu0 0
    %328 = vmatpush1.bf16.xpose.msra.mxu0 0
    %329 = vmatprep.subr.bf16.mxu0 0
    %330 = vmatpush1.bf16.xpose.msra.mxu0 0
    %331 = vmatprep.mubr.bf16.mxu0 0
    %332 = vmatmul.mubr.bf16.gmra.mrb[0].mxu0 %v294
    %v333 = vpop.f32.mrb[0].mxu0
    %v334 = vadd.f32 0.0, %v333
    %v335 = vpop.f32.mrb[0].mxu0
    %v336 = vpop.f32.mrb[0].mxu0
    %v337 = vpop.f32.mrb[0].mxu0
    %338 = vdwg.mxu0
    %v340 = vsel %vm292, %v289, 0
    %v343 = vsel %vm292, %v291, 0
    %345 = vmatprep.subr.bf16.mxu0 0
    %346 = vmatpush1.bf16.xpose.msra.mxu0 %v343
    %347 = vmatprep.subr.bf16.mxu0 0
    %348 = vmatpush1.bf16.xpose.msra.mxu0 0
    %349 = vmatprep.subr.bf16.mxu0 0
    %350 = vmatpush1.bf16.xpose.msra.mxu0 0
    %351 = vmatprep.subr.bf16.mxu0 0
    %352 = vmatpush1.bf16.xpose.msra.mxu0 0
    %353 = vmatprep.subr.bf16.mxu0 0
    %354 = vmatpush1.bf16.xpose.msra.mxu0 0
    %355 = vmatprep.subr.bf16.mxu0 0
    %356 = vmatpush1.bf16.xpose.msra.mxu0 0
    %357 = vmatprep.subr.bf16.mxu0 0
    %358 = vmatpush1.bf16.xpose.msra.mxu0 0
    %359 = vmatprep.subr.bf16.mxu0 0
    %360 = vmatpush1.bf16.xpose.msra.mxu0 0
    %361 = vmatprep.subr.bf16.mxu0 0
    %362 = vmatpush1.bf16.xpose.msra.mxu0 0
    %363 = vmatprep.subr.bf16.mxu0 0
    %364 = vmatpush1.bf16.xpose.msra.mxu0 0
    %365 = vmatprep.subr.bf16.mxu0 0
    %366 = vmatpush1.bf16.xpose.msra.mxu0 0
    %367 = vmatprep.subr.bf16.mxu0 0
    %368 = vmatpush1.bf16.xpose.msra.mxu0 0
    %369 = vmatprep.subr.bf16.mxu0 0
    %370 = vmatpush1.bf16.xpose.msra.mxu0 0
    %371 = vmatprep.subr.bf16.mxu0 0
    %372 = vmatpush1.bf16.xpose.msra.mxu0 0
    %373 = vmatprep.subr.bf16.mxu0 0
    %374 = vmatpush1.bf16.xpose.msra.mxu0 0
    %375 = vmatprep.subr.bf16.mxu0 0
    %376 = vmatpush1.bf16.xpose.msra.mxu0 0
    %377 = vmatprep.mubr.bf16.mxu0 0
    %378 = vmatmul.mubr.bf16.gmra.mrb[0].mxu0 %v340
    %v379 = vpop.f32.mrb[0].mxu0
    %v380 = vadd.f32 0.0, %v379
    %v381 = vpop.f32.mrb[0].mxu0
    %v382 = vpop.f32.mrb[0].mxu0
    %v383 = vpop.f32.mrb[0].mxu0
    %384 = vdwg.mxu0
    %v385 = vmul.f32 %v334, 0.35355338
    %v386 = vmul.f32 %v380, 0.35355338
    %v389 = vlaneseq
    %v390 = vshrl.u32 %v389, 7
    %v391 = vsub.s32 0, %v390
    %v392 = vrot.slane %v98, %v391
    %v393 = vlaneseq
    %v394 = vshrl.u32 %v393, 7
    %v395 = vsub.s32 0, %v394
    %v396 = vrot.slane %v99, %v395
    %v399 = vadd.f32 %v385, %v392
    %v400 = vadd.f32 %v386, %v396
    %v401 = vsel %vm292, %v399, -inf
    %402 = vmax.xlane.f32.xlu0 %v401
    %v403 = vpop.xlane.xlu0 %402
    %v404 = vsel %vm292, %v400, -inf
    %405 = vmax.xlane.f32.xlu0 %v404
    %v406 = vpop.xlane.xlu0 %405
    %v407 = vsub.f32 %v399, %v403
    %v408 = vsub.f32 %v400, %v406
    %v409 = vmul.f32 %v407, 1.442695
    %v410 = vpow.pop %v409
    %v411 = vmul.f32 %v408, 1.442695
    %v412 = vpow.pop %v411
    %v413 = vsel %vm292, %v410, 0.0
    %414 = vadd.xlane.f32.xlu0 %v413
    %v415 = vpop.xlane.xlu0 %414
    %v416 = vsel %vm292, %v412, 0.0
    %417 = vadd.xlane.f32.xlu0 %v416
    %v418 = vpop.xlane.xlu0 %417
    %v419 = vrcp.pop %v415
    %v420 = vrcp.pop %v418
    %v421 = vmul.f32 %v410, %v419
    %v422 = vmul.f32 %v412, %v420
    %v423 = vpack.c.bf16 %v421, %v421
    %v424 = vpack.c.bf16 %v422, %v422
    %v425 = vpack.c.bf16 %v282, %v282
    %v426 = vpack.c.bf16 %v285, %v285
    %v428 = vsel %vm292, %v423, 0
    %vm430 = vcmask 1043456
    %v432 = vsel %vm430, %v425, 0
    %434 = vmatprep.subr.bf16.mxu0 0
    %435 = vmatpush1.bf16.msra.mxu0 %v432
    %436 = vmatprep.subr.bf16.mxu0 0
    %437 = vmatpush1.bf16.msra.mxu0 0
    %438 = vmatprep.subr.bf16.mxu0 0
    %439 = vmatpush1.bf16.msra.mxu0 0
    %440 = vmatprep.subr.bf16.mxu0 0
    %441 = vmatpush1.bf16.msra.mxu0 0
    %442 = vmatprep.subr.bf16.mxu0 0
    %443 = vmatpush1.bf16.msra.mxu0 0
    %444 = vmatprep.subr.bf16.mxu0 0
    %445 = vmatpush1.bf16.msra.mxu0 0
    %446 = vmatprep.subr.bf16.mxu0 0
    %447 = vmatpush1.bf16.msra.mxu0 0
    %448 = vmatprep.subr.bf16.mxu0 0
    %449 = vmatpush1.bf16.msra.mxu0 0
    %450 = vmatprep.subr.bf16.mxu0 0
    %451 = vmatpush1.bf16.msra.mxu0 0
    %452 = vmatprep.subr.bf16.mxu0 0
    %453 = vmatpush1.bf16.msra.mxu0 0
    %454 = vmatprep.subr.bf16.mxu0 0
    %455 = vmatpush1.bf16.msra.mxu0 0
    %456 = vmatprep.subr.bf16.mxu0 0
    %457 = vmatpush1.bf16.msra.mxu0 0
    %458 = vmatprep.subr.bf16.mxu0 0
    %459 = vmatpush1.bf16.msra.mxu0 0
    %460 = vmatprep.subr.bf16.mxu0 0
    %461 = vmatpush1.bf16.msra.mxu0 0
    %462 = vmatprep.subr.bf16.mxu0 0
    %463 = vmatpush1.bf16.msra.mxu0 0
    %464 = vmatprep.subr.bf16.mxu0 0
    %465 = vmatpush1.bf16.msra.mxu0 0
    %466 = vmatprep.mubr.bf16.mxu0 0
    %467 = vmatmul.mubr.bf16.gmra.mrb[0].mxu0 %v428
    %v468 = vpop.f32.mrb[0].mxu0
    %v469 = vadd.f32 0.0, %v468
    %v470 = vpop.f32.mrb[0].mxu0
    %v471 = vpop.f32.mrb[0].mxu0
    %v472 = vpop.f32.mrb[0].mxu0
    %473 = vdwg.mxu0
    %v475 = vsel %vm292, %v424, 0
    %v478 = vsel %vm430, %v426, 0
    %480 = vmatprep.subr.bf16.mxu0 0
    %481 = vmatpush1.bf16.msra.mxu0 %v478
    %482 = vmatprep.subr.bf16.mxu0 0
    %483 = vmatpush1.bf16.msra.mxu0 0
    %484 = vmatprep.subr.bf16.mxu0 0
    %485 = vmatpush1.bf16.msra.mxu0 0
    %486 = vmatprep.subr.bf16.mxu0 0
    %487 = vmatpush1.bf16.msra.mxu0 0
    %488 = vmatprep.subr.bf16.mxu0 0
    %489 = vmatpush1.bf16.msra.mxu0 0
    %490 = vmatprep.subr.bf16.mxu0 0
    %491 = vmatpush1.bf16.msra.mxu0 0
    %492 = vmatprep.subr.bf16.mxu0 0
    %493 = vmatpush1.bf16.msra.mxu0 0
    %494 = vmatprep.subr.bf16.mxu0 0
    %495 = vmatpush1.bf16.msra.mxu0 0
    %496 = vmatprep.subr.bf16.mxu0 0
    %497 = vmatpush1.bf16.msra.mxu0 0
    %498 = vmatprep.subr.bf16.mxu0 0
    %499 = vmatpush1.bf16.msra.mxu0 0
    %500 = vmatprep.subr.bf16.mxu0 0
    %501 = vmatpush1.bf16.msra.mxu0 0
    %502 = vmatprep.subr.bf16.mxu0 0
    %503 = vmatpush1.bf16.msra.mxu0 0
    %504 = vmatprep.subr.bf16.mxu0 0
    %505 = vmatpush1.bf16.msra.mxu0 0
    %506 = vmatprep.subr.bf16.mxu0 0
    %507 = vmatpush1.bf16.msra.mxu0 0
    %508 = vmatprep.subr.bf16.mxu0 0
    %509 = vmatpush1.bf16.msra.mxu0 0
    %510 = vmatprep.subr.bf16.mxu0 0
    %511 = vmatpush1.bf16.msra.mxu0 0
    %512 = vmatprep.mubr.bf16.mxu0 0
    %513 = vmatmul.mubr.bf16.gmra.mrb[0].mxu0 %v475
    %v514 = vpop.f32.mrb[0].mxu0
    %v515 = vadd.f32 0.0, %v514
    %v516 = vpop.f32.mrb[0].mxu0
    %v517 = vpop.f32.mrb[0].mxu0
    %v518 = vpop.f32.mrb[0].mxu0
    %519 = vdwg.mxu0
    %s520 = scalar_lea.vmem %s6, 4
    %v521 = vld [vmem:[%s520] sm:$0x7]
    %s522 = scalar_lea.vmem %s3, 16
    %v523 = vld [vmem:[%s522] sm:$0xf]
    %v524 = vld [vmem:[%s522 + $0x4] sm:$0xf]
    %v525 = vld [vmem:[%s522 + $0x8] sm:$0xf]
    %v526 = vld [vmem:[%s522 + $0xc] sm:$0xf]
    %v527 = vlaneseq
    %v528 = vshrl.u32 %v527, 7
    %v529 = vsub.s32 0, %v528
    %v530 = vrot.slane %v521, %v529
    %v535 = vunpack.c.l.b16 %v523
    %v536 = vunpack.c.l.b16 %v524
    %v537 = vunpack.c.l.b16 %v525
    %v538 = vunpack.c.l.b16 %v526
    %v539 = vpack.c.b16 %v536, %v535
    %v540 = vpack.c.b16 %v538, %v537
    %543 = vmatprep.subr.bf16.mxu0 0
    %544 = vmatpush1.bf16.msra.mxu0 %v539
    %545 = vmatprep.subr.bf16.mxu0 0
    %546 = vmatpush1.bf16.msra.mxu0 %v540
    %547 = vmatprep.subr.bf16.mxu0 0
    %548 = vmatpush1.bf16.msra.mxu0 0
    %549 = vmatprep.subr.bf16.mxu0 0
    %550 = vmatpush1.bf16.msra.mxu0 0
    %551 = vmatprep.subr.bf16.mxu0 0
    %552 = vmatpush1.bf16.msra.mxu0 0
    %553 = vmatprep.subr.bf16.mxu0 0
    %554 = vmatpush1.bf16.msra.mxu0 0
    %555 = vmatprep.subr.bf16.mxu0 0
    %556 = vmatpush1.bf16.msra.mxu0 0
    %557 = vmatprep.subr.bf16.mxu0 0
    %558 = vmatpush1.bf16.msra.mxu0 0
    %559 = vmatprep.subr.bf16.mxu0 0
    %560 = vmatpush1.bf16.msra.mxu0 0
    %561 = vmatprep.subr.bf16.mxu0 0
    %562 = vmatpush1.bf16.msra.mxu0 0
    %563 = vmatprep.subr.bf16.mxu0 0
    %564 = vmatpush1.bf16.msra.mxu0 0
    %565 = vmatprep.subr.bf16.mxu0 0
    %566 = vmatpush1.bf16.msra.mxu0 0
    %567 = vmatprep.subr.bf16.mxu0 0
    %568 = vmatpush1.bf16.msra.mxu0 0
    %569 = vmatprep.subr.bf16.mxu0 0
    %570 = vmatpush1.bf16.msra.mxu0 0
    %571 = vmatprep.subr.bf16.mxu0 0
    %572 = vmatpush1.bf16.msra.mxu0 0
    %573 = vmatprep.subr.bf16.mxu0 0
    %574 = vmatpush1.bf16.msra.mxu0 0
    %575 = vmatprep.mubr.bf16.mxu0 0
    %576 = vmatmul.mubr.bf16.gmra.mrb[0].mxu0 %v123
    %v577 = vpop.f32.mrb[0].mxu0
    %v578 = vadd.f32 %v530, %v577
    %v579 = vpop.f32.mrb[0].mxu0
    %v580 = vpop.f32.mrb[0].mxu0
    %v581 = vadd.f32 %v530, %v580
    %v582 = vpop.f32.mrb[0].mxu0
    %583 = vdwg.mxu0
    %s584 = scalar_lea.vmem %s4, 16
    %v585 = vld [vmem:[%s584] sm:$0xf]
    %v586 = vld [vmem:[%s584 + $0x4] sm:$0xf]
    %v587 = vld [vmem:[%s584 + $0x8] sm:$0xf]
    %v588 = vld [vmem:[%s584 + $0xc] sm:$0xf]
    %v589 = vlaneseq
    %v590 = vshrl.u32 %v589, 7
    %v591 = vsub.s32 1, %v590
    %v592 = vrot.slane %v521, %v591
    %v597 = vunpack.c.l.b16 %v585
    %v598 = vunpack.c.l.b16 %v586
    %v599 = vunpack.c.l.b16 %v587
    %v600 = vunpack.c.l.b16 %v588
    %v601 = vpack.c.b16 %v598, %v597
    %v602 = vpack.c.b16 %v600, %v599
    %605 = vmatprep.subr.bf16.mxu0 0
    %606 = vmatpush1.bf16.msra.mxu0 %v601
    %607 = vmatprep.subr.bf16.mxu0 0
    %608 = vmatpush1.bf16.msra.mxu0 %v602
    %609 = vmatprep.subr.bf16.mxu0 0
    %610 = vmatpush1.bf16.msra.mxu0 0
    %611 = vmatprep.subr.bf16.mxu0 0
    %612 = vmatpush1.bf16.msra.mxu0 0
    %613 = vmatprep.subr.bf16.mxu0 0
    %614 = vmatpush1.bf16.msra.mxu0 0
    %615 = vmatprep.subr.bf16.mxu0 0
    %616 = vmatpush1.bf16.msra.mxu0 0
    %617 = vmatprep.subr.bf16.mxu0 0
    %618 = vmatpush1.bf16.msra.mxu0 0
    %619 = vmatprep.subr.bf16.mxu0 0
    %620 = vmatpush1.bf16.msra.mxu0 0
    %621 = vmatprep.subr.bf16.mxu0 0
    %622 = vmatpush1.bf16.msra.mxu0 0
    %623 = vmatprep.subr.bf16.mxu0 0
    %624 = vmatpush1.bf16.msra.mxu0 0
    %625 = vmatprep.subr.bf16.mxu0 0
    %626 = vmatpush1.bf16.msra.mxu0 0
    %627 = vmatprep.subr.bf16.mxu0 0
    %628 = vmatpush1.bf16.msra.mxu0 0
    %629 = vmatprep.subr.bf16.mxu0 0
    %630 = vmatpush1.bf16.msra.mxu0 0
    %631 = vmatprep.subr.bf16.mxu0 0
    %632 = vmatpush1.bf16.msra.mxu0 0
    %633 = vmatprep.subr.bf16.mxu0 0
    %634 = vmatpush1.bf16.msra.mxu0 0
    %635 = vmatprep.subr.bf16.mxu0 0
    %636 = vmatpush1.bf16.msra.mxu0 0
    %637 = vmatprep.mubr.bf16.mxu0 0
    %638 = vmatmul.mubr.bf16.gmra.mrb[0].mxu0 %v123
    %v639 = vpop.f32.mrb[0].mxu0
    %v640 = vadd.f32 %v592, %v639
    %v641 = vpop.f32.mrb[0].mxu0
    %v642 = vpop.f32.mrb[0].mxu0
    %v643 = vadd.f32 %v592, %v642
    %v644 = vpop.f32.mrb[0].mxu0
    %645 = vdwg.mxu0
    %s646 = scalar_lea.vmem %s5, 16
    %v647 = vld [vmem:[%s646] sm:$0xf]
    %v648 = vld [vmem:[%s646 + $0x4] sm:$0xf]
    %v649 = vld [vmem:[%s646 + $0x8] sm:$0xf]
    %v650 = vld [vmem:[%s646 + $0xc] sm:$0xf]
    %v651 = vlaneseq
    %v652 = vshrl.u32 %v651, 7
    %v653 = vsub.s32 2, %v652
    %v654 = vrot.slane %v521, %v653
    %v659 = vunpack.c.l.b16 %v647
    %v660 = vunpack.c.l.b16 %v648
    %v661 = vunpack.c.l.b16 %v649
    %v662 = vunpack.c.l.b16 %v650
    %v663 = vpack.c.b16 %v660, %v659
    %v664 = vpack.c.b16 %v662, %v661
    %667 = vmatprep.subr.bf16.mxu0 0
    %668 = vmatpush1.bf16.msra.mxu0 %v663
    %669 = vmatprep.subr.bf16.mxu0 0
    %670 = vmatpush1.bf16.msra.mxu0 %v664
    %671 = vmatprep.subr.bf16.mxu0 0
    %672 = vmatpush1.bf16.msra.mxu0 0
    %673 = vmatprep.subr.bf16.mxu0 0
    %674 = vmatpush1.bf16.msra.mxu0 0
    %675 = vmatprep.subr.bf16.mxu0 0
    %676 = vmatpush1.bf16.msra.mxu0 0
    %677 = vmatprep.subr.bf16.mxu0 0
    %678 = vmatpush1.bf16.msra.mxu0 0
    %679 = vmatprep.subr.bf16.mxu0 0
    %680 = vmatpush1.bf16.msra.mxu0 0
    %681 = vmatprep.subr.bf16.mxu0 0
    %682 = vmatpush1.bf16.msra.mxu0 0
    %683 = vmatprep.subr.bf16.mxu0 0
    %684 = vmatpush1.bf16.msra.mxu0 0
    %685 = vmatprep.subr.bf16.mxu0 0
    %686 = vmatpush1.bf16.msra.mxu0 0
    %687 = vmatprep.subr.bf16.mxu0 0
    %688 = vmatpush1.bf16.msra.mxu0 0
    %689 = vmatprep.subr.bf16.mxu0 0
    %690 = vmatpush1.bf16.msra.mxu0 0
    %691 = vmatprep.subr.bf16.mxu0 0
    %692 = vmatpush1.bf16.msra.mxu0 0
    %693 = vmatprep.subr.bf16.mxu0 0
    %694 = vmatpush1.bf16.msra.mxu0 0
    %695 = vmatprep.subr.bf16.mxu0 0
    %696 = vmatpush1.bf16.msra.mxu0 0
    %697 = vmatprep.subr.bf16.mxu0 0
    %698 = vmatpush1.bf16.msra.mxu0 0
    %699 = vmatprep.mubr.bf16.mxu0 0
    %700 = vmatmul.mubr.bf16.gmra.mrb[0].mxu0 %v123
    %v701 = vpop.f32.mrb[0].mxu0
    %v702 = vadd.f32 %v654, %v701
    %v703 = vpop.f32.mrb[0].mxu0
    %v704 = vpop.f32.mrb[0].mxu0
    %v705 = vadd.f32 %v654, %v704
    %v706 = vpop.f32.mrb[0].mxu0
    %707 = vdwg.mxu0
    %v708 = vpack.c.bf16 %v578, %v578
    %v709 = vpack.c.bf16 %v581, %v581
    %v710 = vpack.c.bf16 %v640, %v640
    %v711 = vpack.c.bf16 %v643, %v643
    %v713 = vsel %vm292, %v708, 0
    %v716 = vsel %vm292, %v710, 0
    %718 = vmatprep.subr.bf16.mxu0 0
    %719 = vmatpush1.bf16.xpose.msra.mxu0 %v716
    %720 = vmatprep.subr.bf16.mxu0 0
    %721 = vmatpush1.bf16.xpose.msra.mxu0 0
    %722 = vmatprep.subr.bf16.mxu0 0
    %723 = vmatpush1.bf16.xpose.msra.mxu0 0
    %724 = vmatprep.subr.bf16.mxu0 0
    %725 = vmatpush1.bf16.xpose.msra.mxu0 0
    %726 = vmatprep.subr.bf16.mxu0 0
    %727 = vmatpush1.bf16.xpose.msra.mxu0 0
    %728 = vmatprep.subr.bf16.mxu0 0
    %729 = vmatpush1.bf16.xpose.msra.mxu0 0
    %730 = vmatprep.subr.bf16.mxu0 0
    %731 = vmatpush1.bf16.xpose.msra.mxu0 0
    %732 = vmatprep.subr.bf16.mxu0 0
    %733 = vmatpush1.bf16.xpose.msra.mxu0 0
    %734 = vmatprep.subr.bf16.mxu0 0
    %735 = vmatpush1.bf16.xpose.msra.mxu0 0
    %736 = vmatprep.subr.bf16.mxu0 0
    %737 = vmatpush1.bf16.xpose.msra.mxu0 0
    %738 = vmatprep.subr.bf16.mxu0 0
    %739 = vmatpush1.bf16.xpose.msra.mxu0 0
    %740 = vmatprep.subr.bf16.mxu0 0
    %741 = vmatpush1.bf16.xpose.msra.mxu0 0
    %742 = vmatprep.subr.bf16.mxu0 0
    %743 = vmatpush1.bf16.xpose.msra.mxu0 0
    %744 = vmatprep.subr.bf16.mxu0 0
    %745 = vmatpush1.bf16.xpose.msra.mxu0 0
    %746 = vmatprep.subr.bf16.mxu0 0
    %747 = vmatpush1.bf16.xpose.msra.mxu0 0
    %748 = vmatprep.subr.bf16.mxu0 0
    %749 = vmatpush1.bf16.xpose.msra.mxu0 0
    %750 = vmatprep.mubr.bf16.mxu0 0
    %751 = vmatmul.mubr.bf16.gmra.mrb[0].mxu0 %v713
    %v752 = vpop.f32.mrb[0].mxu0
    %v753 = vadd.f32 0.0, %v752
    %v754 = vpop.f32.mrb[0].mxu0
    %v755 = vpop.f32.mrb[0].mxu0
    %v756 = vpop.f32.mrb[0].mxu0
    %757 = vdwg.mxu0
    %v759 = vsel %vm292, %v709, 0
    %v762 = vsel %vm292, %v711, 0
    %764 = vmatprep.subr.bf16.mxu0 0
    %765 = vmatpush1.bf16.xpose.msra.mxu0 %v762
    %766 = vmatprep.subr.bf16.mxu0 0
    %767 = vmatpush1.bf16.xpose.msra.mxu0 0
    %768 = vmatprep.subr.bf16.mxu0 0
    %769 = vmatpush1.bf16.xpose.msra.mxu0 0
    %770 = vmatprep.subr.bf16.mxu0 0
    %771 = vmatpush1.bf16.xpose.msra.mxu0 0
    %772 = vmatprep.subr.bf16.mxu0 0
    %773 = vmatpush1.bf16.xpose.msra.mxu0 0
    %774 = vmatprep.subr.bf16.mxu0 0
    %775 = vmatpush1.bf16.xpose.msra.mxu0 0
    %776 = vmatprep.subr.bf16.mxu0 0
    %777 = vmatpush1.bf16.xpose.msra.mxu0 0
    %778 = vmatprep.subr.bf16.mxu0 0
    %779 = vmatpush1.bf16.xpose.msra.mxu0 0
    %780 = vmatprep.subr.bf16.mxu0 0
    %781 = vmatpush1.bf16.xpose.msra.mxu0 0
    %782 = vmatprep.subr.bf16.mxu0 0
    %783 = vmatpush1.bf16.xpose.msra.mxu0 0
    %784 = vmatprep.subr.bf16.mxu0 0
    %785 = vmatpush1.bf16.xpose.msra.mxu0 0
    %786 = vmatprep.subr.bf16.mxu0 0
    %787 = vmatpush1.bf16.xpose.msra.mxu0 0
    %788 = vmatprep.subr.bf16.mxu0 0
    %789 = vmatpush1.bf16.xpose.msra.mxu0 0
    %790 = vmatprep.subr.bf16.mxu0 0
    %791 = vmatpush1.bf16.xpose.msra.mxu0 0
    %792 = vmatprep.subr.bf16.mxu0 0
    %793 = vmatpush1.bf16.xpose.msra.mxu0 0
    %794 = vmatprep.subr.bf16.mxu0 0
    %795 = vmatpush1.bf16.xpose.msra.mxu0 0
    %796 = vmatprep.mubr.bf16.mxu0 0
    %797 = vmatmul.mubr.bf16.gmra.mrb[0].mxu0 %v759
    %v798 = vpop.f32.mrb[0].mxu0
    %v799 = vadd.f32 0.0, %v798
    %v800 = vpop.f32.mrb[0].mxu0
    %v801 = vpop.f32.mrb[0].mxu0
    %v802 = vpop.f32.mrb[0].mxu0
    %803 = vdwg.mxu0
    %v804 = vmul.f32 %v753, 0.35355338
    %v805 = vmul.f32 %v799, 0.35355338
    %v806 = vadd.f32 %v804, %v392
    %v807 = vadd.f32 %v805, %v396
    %v808 = vsel %vm292, %v806, -inf
    %809 = vmax.xlane.f32.xlu0 %v808
    %v810 = vpop.xlane.xlu0 %809
    %v811 = vsel %vm292, %v807, -inf
    %812 = vmax.xlane.f32.xlu0 %v811
    %v813 = vpop.xlane.xlu0 %812
    %v814 = vsub.f32 %v806, %v810
    %v815 = vsub.f32 %v807, %v813
    %v816 = vmul.f32 %v814, 1.442695
    %v817 = vpow.pop %v816
    %v818 = vmul.f32 %v815, 1.442695
    %v819 = vpow.pop %v818
    %v820 = vsel %vm292, %v817, 0.0
    %821 = vadd.xlane.f32.xlu0 %v820
    %v822 = vpop.xlane.xlu0 %821
    %v823 = vsel %vm292, %v819, 0.0
    %824 = vadd.xlane.f32.xlu0 %v823
    %v825 = vpop.xlane.xlu0 %824
    %v826 = vrcp.pop %v822
    %v827 = vrcp.pop %v825
    %v828 = vmul.f32 %v817, %v826
    %v829 = vmul.f32 %v819, %v827
    %v830 = vpack.c.bf16 %v828, %v828
    %v831 = vpack.c.bf16 %v829, %v829
    %v832 = vpack.c.bf16 %v702, %v702
    %v833 = vpack.c.bf16 %v705, %v705
    %v835 = vsel %vm292, %v830, 0
    %v838 = vsel %vm430, %v832, 0
    %840 = vmatprep.subr.bf16.mxu0 0
    %841 = vmatpush1.bf16.msra.mxu0 %v838
    %842 = vmatprep.subr.bf16.mxu0 0
    %843 = vmatpush1.bf16.msra.mxu0 0
    %844 = vmatprep.subr.bf16.mxu0 0
    %845 = vmatpush1.bf16.msra.mxu0 0
    %846 = vmatprep.subr.bf16.mxu0 0
    %847 = vmatpush1.bf16.msra.mxu0 0
    %848 = vmatprep.subr.bf16.mxu0 0
    %849 = vmatpush1.bf16.msra.mxu0 0
    %850 = vmatprep.subr.bf16.mxu0 0
    %851 = vmatpush1.bf16.msra.mxu0 0
    %852 = vmatprep.subr.bf16.mxu0 0
    %853 = vmatpush1.bf16.msra.mxu0 0
    %854 = vmatprep.subr.bf16.mxu0 0
    %855 = vmatpush1.bf16.msra.mxu0 0
    %856 = vmatprep.subr.bf16.mxu0 0
    %857 = vmatpush1.bf16.msra.mxu0 0
    %858 = vmatprep.subr.bf16.mxu0 0
    %859 = vmatpush1.bf16.msra.mxu0 0
    %860 = vmatprep.subr.bf16.mxu0 0
    %861 = vmatpush1.bf16.msra.mxu0 0
    %862 = vmatprep.subr.bf16.mxu0 0
    %863 = vmatpush1.bf16.msra.mxu0 0
    %864 = vmatprep.subr.bf16.mxu0 0
    %865 = vmatpush1.bf16.msra.mxu0 0
    %866 = vmatprep.subr.bf16.mxu0 0
    %867 = vmatpush1.bf16.msra.mxu0 0
    %868 = vmatprep.subr.bf16.mxu0 0
    %869 = vmatpush1.bf16.msra.mxu0 0
    %870 = vmatprep.subr.bf16.mxu0 0
    %871 = vmatpush1.bf16.msra.mxu0 0
    %872 = vmatprep.mubr.bf16.mxu0 0
    %873 = vmatmul.mubr.bf16.gmra.mrb[0].mxu0 %v835
    %v874 = vpop.f32.mrb[0].mxu0
    %v875 = vadd.f32 0.0, %v874
    %v876 = vpop.f32.mrb[0].mxu0
    %v877 = vpop.f32.mrb[0].mxu0
    %v878 = vpop.f32.mrb[0].mxu0
    %879 = vdwg.mxu0
    %v881 = vsel %vm292, %v831, 0
    %v884 = vsel %vm430, %v833, 0
    %886 = vmatprep.subr.bf16.mxu0 0
    %887 = vmatpush1.bf16.msra.mxu0 %v884
    %888 = vmatprep.subr.bf16.mxu0 0
    %889 = vmatpush1.bf16.msra.mxu0 0
    %890 = vmatprep.subr.bf16.mxu0 0
    %891 = vmatpush1.bf16.msra.mxu0 0
    %892 = vmatprep.subr.bf16.mxu0 0
    %893 = vmatpush1.bf16.msra.mxu0 0
    %894 = vmatprep.subr.bf16.mxu0 0
    %895 = vmatpush1.bf16.msra.mxu0 0
    %896 = vmatprep.subr.bf16.mxu0 0
    %897 = vmatpush1.bf16.msra.mxu0 0
    %898 = vmatprep.subr.bf16.mxu0 0
    %899 = vmatpush1.bf16.msra.mxu0 0
    %900 = vmatprep.subr.bf16.mxu0 0
    %901 = vmatpush1.bf16.msra.mxu0 0
    %902 = vmatprep.subr.bf16.mxu0 0
    %903 = vmatpush1.bf16.msra.mxu0 0
    %904 = vmatprep.subr.bf16.mxu0 0
    %905 = vmatpush1.bf16.msra.mxu0 0
    %906 = vmatprep.subr.bf16.mxu0 0
    %907 = vmatpush1.bf16.msra.mxu0 0
    %908 = vmatprep.subr.bf16.mxu0 0
    %909 = vmatpush1.bf16.msra.mxu0 0
    %910 = vmatprep.subr.bf16.mxu0 0
    %911 = vmatpush1.bf16.msra.mxu0 0
    %912 = vmatprep.subr.bf16.mxu0 0
    %913 = vmatpush1.bf16.msra.mxu0 0
    %914 = vmatprep.subr.bf16.mxu0 0
    %915 = vmatpush1.bf16.msra.mxu0 0
    %916 = vmatprep.subr.bf16.mxu0 0
    %917 = vmatpush1.bf16.msra.mxu0 0
    %918 = vmatprep.mubr.bf16.mxu0 0
    %919 = vmatmul.mubr.bf16.gmra.mrb[0].mxu0 %v881
    %v920 = vpop.f32.mrb[0].mxu0
    %v921 = vadd.f32 0.0, %v920
    %v922 = vpop.f32.mrb[0].mxu0
    %v923 = vpop.f32.mrb[0].mxu0
    %v924 = vpop.f32.mrb[0].mxu0
    %925 = vdwg.mxu0
    %s926 = scalar_lea.vmem %s6, 8
    %v927 = vld [vmem:[%s926] sm:$0x7]
    %s928 = scalar_lea.vmem %s3, 32
    %v929 = vld [vmem:[%s928] sm:$0xf]
    %v930 = vld [vmem:[%s928 + $0x4] sm:$0xf]
    %v931 = vld [vmem:[%s928 + $0x8] sm:$0xf]
    %v932 = vld [vmem:[%s928 + $0xc] sm:$0xf]
    %v933 = vlaneseq
    %v934 = vshrl.u32 %v933, 7
    %v935 = vsub.s32 0, %v934
    %v936 = vrot.slane %v927, %v935
    %v941 = vunpack.c.l.b16 %v929
    %v942 = vunpack.c.l.b16 %v930
    %v943 = vunpack.c.l.b16 %v931
    %v944 = vunpack.c.l.b16 %v932
    %v945 = vpack.c.b16 %v942, %v941
    %v946 = vpack.c.b16 %v944, %v943
    %949 = vmatprep.subr.bf16.mxu0 0
    %950 = vmatpush1.bf16.msra.mxu0 %v945
    %951 = vmatprep.subr.bf16.mxu0 0
    %952 = vmatpush1.bf16.msra.mxu0 %v946
    %953 = vmatprep.subr.bf16.mxu0 0
    %954 = vmatpush1.bf16.msra.mxu0 0
    %955 = vmatprep.subr.bf16.mxu0 0
    %956 = vmatpush1.bf16.msra.mxu0 0
    %957 = vmatprep.subr.bf16.mxu0 0
    %958 = vmatpush1.bf16.msra.mxu0 0
    %959 = vmatprep.subr.bf16.mxu0 0
    %960 = vmatpush1.bf16.msra.mxu0 0
    %961 = vmatprep.subr.bf16.mxu0 0
    %962 = vmatpush1.bf16.msra.mxu0 0
    %963 = vmatprep.subr.bf16.mxu0 0
    %964 = vmatpush1.bf16.msra.mxu0 0
    %965 = vmatprep.subr.bf16.mxu0 0
    %966 = vmatpush1.bf16.msra.mxu0 0
    %967 = vmatprep.subr.bf16.mxu0 0
    %968 = vmatpush1.bf16.msra.mxu0 0
    %969 = vmatprep.subr.bf16.mxu0 0
    %970 = vmatpush1.bf16.msra.mxu0 0
    %971 = vmatprep.subr.bf16.mxu0 0
    %972 = vmatpush1.bf16.msra.mxu0 0
    %973 = vmatprep.subr.bf16.mxu0 0
    %974 = vmatpush1.bf16.msra.mxu0 0
    %975 = vmatprep.subr.bf16.mxu0 0
    %976 = vmatpush1.bf16.msra.mxu0 0
    %977 = vmatprep.subr.bf16.mxu0 0
    %978 = vmatpush1.bf16.msra.mxu0 0
    %979 = vmatprep.subr.bf16.mxu0 0
    %980 = vmatpush1.bf16.msra.mxu0 0
    %981 = vmatprep.mubr.bf16.mxu0 0
    %982 = vmatmul.mubr.bf16.gmra.mrb[0].mxu0 %v123
    %v983 = vpop.f32.mrb[0].mxu0
    %v984 = vadd.f32 %v936, %v983
    %v985 = vpop.f32.mrb[0].mxu0
    %v986 = vpop.f32.mrb[0].mxu0
    %v987 = vadd.f32 %v936, %v986
    %v988 = vpop.f32.mrb[0].mxu0
    %989 = vdwg.mxu0
    %s990 = scalar_lea.vmem %s4, 32
    %v991 = vld [vmem:[%s990] sm:$0xf]
    %v992 = vld [vmem:[%s990 + $0x4] sm:$0xf]
    %v993 = vld [vmem:[%s990 + $0x8] sm:$0xf]
    %v994 = vld [vmem:[%s990 + $0xc] sm:$0xf]
    %v995 = vlaneseq
    %v996 = vshrl.u32 %v995, 7
    %v997 = vsub.s32 1, %v996
    %v998 = vrot.slane %v927, %v997
    %v1003 = vunpack.c.l.b16 %v991
    %v1004 = vunpack.c.l.b16 %v992
    %v1005 = vunpack.c.l.b16 %v993
    %v1006 = vunpack.c.l.b16 %v994
    %v1007 = vpack.c.b16 %v1004, %v1003
    %v1008 = vpack.c.b16 %v1006, %v1005
    %1011 = vmatprep.subr.bf16.mxu0 0
    %1012 = vmatpush1.bf16.msra.mxu0 %v1007
    %1013 = vmatprep.subr.bf16.mxu0 0
    %1014 = vmatpush1.bf16.msra.mxu0 %v1008
    %1015 = vmatprep.subr.bf16.mxu0 0
    %1016 = vmatpush1.bf16.msra.mxu0 0
    %1017 = vmatprep.subr.bf16.mxu0 0
    %1018 = vmatpush1.bf16.msra.mxu0 0
    %1019 = vmatprep.subr.bf16.mxu0 0
    %1020 = vmatpush1.bf16.msra.mxu0 0
    %1021 = vmatprep.subr.bf16.mxu0 0
    %1022 = vmatpush1.bf16.msra.mxu0 0
    %1023 = vmatprep.subr.bf16.mxu0 0
    %1024 = vmatpush1.bf16.msra.mxu0 0
    %1025 = vmatprep.subr.bf16.mxu0 0
    %1026 = vmatpush1.bf16.msra.mxu0 0
    %1027 = vmatprep.subr.bf16.mxu0 0
    %1028 = vmatpush1.bf16.msra.mxu0 0
    %1029 = vmatprep.subr.bf16.mxu0 0
    %1030 = vmatpush1.bf16.msra.mxu0 0
    %1031 = vmatprep.subr.bf16.mxu0 0
    %1032 = vmatpush1.bf16.msra.mxu0 0
    %1033 = vmatprep.subr.bf16.mxu0 0
    %1034 = vmatpush1.bf16.msra.mxu0 0
    %1035 = vmatprep.subr.bf16.mxu0 0
    %1036 = vmatpush1.bf16.msra.mxu0 0
    %1037 = vmatprep.subr.bf16.mxu0 0
    %1038 = vmatpush1.bf16.msra.mxu0 0
    %1039 = vmatprep.subr.bf16.mxu0 0
    %1040 = vmatpush1.bf16.msra.mxu0 0
    %1041 = vmatprep.subr.bf16.mxu0 0
    %1042 = vmatpush1.bf16.msra.mxu0 0
    %1043 = vmatprep.mubr.bf16.mxu0 0
    %1044 = vmatmul.mubr.bf16.gmra.mrb[0].mxu0 %v123
    %v1045 = vpop.f32.mrb[0].mxu0
    %v1046 = vadd.f32 %v998, %v1045
    %v1047 = vpop.f32.mrb[0].mxu0
    %v1048 = vpop.f32.mrb[0].mxu0
    %v1049 = vadd.f32 %v998, %v1048
    %v1050 = vpop.f32.mrb[0].mxu0
    %1051 = vdwg.mxu0
    %s1052 = scalar_lea.vmem %s5, 32
    %v1053 = vld [vmem:[%s1052] sm:$0xf]
    %v1054 = vld [vmem:[%s1052 + $0x4] sm:$0xf]
    %v1055 = vld [vmem:[%s1052 + $0x8] sm:$0xf]
    %v1056 = vld [vmem:[%s1052 + $0xc] sm:$0xf]
    %v1057 = vlaneseq
    %v1058 = vshrl.u32 %v1057, 7
    %v1059 = vsub.s32 2, %v1058
    %v1060 = vrot.slane %v927, %v1059
    %v1065 = vunpack.c.l.b16 %v1053
    %v1066 = vunpack.c.l.b16 %v1054
    %v1067 = vunpack.c.l.b16 %v1055
    %v1068 = vunpack.c.l.b16 %v1056
    %v1069 = vpack.c.b16 %v1066, %v1065
    %v1070 = vpack.c.b16 %v1068, %v1067
    %1073 = vmatprep.subr.bf16.mxu0 0
    %1074 = vmatpush1.bf16.msra.mxu0 %v1069
    %1075 = vmatprep.subr.bf16.mxu0 0
    %1076 = vmatpush1.bf16.msra.mxu0 %v1070
    %1077 = vmatprep.subr.bf16.mxu0 0
    %1078 = vmatpush1.bf16.msra.mxu0 0
    %1079 = vmatprep.subr.bf16.mxu0 0
    %1080 = vmatpush1.bf16.msra.mxu0 0
    %1081 = vmatprep.subr.bf16.mxu0 0
    %1082 = vmatpush1.bf16.msra.mxu0 0
    %1083 = vmatprep.subr.bf16.mxu0 0
    %1084 = vmatpush1.bf16.msra.mxu0 0
    %1085 = vmatprep.subr.bf16.mxu0 0
    %1086 = vmatpush1.bf16.msra.mxu0 0
    %1087 = vmatprep.subr.bf16.mxu0 0
    %1088 = vmatpush1.bf16.msra.mxu0 0
    %1089 = vmatprep.subr.bf16.mxu0 0
    %1090 = vmatpush1.bf16.msra.mxu0 0
    %1091 = vmatprep.subr.bf16.mxu0 0
    %1092 = vmatpush1.bf16.msra.mxu0 0
    %1093 = vmatprep.subr.bf16.mxu0 0
    %1094 = vmatpush1.bf16.msra.mxu0 0
    %1095 = vmatprep.subr.bf16.mxu0 0
    %1096 = vmatpush1.bf16.msra.mxu0 0
    %1097 = vmatprep.subr.bf16.mxu0 0
    %1098 = vmatpush1.bf16.msra.mxu0 0
    %1099 = vmatprep.subr.bf16.mxu0 0
    %1100 = vmatpush1.bf16.msra.mxu0 0
    %1101 = vmatprep.subr.bf16.mxu0 0
    %1102 = vmatpush1.bf16.msra.mxu0 0
    %1103 = vmatprep.subr.bf16.mxu0 0
    %1104 = vmatpush1.bf16.msra.mxu0 0
    %1105 = vmatprep.mubr.bf16.mxu0 0
    %1106 = vmatmul.mubr.bf16.gmra.mrb[0].mxu0 %v123
    %v1107 = vpop.f32.mrb[0].mxu0
    %v1108 = vadd.f32 %v1060, %v1107
    %v1109 = vpop.f32.mrb[0].mxu0
    %v1110 = vpop.f32.mrb[0].mxu0
    %v1111 = vadd.f32 %v1060, %v1110
    %v1112 = vpop.f32.mrb[0].mxu0
    %1113 = vdwg.mxu0
    %v1114 = vpack.c.bf16 %v984, %v984
    %v1115 = vpack.c.bf16 %v987, %v987
    %v1116 = vpack.c.bf16 %v1046, %v1046
    %v1117 = vpack.c.bf16 %v1049, %v1049
    %v1119 = vsel %vm292, %v1114, 0
    %v1122 = vsel %vm292, %v1116, 0
    %1124 = vmatprep.subr.bf16.mxu0 0
    %1125 = vmatpush1.bf16.xpose.msra.mxu0 %v1122
    %1126 = vmatprep.subr.bf16.mxu0 0
    %1127 = vmatpush1.bf16.xpose.msra.mxu0 0
    %1128 = vmatprep.subr.bf16.mxu0 0
    %1129 = vmatpush1.bf16.xpose.msra.mxu0 0
    %1130 = vmatprep.subr.bf16.mxu0 0
    %1131 = vmatpush1.bf16.xpose.msra.mxu0 0
    %1132 = vmatprep.subr.bf16.mxu0 0
    %1133 = vmatpush1.bf16.xpose.msra.mxu0 0
    %1134 = vmatprep.subr.bf16.mxu0 0
    %1135 = vmatpush1.bf16.xpose.msra.mxu0 0
    %1136 = vmatprep.subr.bf16.mxu0 0
    %1137 = vmatpush1.bf16.xpose.msra.mxu0 0
    %1138 = vmatprep.subr.bf16.mxu0 0
    %1139 = vmatpush1.bf16.xpose.msra.mxu0 0
    %1140 = vmatprep.subr.bf16.mxu0 0
    %1141 = vmatpush1.bf16.xpose.msra.mxu0 0
    %1142 = vmatprep.subr.bf16.mxu0 0
    %1143 = vmatpush1.bf16.xpose.msra.mxu0 0
    %1144 = vmatprep.subr.bf16.mxu0 0
    %1145 = vmatpush1.bf16.xpose.msra.mxu0 0
    %1146 = vmatprep.subr.bf16.mxu0 0
    %1147 = vmatpush1.bf16.xpose.msra.mxu0 0
    %1148 = vmatprep.subr.bf16.mxu0 0
    %1149 = vmatpush1.bf16.xpose.msra.mxu0 0
    %1150 = vmatprep.subr.bf16.mxu0 0
    %1151 = vmatpush1.bf16.xpose.msra.mxu0 0
    %1152 = vmatprep.subr.bf16.mxu0 0
    %1153 = vmatpush1.bf16.xpose.msra.mxu0 0
    %1154 = vmatprep.subr.bf16.mxu0 0
    %1155 = vmatpush1.bf16.xpose.msra.mxu0 0
    %1156 = vmatprep.mubr.bf16.mxu0 0
    %1157 = vmatmul.mubr.bf16.gmra.mrb[0].mxu0 %v1119
    %v1158 = vpop.f32.mrb[0].mxu0
    %v1159 = vadd.f32 0.0, %v1158
    %v1160 = vpop.f32.mrb[0].mxu0
    %v1161 = vpop.f32.mrb[0].mxu0
    %v1162 = vpop.f32.mrb[0].mxu0
    %1163 = vdwg.mxu0
    %v1165 = vsel %vm292, %v1115, 0
    %v1168 = vsel %vm292, %v1117, 0
    %1170 = vmatprep.subr.bf16.mxu0 0
    %1171 = vmatpush1.bf16.xpose.msra.mxu0 %v1168
    %1172 = vmatprep.subr.bf16.mxu0 0
    %1173 = vmatpush1.bf16.xpose.msra.mxu0 0
    %1174 = vmatprep.subr.bf16.mxu0 0
    %1175 = vmatpush1.bf16.xpose.msra.mxu0 0
    %1176 = vmatprep.subr.bf16.mxu0 0
    %1177 = vmatpush1.bf16.xpose.msra.mxu0 0
    %1178 = vmatprep.subr.bf16.mxu0 0
    %1179 = vmatpush1.bf16.xpose.msra.mxu0 0
    %1180 = vmatprep.subr.bf16.mxu0 0
    %1181 = vmatpush1.bf16.xpose.msra.mxu0 0
    %1182 = vmatprep.subr.bf16.mxu0 0
    %1183 = vmatpush1.bf16.xpose.msra.mxu0 0
    %1184 = vmatprep.subr.bf16.mxu0 0
    %1185 = vmatpush1.bf16.xpose.msra.mxu0 0
    %1186 = vmatprep.subr.bf16.mxu0 0
    %1187 = vmatpush1.bf16.xpose.msra.mxu0 0
    %1188 = vmatprep.subr.bf16.mxu0 0
    %1189 = vmatpush1.bf16.xpose.msra.mxu0 0
    %1190 = vmatprep.subr.bf16.mxu0 0
    %1191 = vmatpush1.bf16.xpose.msra.mxu0 0
    %1192 = vmatprep.subr.bf16.mxu0 0
    %1193 = vmatpush1.bf16.xpose.msra.mxu0 0
    %1194 = vmatprep.subr.bf16.mxu0 0
    %1195 = vmatpush1.bf16.xpose.msra.mxu0 0
    %1196 = vmatprep.subr.bf16.mxu0 0
    %1197 = vmatpush1.bf16.xpose.msra.mxu0 0
    %1198 = vmatprep.subr.bf16.mxu0 0
    %1199 = vmatpush1.bf16.xpose.msra.mxu0 0
    %1200 = vmatprep.subr.bf16.mxu0 0
    %1201 = vmatpush1.bf16.xpose.msra.mxu0 0
    %1202 = vmatprep.mubr.bf16.mxu0 0
    %1203 = vmatmul.mubr.bf16.gmra.mrb[0].mxu0 %v1165
    %v1204 = vpop.f32.mrb[0].mxu0
    %v1205 = vadd.f32 0.0, %v1204
    %v1206 = vpop.f32.mrb[0].mxu0
    %v1207 = vpop.f32.mrb[0].mxu0
    %v1208 = vpop.f32.mrb[0].mxu0
    %1209 = vdwg.mxu0
    %v1210 = vmul.f32 %v1159, 0.35355338
    %v1211 = vmul.f32 %v1205, 0.35355338
    %v1212 = vadd.f32 %v1210, %v392
    %v1213 = vadd.f32 %v1211, %v396
    %v1214 = vsel %vm292, %v1212, -inf
    %1215 = vmax.xlane.f32.xlu0 %v1214
    %v1216 = vpop.xlane.xlu0 %1215
    %v1217 = vsel %vm292, %v1213, -inf
    %1218 = vmax.xlane.f32.xlu0 %v1217
    %v1219 = vpop.xlane.xlu0 %1218
    %v1220 = vsub.f32 %v1212, %v1216
    %v1221 = vsub.f32 %v1213, %v1219
    %v1222 = vmul.f32 %v1220, 1.442695
    %v1223 = vpow.pop %v1222
    %v1224 = vmul.f32 %v1221, 1.442695
    %v1225 = vpow.pop %v1224
    %v1226 = vsel %vm292, %v1223, 0.0
    %1227 = vadd.xlane.f32.xlu0 %v1226
    %v1228 = vpop.xlane.xlu0 %1227
    %v1229 = vsel %vm292, %v1225, 0.0
    %1230 = vadd.xlane.f32.xlu0 %v1229
    %v1231 = vpop.xlane.xlu0 %1230
    %v1232 = vrcp.pop %v1228
    %v1233 = vrcp.pop %v1231
    %v1234 = vmul.f32 %v1223, %v1232
    %v1235 = vmul.f32 %v1225, %v1233
    %v1236 = vpack.c.bf16 %v1234, %v1234
    %v1237 = vpack.c.bf16 %v1235, %v1235
    %v1238 = vpack.c.bf16 %v1108, %v1108
    %v1239 = vpack.c.bf16 %v1111, %v1111
    %v1241 = vsel %vm292, %v1236, 0
    %v1244 = vsel %vm430, %v1238, 0
    %1246 = vmatprep.subr.bf16.mxu0 0
    %1247 = vmatpush1.bf16.msra.mxu0 %v1244
    %1248 = vmatprep.subr.bf16.mxu0 0
    %1249 = vmatpush1.bf16.msra.mxu0 0
    %1250 = vmatprep.subr.bf16.mxu0 0
    %1251 = vmatpush1.bf16.msra.mxu0 0
    %1252 = vmatprep.subr.bf16.mxu0 0
    %1253 = vmatpush1.bf16.msra.mxu0 0
    %1254 = vmatprep.subr.bf16.mxu0 0
    %1255 = vmatpush1.bf16.msra.mxu0 0
    %1256 = vmatprep.subr.bf16.mxu0 0
    %1257 = vmatpush1.bf16.msra.mxu0 0
    %1258 = vmatprep.subr.bf16.mxu0 0
    %1259 = vmatpush1.bf16.msra.mxu0 0
    %1260 = vmatprep.subr.bf16.mxu0 0
    %1261 = vmatpush1.bf16.msra.mxu0 0
    %1262 = vmatprep.subr.bf16.mxu0 0
    %1263 = vmatpush1.bf16.msra.mxu0 0
    %1264 = vmatprep.subr.bf16.mxu0 0
    %1265 = vmatpush1.bf16.msra.mxu0 0
    %1266 = vmatprep.subr.bf16.mxu0 0
    %1267 = vmatpush1.bf16.msra.mxu0 0
    %1268 = vmatprep.subr.bf16.mxu0 0
    %1269 = vmatpush1.bf16.msra.mxu0 0
    %1270 = vmatprep.subr.bf16.mxu0 0
    %1271 = vmatpush1.bf16.msra.mxu0 0
    %1272 = vmatprep.subr.bf16.mxu0 0
    %1273 = vmatpush1.bf16.msra.mxu0 0
    %1274 = vmatprep.subr.bf16.mxu0 0
    %1275 = vmatpush1.bf16.msra.mxu0 0
    %1276 = vmatprep.subr.bf16.mxu0 0
    %1277 = vmatpush1.bf16.msra.mxu0 0
    %1278 = vmatprep.mubr.bf16.mxu0 0
    %1279 = vmatmul.mubr.bf16.gmra.mrb[0].mxu0 %v1241
    %v1280 = vpop.f32.mrb[0].mxu0
    %v1281 = vadd.f32 0.0, %v1280
    %v1282 = vpop.f32.mrb[0].mxu0
    %v1283 = vpop.f32.mrb[0].mxu0
    %v1284 = vpop.f32.mrb[0].mxu0
    %1285 = vdwg.mxu0
    %v1287 = vsel %vm292, %v1237, 0
    %v1290 = vsel %vm430, %v1239, 0
    %1292 = vmatprep.subr.bf16.mxu0 0
    %1293 = vmatpush1.bf16.msra.mxu0 %v1290
    %1294 = vmatprep.subr.bf16.mxu0 0
    %1295 = vmatpush1.bf16.msra.mxu0 0
    %1296 = vmatprep.subr.bf16.mxu0 0
    %1297 = vmatpush1.bf16.msra.mxu0 0
    %1298 = vmatprep.subr.bf16.mxu0 0
    %1299 = vmatpush1.bf16.msra.mxu0 0
    %1300 = vmatprep.subr.bf16.mxu0 0
    %1301 = vmatpush1.bf16.msra.mxu0 0
    %1302 = vmatprep.subr.bf16.mxu0 0
    %1303 = vmatpush1.bf16.msra.mxu0 0
    %1304 = vmatprep.subr.bf16.mxu0 0
    %1305 = vmatpush1.bf16.msra.mxu0 0
    %1306 = vmatprep.subr.bf16.mxu0 0
    %1307 = vmatpush1.bf16.msra.mxu0 0
    %1308 = vmatprep.subr.bf16.mxu0 0
    %1309 = vmatpush1.bf16.msra.mxu0 0
    %1310 = vmatprep.subr.bf16.mxu0 0
    %1311 = vmatpush1.bf16.msra.mxu0 0
    %1312 = vmatprep.subr.bf16.mxu0 0
    %1313 = vmatpush1.bf16.msra.mxu0 0
    %1314 = vmatprep.subr.bf16.mxu0 0
    %1315 = vmatpush1.bf16.msra.mxu0 0
    %1316 = vmatprep.subr.bf16.mxu0 0
    %1317 = vmatpush1.bf16.msra.mxu0 0
    %1318 = vmatprep.subr.bf16.mxu0 0
    %1319 = vmatpush1.bf16.msra.mxu0 0
    %1320 = vmatprep.subr.bf16.mxu0 0
    %1321 = vmatpush1.bf16.msra.mxu0 0
    %1322 = vmatprep.subr.bf16.mxu0 0
    %1323 = vmatpush1.bf16.msra.mxu0 0
    %1324 = vmatprep.mubr.bf16.mxu0 0
    %1325 = vmatmul.mubr.bf16.gmra.mrb[0].mxu0 %v1287
    %v1326 = vpop.f32.mrb[0].mxu0
    %v1327 = vadd.f32 0.0, %v1326
    %v1328 = vpop.f32.mrb[0].mxu0
    %v1329 = vpop.f32.mrb[0].mxu0
    %v1330 = vpop.f32.mrb[0].mxu0
    %1331 = vdwg.mxu0
    %s1332 = scalar_lea.vmem %s6, 12
    %v1333 = vld [vmem:[%s1332] sm:$0x7]
    %s1334 = scalar_lea.vmem %s3, 48
    %v1335 = vld [vmem:[%s1334] sm:$0xf]
    %v1336 = vld [vmem:[%s1334 + $0x4] sm:$0xf]
    %v1337 = vld [vmem:[%s1334 + $0x8] sm:$0xf]
    %v1338 = vld [vmem:[%s1334 + $0xc] sm:$0xf]
    %v1339 = vlaneseq
    %v1340 = vshrl.u32 %v1339, 7
    %v1341 = vsub.s32 0, %v1340
    %v1342 = vrot.slane %v1333, %v1341
    %v1347 = vunpack.c.l.b16 %v1335
    %v1348 = vunpack.c.l.b16 %v1336
    %v1349 = vunpack.c.l.b16 %v1337
    %v1350 = vunpack.c.l.b16 %v1338
    %v1351 = vpack.c.b16 %v1348, %v1347
    %v1352 = vpack.c.b16 %v1350, %v1349
    %1355 = vmatprep.subr.bf16.mxu0 0
    %1356 = vmatpush1.bf16.msra.mxu0 %v1351
    %1357 = vmatprep.subr.bf16.mxu0 0
    %1358 = vmatpush1.bf16.msra.mxu0 %v1352
    %1359 = vmatprep.subr.bf16.mxu0 0
    %1360 = vmatpush1.bf16.msra.mxu0 0
    %1361 = vmatprep.subr.bf16.mxu0 0
    %1362 = vmatpush1.bf16.msra.mxu0 0
    %1363 = vmatprep.subr.bf16.mxu0 0
    %1364 = vmatpush1.bf16.msra.mxu0 0
    %1365 = vmatprep.subr.bf16.mxu0 0
    %1366 = vmatpush1.bf16.msra.mxu0 0
    %1367 = vmatprep.subr.bf16.mxu0 0
    %1368 = vmatpush1.bf16.msra.mxu0 0
    %1369 = vmatprep.subr.bf16.mxu0 0
    %1370 = vmatpush1.bf16.msra.mxu0 0
    %1371 = vmatprep.subr.bf16.mxu0 0
    %1372 = vmatpush1.bf16.msra.mxu0 0
    %1373 = vmatprep.subr.bf16.mxu0 0
    %1374 = vmatpush1.bf16.msra.mxu0 0
    %1375 = vmatprep.subr.bf16.mxu0 0
    %1376 = vmatpush1.bf16.msra.mxu0 0
    %1377 = vmatprep.subr.bf16.mxu0 0
    %1378 = vmatpush1.bf16.msra.mxu0 0
    %1379 = vmatprep.subr.bf16.mxu0 0
    %1380 = vmatpush1.bf16.msra.mxu0 0
    %1381 = vmatprep.subr.bf16.mxu0 0
    %1382 = vmatpush1.bf16.msra.mxu0 0
    %1383 = vmatprep.subr.bf16.mxu0 0
    %1384 = vmatpush1.bf16.msra.mxu0 0
    %1385 = vmatprep.subr.bf16.mxu0 0
    %1386 = vmatpush1.bf16.msra.mxu0 0
    %1387 = vmatprep.mubr.bf16.mxu0 0
    %1388 = vmatmul.mubr.bf16.gmra.mrb[0].mxu0 %v123
    %v1389 = vpop.f32.mrb[0].mxu0
    %v1390 = vadd.f32 %v1342, %v1389
    %v1391 = vpop.f32.mrb[0].mxu0
    %v1392 = vpop.f32.mrb[0].mxu0
    %v1393 = vadd.f32 %v1342, %v1392
    %v1394 = vpop.f32.mrb[0].mxu0
    %1395 = vdwg.mxu0
    %s1396 = scalar_lea.vmem %s4, 48
    %v1397 = vld [vmem:[%s1396] sm:$0xf]
    %v1398 = vld [vmem:[%s1396 + $0x4] sm:$0xf]
    %v1399 = vld [vmem:[%s1396 + $0x8] sm:$0xf]
    %v1400 = vld [vmem:[%s1396 + $0xc] sm:$0xf]
    %v1401 = vlaneseq
    %v1402 = vshrl.u32 %v1401, 7
    %v1403 = vsub.s32 1, %v1402
    %v1404 = vrot.slane %v1333, %v1403
    %v1409 = vunpack.c.l.b16 %v1397
    %v1410 = vunpack.c.l.b16 %v1398
    %v1411 = vunpack.c.l.b16 %v1399
    %v1412 = vunpack.c.l.b16 %v1400
    %v1413 = vpack.c.b16 %v1410, %v1409
    %v1414 = vpack.c.b16 %v1412, %v1411
    %1417 = vmatprep.subr.bf16.mxu0 0
    %1418 = vmatpush1.bf16.msra.mxu0 %v1413
    %1419 = vmatprep.subr.bf16.mxu0 0
    %1420 = vmatpush1.bf16.msra.mxu0 %v1414
    %1421 = vmatprep.subr.bf16.mxu0 0
    %1422 = vmatpush1.bf16.msra.mxu0 0
    %1423 = vmatprep.subr.bf16.mxu0 0
    %1424 = vmatpush1.bf16.msra.mxu0 0
    %1425 = vmatprep.subr.bf16.mxu0 0
    %1426 = vmatpush1.bf16.msra.mxu0 0
    %1427 = vmatprep.subr.bf16.mxu0 0
    %1428 = vmatpush1.bf16.msra.mxu0 0
    %1429 = vmatprep.subr.bf16.mxu0 0
    %1430 = vmatpush1.bf16.msra.mxu0 0
    %1431 = vmatprep.subr.bf16.mxu0 0
    %1432 = vmatpush1.bf16.msra.mxu0 0
    %1433 = vmatprep.subr.bf16.mxu0 0
    %1434 = vmatpush1.bf16.msra.mxu0 0
    %1435 = vmatprep.subr.bf16.mxu0 0
    %1436 = vmatpush1.bf16.msra.mxu0 0
    %1437 = vmatprep.subr.bf16.mxu0 0
    %1438 = vmatpush1.bf16.msra.mxu0 0
    %1439 = vmatprep.subr.bf16.mxu0 0
    %1440 = vmatpush1.bf16.msra.mxu0 0
    %1441 = vmatprep.subr.bf16.mxu0 0
    %1442 = vmatpush1.bf16.msra.mxu0 0
    %1443 = vmatprep.subr.bf16.mxu0 0
    %1444 = vmatpush1.bf16.msra.mxu0 0
    %1445 = vmatprep.subr.bf16.mxu0 0
    %1446 = vmatpush1.bf16.msra.mxu0 0
    %1447 = vmatprep.subr.bf16.mxu0 0
    %1448 = vmatpush1.bf16.msra.mxu0 0
    %1449 = vmatprep.mubr.bf16.mxu0 0
    %1450 = vmatmul.mubr.bf16.gmra.mrb[0].mxu0 %v123
    %v1451 = vpop.f32.mrb[0].mxu0
    %v1452 = vadd.f32 %v1404, %v1451
    %v1453 = vpop.f32.mrb[0].mxu0
    %v1454 = vpop.f32.mrb[0].mxu0
    %v1455 = vadd.f32 %v1404, %v1454
    %v1456 = vpop.f32.mrb[0].mxu0
    %1457 = vdwg.mxu0
    %s1458 = scalar_lea.vmem %s5, 48
    %v1459 = vld [vmem:[%s1458] sm:$0xf]
    %v1460 = vld [vmem:[%s1458 + $0x4] sm:$0xf]
    %v1461 = vld [vmem:[%s1458 + $0x8] sm:$0xf]
    %v1462 = vld [vmem:[%s1458 + $0xc] sm:$0xf]
    %v1463 = vlaneseq
    %v1464 = vshrl.u32 %v1463, 7
    %v1465 = vsub.s32 2, %v1464
    %v1466 = vrot.slane %v1333, %v1465
    %v1471 = vunpack.c.l.b16 %v1459
    %v1472 = vunpack.c.l.b16 %v1460
    %v1473 = vunpack.c.l.b16 %v1461
    %v1474 = vunpack.c.l.b16 %v1462
    %v1475 = vpack.c.b16 %v1472, %v1471
    %v1476 = vpack.c.b16 %v1474, %v1473
    %1479 = vmatprep.subr.bf16.mxu0 0
    %1480 = vmatpush1.bf16.msra.mxu0 %v1475
    %1481 = vmatprep.subr.bf16.mxu0 0
    %1482 = vmatpush1.bf16.msra.mxu0 %v1476
    %1483 = vmatprep.subr.bf16.mxu0 0
    %1484 = vmatpush1.bf16.msra.mxu0 0
    %1485 = vmatprep.subr.bf16.mxu0 0
    %1486 = vmatpush1.bf16.msra.mxu0 0
    %1487 = vmatprep.subr.bf16.mxu0 0
    %1488 = vmatpush1.bf16.msra.mxu0 0
    %1489 = vmatprep.subr.bf16.mxu0 0
    %1490 = vmatpush1.bf16.msra.mxu0 0
    %1491 = vmatprep.subr.bf16.mxu0 0
    %1492 = vmatpush1.bf16.msra.mxu0 0
    %1493 = vmatprep.subr.bf16.mxu0 0
    %1494 = vmatpush1.bf16.msra.mxu0 0
    %1495 = vmatprep.subr.bf16.mxu0 0
    %1496 = vmatpush1.bf16.msra.mxu0 0
    %1497 = vmatprep.subr.bf16.mxu0 0
    %1498 = vmatpush1.bf16.msra.mxu0 0
    %1499 = vmatprep.subr.bf16.mxu0 0
    %1500 = vmatpush1.bf16.msra.mxu0 0
    %1501 = vmatprep.subr.bf16.mxu0 0
    %1502 = vmatpush1.bf16.msra.mxu0 0
    %1503 = vmatprep.subr.bf16.mxu0 0
    %1504 = vmatpush1.bf16.msra.mxu0 0
    %1505 = vmatprep.subr.bf16.mxu0 0
    %1506 = vmatpush1.bf16.msra.mxu0 0
    %1507 = vmatprep.subr.bf16.mxu0 0
    %1508 = vmatpush1.bf16.msra.mxu0 0
    %1509 = vmatprep.subr.bf16.mxu0 0
    %1510 = vmatpush1.bf16.msra.mxu0 0
    %1511 = vmatprep.mubr.bf16.mxu0 0
    %1512 = vmatmul.mubr.bf16.gmra.mrb[0].mxu0 %v123
    %v1513 = vpop.f32.mrb[0].mxu0
    %v1514 = vadd.f32 %v1466, %v1513
    %v1515 = vpop.f32.mrb[0].mxu0
    %v1516 = vpop.f32.mrb[0].mxu0
    %v1517 = vadd.f32 %v1466, %v1516
    %v1518 = vpop.f32.mrb[0].mxu0
    %1519 = vdwg.mxu0
    %v1520 = vpack.c.bf16 %v1390, %v1390
    %v1521 = vpack.c.bf16 %v1393, %v1393
    %v1522 = vpack.c.bf16 %v1452, %v1452
    %v1523 = vpack.c.bf16 %v1455, %v1455
    %v1525 = vsel %vm292, %v1520, 0
    %v1528 = vsel %vm292, %v1522, 0
    %1530 = vmatprep.subr.bf16.mxu0 0
    %1531 = vmatpush1.bf16.xpose.msra.mxu0 %v1528
    %1532 = vmatprep.subr.bf16.mxu0 0
    %1533 = vmatpush1.bf16.xpose.msra.mxu0 0
    %1534 = vmatprep.subr.bf16.mxu0 0
    %1535 = vmatpush1.bf16.xpose.msra.mxu0 0
    %1536 = vmatprep.subr.bf16.mxu0 0
    %1537 = vmatpush1.bf16.xpose.msra.mxu0 0
    %1538 = vmatprep.subr.bf16.mxu0 0
    %1539 = vmatpush1.bf16.xpose.msra.mxu0 0
    %1540 = vmatprep.subr.bf16.mxu0 0
    %1541 = vmatpush1.bf16.xpose.msra.mxu0 0
    %1542 = vmatprep.subr.bf16.mxu0 0
    %1543 = vmatpush1.bf16.xpose.msra.mxu0 0
    %1544 = vmatprep.subr.bf16.mxu0 0
    %1545 = vmatpush1.bf16.xpose.msra.mxu0 0
    %1546 = vmatprep.subr.bf16.mxu0 0
    %1547 = vmatpush1.bf16.xpose.msra.mxu0 0
    %1548 = vmatprep.subr.bf16.mxu0 0
    %1549 = vmatpush1.bf16.xpose.msra.mxu0 0
    %1550 = vmatprep.subr.bf16.mxu0 0
    %1551 = vmatpush1.bf16.xpose.msra.mxu0 0
    %1552 = vmatprep.subr.bf16.mxu0 0
    %1553 = vmatpush1.bf16.xpose.msra.mxu0 0
    %1554 = vmatprep.subr.bf16.mxu0 0
    %1555 = vmatpush1.bf16.xpose.msra.mxu0 0
    %1556 = vmatprep.subr.bf16.mxu0 0
    %1557 = vmatpush1.bf16.xpose.msra.mxu0 0
    %1558 = vmatprep.subr.bf16.mxu0 0
    %1559 = vmatpush1.bf16.xpose.msra.mxu0 0
    %1560 = vmatprep.subr.bf16.mxu0 0
    %1561 = vmatpush1.bf16.xpose.msra.mxu0 0
    %1562 = vmatprep.mubr.bf16.mxu0 0
    %1563 = vmatmul.mubr.bf16.gmra.mrb[0].mxu0 %v1525
    %v1564 = vpop.f32.mrb[0].mxu0
    %v1565 = vadd.f32 0.0, %v1564
    %v1566 = vpop.f32.mrb[0].mxu0
    %v1567 = vpop.f32.mrb[0].mxu0
    %v1568 = vpop.f32.mrb[0].mxu0
    %1569 = vdwg.mxu0
    %v1571 = vsel %vm292, %v1521, 0
    %v1574 = vsel %vm292, %v1523, 0
    %1576 = vmatprep.subr.bf16.mxu0 0
    %1577 = vmatpush1.bf16.xpose.msra.mxu0 %v1574
    %1578 = vmatprep.subr.bf16.mxu0 0
    %1579 = vmatpush1.bf16.xpose.msra.mxu0 0
    %1580 = vmatprep.subr.bf16.mxu0 0
    %1581 = vmatpush1.bf16.xpose.msra.mxu0 0
    %1582 = vmatprep.subr.bf16.mxu0 0
    %1583 = vmatpush1.bf16.xpose.msra.mxu0 0
    %1584 = vmatprep.subr.bf16.mxu0 0
    %1585 = vmatpush1.bf16.xpose.msra.mxu0 0
    %1586 = vmatprep.subr.bf16.mxu0 0
    %1587 = vmatpush1.bf16.xpose.msra.mxu0 0
    %1588 = vmatprep.subr.bf16.mxu0 0
    %1589 = vmatpush1.bf16.xpose.msra.mxu0 0
    %1590 = vmatprep.subr.bf16.mxu0 0
    %1591 = vmatpush1.bf16.xpose.msra.mxu0 0
    %1592 = vmatprep.subr.bf16.mxu0 0
    %1593 = vmatpush1.bf16.xpose.msra.mxu0 0
    %1594 = vmatprep.subr.bf16.mxu0 0
    %1595 = vmatpush1.bf16.xpose.msra.mxu0 0
    %1596 = vmatprep.subr.bf16.mxu0 0
    %1597 = vmatpush1.bf16.xpose.msra.mxu0 0
    %1598 = vmatprep.subr.bf16.mxu0 0
    %1599 = vmatpush1.bf16.xpose.msra.mxu0 0
    %1600 = vmatprep.subr.bf16.mxu0 0
    %1601 = vmatpush1.bf16.xpose.msra.mxu0 0
    %1602 = vmatprep.subr.bf16.mxu0 0
    %1603 = vmatpush1.bf16.xpose.msra.mxu0 0
    %1604 = vmatprep.subr.bf16.mxu0 0
    %1605 = vmatpush1.bf16.xpose.msra.mxu0 0
    %1606 = vmatprep.subr.bf16.mxu0 0
    %1607 = vmatpush1.bf16.xpose.msra.mxu0 0
    %1608 = vmatprep.mubr.bf16.mxu0 0
    %1609 = vmatmul.mubr.bf16.gmra.mrb[0].mxu0 %v1571
    %v1610 = vpop.f32.mrb[0].mxu0
    %v1611 = vadd.f32 0.0, %v1610
    %v1612 = vpop.f32.mrb[0].mxu0
    %v1613 = vpop.f32.mrb[0].mxu0
    %v1614 = vpop.f32.mrb[0].mxu0
    %1615 = vdwg.mxu0
    %v1616 = vmul.f32 %v1565, 0.35355338
    %v1617 = vmul.f32 %v1611, 0.35355338
    %v1618 = vadd.f32 %v1616, %v392
    %v1619 = vadd.f32 %v1617, %v396
    %v1620 = vsel %vm292, %v1618, -inf
    %1621 = vmax.xlane.f32.xlu0 %v1620
    %v1622 = vpop.xlane.xlu0 %1621
    %v1623 = vsel %vm292, %v1619, -inf
    %1624 = vmax.xlane.f32.xlu0 %v1623
    %v1625 = vpop.xlane.xlu0 %1624
    %v1626 = vsub.f32 %v1618, %v1622
    %v1627 = vsub.f32 %v1619, %v1625
    %v1628 = vmul.f32 %v1626, 1.442695
    %v1629 = vpow.pop %v1628
    %v1630 = vmul.f32 %v1627, 1.442695
    %v1631 = vpow.pop %v1630
    %v1632 = vsel %vm292, %v1629, 0.0
    %1633 = vadd.xlane.f32.xlu0 %v1632
    %v1634 = vpop.xlane.xlu0 %1633
    %v1635 = vsel %vm292, %v1631, 0.0
    %1636 = vadd.xlane.f32.xlu0 %v1635
    %v1637 = vpop.xlane.xlu0 %1636
    %v1638 = vrcp.pop %v1634
    %v1639 = vrcp.pop %v1637
    %v1640 = vmul.f32 %v1629, %v1638
    %v1641 = vmul.f32 %v1631, %v1639
    %v1642 = vpack.c.bf16 %v1640, %v1640
    %v1643 = vpack.c.bf16 %v1641, %v1641
    %v1644 = vpack.c.bf16 %v1514, %v1514
    %v1645 = vpack.c.bf16 %v1517, %v1517
    %v1647 = vsel %vm292, %v1642, 0
    %v1650 = vsel %vm430, %v1644, 0
    %1652 = vmatprep.subr.bf16.mxu0 0
    %1653 = vmatpush1.bf16.msra.mxu0 %v1650
    %1654 = vmatprep.subr.bf16.mxu0 0
    %1655 = vmatpush1.bf16.msra.mxu0 0
    %1656 = vmatprep.subr.bf16.mxu0 0
    %1657 = vmatpush1.bf16.msra.mxu0 0
    %1658 = vmatprep.subr.bf16.mxu0 0
    %1659 = vmatpush1.bf16.msra.mxu0 0
    %1660 = vmatprep.subr.bf16.mxu0 0
    %1661 = vmatpush1.bf16.msra.mxu0 0
    %1662 = vmatprep.subr.bf16.mxu0 0
    %1663 = vmatpush1.bf16.msra.mxu0 0
    %1664 = vmatprep.subr.bf16.mxu0 0
    %1665 = vmatpush1.bf16.msra.mxu0 0
    %1666 = vmatprep.subr.bf16.mxu0 0
    %1667 = vmatpush1.bf16.msra.mxu0 0
    %1668 = vmatprep.subr.bf16.mxu0 0
    %1669 = vmatpush1.bf16.msra.mxu0 0
    %1670 = vmatprep.subr.bf16.mxu0 0
    %1671 = vmatpush1.bf16.msra.mxu0 0
    %1672 = vmatprep.subr.bf16.mxu0 0
    %1673 = vmatpush1.bf16.msra.mxu0 0
    %1674 = vmatprep.subr.bf16.mxu0 0
    %1675 = vmatpush1.bf16.msra.mxu0 0
    %1676 = vmatprep.subr.bf16.mxu0 0
    %1677 = vmatpush1.bf16.msra.mxu0 0
    %1678 = vmatprep.subr.bf16.mxu0 0
    %1679 = vmatpush1.bf16.msra.mxu0 0
    %1680 = vmatprep.subr.bf16.mxu0 0
    %1681 = vmatpush1.bf16.msra.mxu0 0
    %1682 = vmatprep.subr.bf16.mxu0 0
    %1683 = vmatpush1.bf16.msra.mxu0 0
    %1684 = vmatprep.mubr.bf16.mxu0 0
    %1685 = vmatmul.mubr.bf16.gmra.mrb[0].mxu0 %v1647
    %v1686 = vpop.f32.mrb[0].mxu0
    %v1687 = vadd.f32 0.0, %v1686
    %v1688 = vpop.f32.mrb[0].mxu0
    %v1689 = vpop.f32.mrb[0].mxu0
    %v1690 = vpop.f32.mrb[0].mxu0
    %1691 = vdwg.mxu0
    %v1693 = vsel %vm292, %v1643, 0
    %v1696 = vsel %vm430, %v1645, 0
    %1698 = vmatprep.subr.bf16.mxu0 0
    %1699 = vmatpush1.bf16.msra.mxu0 %v1696
    %1700 = vmatprep.subr.bf16.mxu0 0
    %1701 = vmatpush1.bf16.msra.mxu0 0
    %1702 = vmatprep.subr.bf16.mxu0 0
    %1703 = vmatpush1.bf16.msra.mxu0 0
    %1704 = vmatprep.subr.bf16.mxu0 0
    %1705 = vmatpush1.bf16.msra.mxu0 0
    %1706 = vmatprep.subr.bf16.mxu0 0
    %1707 = vmatpush1.bf16.msra.mxu0 0
    %1708 = vmatprep.subr.bf16.mxu0 0
    %1709 = vmatpush1.bf16.msra.mxu0 0
    %1710 = vmatprep.subr.bf16.mxu0 0
    %1711 = vmatpush1.bf16.msra.mxu0 0
    %1712 = vmatprep.subr.bf16.mxu0 0
    %1713 = vmatpush1.bf16.msra.mxu0 0
    %1714 = vmatprep.subr.bf16.mxu0 0
    %1715 = vmatpush1.bf16.msra.mxu0 0
    %1716 = vmatprep.subr.bf16.mxu0 0
    %1717 = vmatpush1.bf16.msra.mxu0 0
    %1718 = vmatprep.subr.bf16.mxu0 0
    %1719 = vmatpush1.bf16.msra.mxu0 0
    %1720 = vmatprep.subr.bf16.mxu0 0
    %1721 = vmatpush1.bf16.msra.mxu0 0
    %1722 = vmatprep.subr.bf16.mxu0 0
    %1723 = vmatpush1.bf16.msra.mxu0 0
    %1724 = vmatprep.subr.bf16.mxu0 0
    %1725 = vmatpush1.bf16.msra.mxu0 0
    %1726 = vmatprep.subr.bf16.mxu0 0
    %1727 = vmatpush1.bf16.msra.mxu0 0
    %1728 = vmatprep.subr.bf16.mxu0 0
    %1729 = vmatpush1.bf16.msra.mxu0 0
    %1730 = vmatprep.mubr.bf16.mxu0 0
    %1731 = vmatmul.mubr.bf16.gmra.mrb[0].mxu0 %v1693
    %v1732 = vpop.f32.mrb[0].mxu0
    %v1733 = vadd.f32 0.0, %v1732
    %v1734 = vpop.f32.mrb[0].mxu0
    %v1735 = vpop.f32.mrb[0].mxu0
    %v1736 = vpop.f32.mrb[0].mxu0
    %1737 = vdwg.mxu0
    %1740 = vrot.lane.b32.xlu0 %v875, 8
    %v1741 = vpop.permute.xlu0 %1740
    %1742 = vrot.lane.b32.xlu0 %v921, 8
    %v1743 = vpop.permute.xlu0 %1742
    %1748 = vrot.lane.b32.xlu0 %v1281, 16
    %v1749 = vpop.permute.xlu0 %1748
    %1750 = vrot.lane.b32.xlu0 %v1327, 16
    %v1751 = vpop.permute.xlu0 %1750
    %1756 = vrot.lane.b32.xlu0 %v1687, 24
    %v1757 = vpop.permute.xlu0 %1756
    %1758 = vrot.lane.b32.xlu0 %v1733, 24
    %v1759 = vpop.permute.xlu0 %1758
    %v1762 = vsel %vm292, %v469, %v1741
    %v1763 = vsel %vm292, %v515, %v1743
    %vm1764 = vcmask 130048
    %v1765 = vsel %vm1764, %v1762, %v1749
    %v1766 = vsel %vm1764, %v1763, %v1751
    %vm1767 = vcmask 195584
    %v1768 = vsel %vm1767, %v1765, %v1757
    %v1769 = vsel %vm1767, %v1766, %v1759
    %v1770 = vld [vmem:[%s8] sm:$0x3f]
    %v1771 = vld [vmem:[%s7] sm:$0xf]
    %v1772 = vld [vmem:[%s7 + $0x4] sm:$0xf]
    %v1773 = vld [vmem:[%s7 + $0x8] sm:$0xf]
    %v1774 = vld [vmem:[%s7 + $0xc] sm:$0xf]
    %v1775 = vpack.c.bf16 %v1769, %v1768
    %v1776 = vlaneseq
    %v1777 = vshrl.u32 %v1776, 7
    %v1778 = vsub.s32 0, %v1777
    %v1779 = vrot.slane %v1770, %v1778
    %v1784 = vunpack.c.l.b16 %v1771
    %v1785 = vunpack.c.l.b16 %v1772
    %v1786 = vunpack.c.l.b16 %v1773
    %v1787 = vunpack.c.l.b16 %v1774
    %v1788 = vpack.c.b16 %v1785, %v1784
    %v1789 = vpack.c.b16 %v1787, %v1786
    %v1793 = vsel %vm58, %v1775, 0
    %1795 = vmatprep.subr.bf16.mxu0 0
    %1796 = vmatpush1.bf16.msra.mxu0 %v1788
    %1797 = vmatprep.subr.bf16.mxu0 0
    %1798 = vmatpush1.bf16.msra.mxu0 %v1789
    %1799 = vmatprep.subr.bf16.mxu0 0
    %1800 = vmatpush1.bf16.msra.mxu0 0
    %1801 = vmatprep.subr.bf16.mxu0 0
    %1802 = vmatpush1.bf16.msra.mxu0 0
    %1803 = vmatprep.subr.bf16.mxu0 0
    %1804 = vmatpush1.bf16.msra.mxu0 0
    %1805 = vmatprep.subr.bf16.mxu0 0
    %1806 = vmatpush1.bf16.msra.mxu0 0
    %1807 = vmatprep.subr.bf16.mxu0 0
    %1808 = vmatpush1.bf16.msra.mxu0 0
    %1809 = vmatprep.subr.bf16.mxu0 0
    %1810 = vmatpush1.bf16.msra.mxu0 0
    %1811 = vmatprep.subr.bf16.mxu0 0
    %1812 = vmatpush1.bf16.msra.mxu0 0
    %1813 = vmatprep.subr.bf16.mxu0 0
    %1814 = vmatpush1.bf16.msra.mxu0 0
    %1815 = vmatprep.subr.bf16.mxu0 0
    %1816 = vmatpush1.bf16.msra.mxu0 0
    %1817 = vmatprep.subr.bf16.mxu0 0
    %1818 = vmatpush1.bf16.msra.mxu0 0
    %1819 = vmatprep.subr.bf16.mxu0 0
    %1820 = vmatpush1.bf16.msra.mxu0 0
    %1821 = vmatprep.subr.bf16.mxu0 0
    %1822 = vmatpush1.bf16.msra.mxu0 0
    %1823 = vmatprep.subr.bf16.mxu0 0
    %1824 = vmatpush1.bf16.msra.mxu0 0
    %1825 = vmatprep.subr.bf16.mxu0 0
    %1826 = vmatpush1.bf16.msra.mxu0 0
    %1827 = vmatprep.mubr.bf16.mxu0 0
    %1828 = vmatmul.mubr.bf16.gmra.mrb[0].mxu0 %v1793
    %v1829 = vpop.f32.mrb[0].mxu0
    %v1830 = vadd.f32 %v1779, %v1829
    %v1831 = vpop.f32.mrb[0].mxu0
    %v1832 = vpop.f32.mrb[0].mxu0
    %v1833 = vadd.f32 %v1779, %v1832
    %v1834 = vpop.f32.mrb[0].mxu0
    %1835 = vdwg.mxu0
    %v1836 = vadd.f32 %v96, %v1830
    %v1837 = vadd.f32 %v97, %v1833
    %v1838 = vsel %vm58, %v1836, 0.0
    %1839 = vadd.xlane.f32.xlu0 %v1838
    %v1840 = vpop.xlane.xlu0 %1839
    %v1841 = vsel %vm58, %v1837, 0.0
    %1842 = vadd.xlane.f32.xlu0 %v1841
    %v1843 = vpop.xlane.xlu0 %1842
    %v1844 = vmul.f32 %v1840, %v65
    %v1845 = vmul.f32 %v1843, %v65
    %v1846 = vsub.f32 %v1836, %v1844
    %v1847 = vsub.f32 %v1837, %v1845
    %v1848 = vmul.f32 %v1846, %v1846
    %v1849 = vmul.f32 %v1847, %v1847
    %v1850 = vsel %vm58, %v1848, 0.0
    %1851 = vadd.xlane.f32.xlu0 %v1850
    %v1852 = vpop.xlane.xlu0 %1851
    %v1853 = vsel %vm58, %v1849, 0.0
    %1854 = vadd.xlane.f32.xlu0 %v1853
    %v1855 = vpop.xlane.xlu0 %1854
    %v1856 = vmul.f32 %v1852, %v65
    %v1857 = vmul.f32 %v1855, %v65
    %v1858 = vadd.f32 %v1856, 1e-05
    %v1859 = vadd.f32 %v1857, 1e-05
    %v1860 = vrsqrt.pop %v1858
    %v1861 = vrsqrt.pop %v1859
    %v1862 = vmul.f32 %v1846, %v1860
    %v1863 = vmul.f32 %v1847, %v1861
    %v1864 = vlaneseq
    %v1865 = vshrl.u32 %v1864, 7
    %v1866 = vsub.s32 1, %v1865
    %v1867 = vrot.slane %v1770, %v1866
    %v1868 = vmul.f32 %v1862, %v1867
    %v1869 = vmul.f32 %v1863, %v1867
    %v1870 = vlaneseq
    %v1871 = vshrl.u32 %v1870, 7
    %v1872 = vsub.s32 2, %v1871
    %v1873 = vrot.slane %v1770, %v1872
    %v1874 = vadd.f32 %v1868, %v1873
    %v1875 = vadd.f32 %v1869, %v1873
    %v1876 = vld [vmem:[%s9] sm:$0xf]
    %v1877 = vld [vmem:[%s9 + $0x4] sm:$0xf]
    %v1878 = vld [vmem:[%s9 + $0x8] sm:$0xf]
    %v1879 = vld [vmem:[%s9 + $0xc] sm:$0xf]
    %v1880 = vpack.c.bf16 %v1875, %v1874
    %v1881 = vld [vmem:[%s10] sm:$0x1]
    %v1883 = vlaneseq
    %v1884 = vshrl.u32 %v1883, 7
    %v1885 = vsub.s32 0, %v1884
    %v1886 = vrot.slane %v1881, %v1885
    %v1892 = vunpack.c.l.b16 %v1876
    %v1893 = vunpack.c.l.b16 %v1877
    %v1894 = vunpack.c.l.b16 %v1878
    %v1895 = vunpack.c.l.b16 %v1879
    %v1896 = vpack.c.b16 %v1893, %v1892
    %v1897 = vpack.c.b16 %v1895, %v1894
    %v1901 = vsel %vm58, %v1880, 0
    %1903 = vmatprep.subr.bf16.mxu0 0
    %1904 = vmatpush1.bf16.msra.mxu0 %v1896
    %1905 = vmatprep.subr.bf16.mxu0 0
    %1906 = vmatpush1.bf16.msra.mxu0 %v1897
    %1907 = vmatprep.subr.bf16.mxu0 0
    %1908 = vmatpush1.bf16.msra.mxu0 0
    %1909 = vmatprep.subr.bf16.mxu0 0
    %1910 = vmatpush1.bf16.msra.mxu0 0
    %1911 = vmatprep.subr.bf16.mxu0 0
    %1912 = vmatpush1.bf16.msra.mxu0 0
    %1913 = vmatprep.subr.bf16.mxu0 0
    %1914 = vmatpush1.bf16.msra.mxu0 0
    %1915 = vmatprep.subr.bf16.mxu0 0
    %1916 = vmatpush1.bf16.msra.mxu0 0
    %1917 = vmatprep.subr.bf16.mxu0 0
    %1918 = vmatpush1.bf16.msra.mxu0 0
    %1919 = vmatprep.subr.bf16.mxu0 0
    %1920 = vmatpush1.bf16.msra.mxu0 0
    %1921 = vmatprep.subr.bf16.mxu0 0
    %1922 = vmatpush1.bf16.msra.mxu0 0
    %1923 = vmatprep.subr.bf16.mxu0 0
    %1924 = vmatpush1.bf16.msra.mxu0 0
    %1925 = vmatprep.subr.bf16.mxu0 0
    %1926 = vmatpush1.bf16.msra.mxu0 0
    %1927 = vmatprep.subr.bf16.mxu0 0
    %1928 = vmatpush1.bf16.msra.mxu0 0
    %1929 = vmatprep.subr.bf16.mxu0 0
    %1930 = vmatpush1.bf16.msra.mxu0 0
    %1931 = vmatprep.subr.bf16.mxu0 0
    %1932 = vmatpush1.bf16.msra.mxu0 0
    %1933 = vmatprep.subr.bf16.mxu0 0
    %1934 = vmatpush1.bf16.msra.mxu0 0
    %1935 = vmatprep.mubr.bf16.mxu0 0
    %1936 = vmatmul.mubr.bf16.gmra.mrb[0].mxu0 %v1901
    %v1937 = vpop.f32.mrb[0].mxu0
    %v1938 = vadd.f32 %v1886, %v1937
    %v1939 = vpop.f32.mrb[0].mxu0
    %v1940 = vpop.f32.mrb[0].mxu0
    %v1941 = vadd.f32 %v1886, %v1940
    %v1942 = vpop.f32.mrb[0].mxu0
    %1943 = vdwg.mxu0
    %v1944 = vmul.f32 %v1938, 0.5
    %v1945 = vmul.f32 %v1941, 0.5
    %v1946 = vmul.f32 %v1938, 0.044715
    %v1947 = vmul.f32 %v1941, 0.044715
    %v1948 = vmul.f32 %v1946, %v1938
    %v1949 = vmul.f32 %v1947, %v1941
    %v1950 = vmul.f32 %v1948, %v1938
    %v1951 = vmul.f32 %v1949, %v1941
    %v1952 = vadd.f32 %v1938, %v1950
    %v1953 = vadd.f32 %v1941, %v1951
    %v1954 = vmul.f32 %v1952, 0.7978846
    %v1955 = vmul.f32 %v1953, 0.7978846
    %v1956 = vtanh.pop %v1954
    %v1957 = vtanh.pop %v1955
    %v1958 = vadd.f32 %v1956, 1.0
    %v1959 = vadd.f32 %v1957, 1.0
    %v1960 = vmul.f32 %v1944, %v1958
    %v1961 = vmul.f32 %v1945, %v1959
    %v1962 = vld [vmem:[%s11] sm:$0xf]
    %v1963 = vld [vmem:[%s11 + $0x4] sm:$0xf]
    %v1964 = vld [vmem:[%s11 + $0x8] sm:$0xf]
    %v1965 = vld [vmem:[%s11 + $0xc] sm:$0xf]
    %v1966 = vld [vmem:[%s11 + $0x10] sm:$0xf]
    %v1967 = vld [vmem:[%s11 + $0x14] sm:$0xf]
    %v1968 = vld [vmem:[%s11 + $0x18] sm:$0xf]
    %v1969 = vld [vmem:[%s11 + $0x1c] sm:$0xf]
    %v1970 = vpack.c.bf16 %v1961, %v1960
    %v1971 = vlaneseq
    %v1972 = vshrl.u32 %v1971, 7
    %v1973 = vsub.s32 3, %v1972
    %v1974 = vrot.slane %v1770, %v1973
    %v1983 = vunpack.c.l.b16 %v1962
    %v1984 = vunpack.c.l.b16 %v1963
    %v1985 = vunpack.c.l.b16 %v1964
    %v1986 = vunpack.c.l.b16 %v1965
    %v1987 = vunpack.c.l.b16 %v1966
    %v1988 = vunpack.c.l.b16 %v1967
    %v1989 = vunpack.c.l.b16 %v1968
    %v1990 = vunpack.c.l.b16 %v1969
    %v1991 = vpack.c.b16 %v1984, %v1983
    %v1992 = vpack.c.b16 %v1986, %v1985
    %v1993 = vpack.c.b16 %v1988, %v1987
    %v1994 = vpack.c.b16 %v1990, %v1989
    %vm1999 = vcmask 523264
    %v2001 = vsel %vm1999, %v1970, 0
    %2003 = vmatprep.subr.bf16.mxu0 0
    %2004 = vmatpush1.bf16.msra.mxu0 %v1991
    %2005 = vmatprep.subr.bf16.mxu0 0
    %2006 = vmatpush1.bf16.msra.mxu0 %v1992
    %2007 = vmatprep.subr.bf16.mxu0 0
    %2008 = vmatpush1.bf16.msra.mxu0 %v1993
    %2009 = vmatprep.subr.bf16.mxu0 0
    %2010 = vmatpush1.bf16.msra.mxu0 %v1994
    %2011 = vmatprep.subr.bf16.mxu0 0
    %2012 = vmatpush1.bf16.msra.mxu0 0
    %2013 = vmatprep.subr.bf16.mxu0 0
    %2014 = vmatpush1.bf16.msra.mxu0 0
    %2015 = vmatprep.subr.bf16.mxu0 0
    %2016 = vmatpush1.bf16.msra.mxu0 0
    %2017 = vmatprep.subr.bf16.mxu0 0
    %2018 = vmatpush1.bf16.msra.mxu0 0
    %2019 = vmatprep.subr.bf16.mxu0 0
    %2020 = vmatpush1.bf16.msra.mxu0 0
    %2021 = vmatprep.subr.bf16.mxu0 0
    %2022 = vmatpush1.bf16.msra.mxu0 0
    %2023 = vmatprep.subr.bf16.mxu0 0
    %2024 = vmatpush1.bf16.msra.mxu0 0
    %2025 = vmatprep.subr.bf16.mxu0 0
    %2026 = vmatpush1.bf16.msra.mxu0 0
    %2027 = vmatprep.subr.bf16.mxu0 0
    %2028 = vmatpush1.bf16.msra.mxu0 0
    %2029 = vmatprep.subr.bf16.mxu0 0
    %2030 = vmatpush1.bf16.msra.mxu0 0
    %2031 = vmatprep.subr.bf16.mxu0 0
    %2032 = vmatpush1.bf16.msra.mxu0 0
    %2033 = vmatprep.subr.bf16.mxu0 0
    %2034 = vmatpush1.bf16.msra.mxu0 0
    %2035 = vmatprep.mubr.bf16.mxu0 0
    %2036 = vmatmul.mubr.bf16.gmra.mrb[0].mxu0 %v2001
    %v2037 = vpop.f32.mrb[0].mxu0
    %v2038 = vadd.f32 %v1974, %v2037
    %v2039 = vpop.f32.mrb[0].mxu0
    %v2040 = vpop.f32.mrb[0].mxu0
    %v2041 = vadd.f32 %v1974, %v2040
    %v2042 = vpop.f32.mrb[0].mxu0
    %2043 = vdwg.mxu0
    %v2044 = vadd.f32 %v1874, %v2038
    %v2045 = vadd.f32 %v1875, %v2041
    %v2046 = vsel %vm58, %v2044, 0.0
    %2047 = vadd.xlane.f32.xlu0 %v2046
    %v2048 = vpop.xlane.xlu0 %2047
    %v2049 = vsel %vm58, %v2045, 0.0
    %2050 = vadd.xlane.f32.xlu0 %v2049
    %v2051 = vpop.xlane.xlu0 %2050
    %v2052 = vmul.f32 %v2048, %v65
    %v2053 = vmul.f32 %v2051, %v65
    %v2054 = vsub.f32 %v2044, %v2052
    %v2055 = vsub.f32 %v2045, %v2053
    %v2056 = vmul.f32 %v2054, %v2054
    %v2057 = vmul.f32 %v2055, %v2055
    %v2058 = vsel %vm58, %v2056, 0.0
    %2059 = vadd.xlane.f32.xlu0 %v2058
    %v2060 = vpop.xlane.xlu0 %2059
    %v2061 = vsel %vm58, %v2057, 0.0
    %2062 = vadd.xlane.f32.xlu0 %v2061
    %v2063 = vpop.xlane.xlu0 %2062
    %v2064 = vmul.f32 %v2060, %v65
    %v2065 = vmul.f32 %v2063, %v65
    %v2066 = vadd.f32 %v2064, 1e-05
    %v2067 = vadd.f32 %v2065, 1e-05
    %v2068 = vrsqrt.pop %v2066
    %v2069 = vrsqrt.pop %v2067
    %v2070 = vmul.f32 %v2054, %v2068
    %v2071 = vmul.f32 %v2055, %v2069
    %v2072 = vlaneseq
    %v2073 = vshrl.u32 %v2072, 7
    %v2074 = vsub.s32 4, %v2073
    %v2075 = vrot.slane %v1770, %v2074
    %v2076 = vmul.f32 %v2070, %v2075
    %v2077 = vmul.f32 %v2071, %v2075
    %v2078 = vlaneseq
    %v2079 = vshrl.u32 %v2078, 7
    %v2080 = vsub.s32 5, %v2079
    %v2081 = vrot.slane %v1770, %v2080
    %v2082 = vadd.f32 %v2076, %v2081
    %v2083 = vadd.f32 %v2077, %v2081
    %s2084 = scalar_lea.vmem %s6, 16
    %v2085 = vld [vmem:[%s2084] sm:$0x7]
    %s2086 = scalar_lea.vmem %s3, 64
    %v2087 = vld [vmem:[%s2086] sm:$0xf]
    %v2088 = vld [vmem:[%s2086 + $0x4] sm:$0xf]
    %v2089 = vld [vmem:[%s2086 + $0x8] sm:$0xf]
    %v2090 = vld [vmem:[%s2086 + $0xc] sm:$0xf]
    %v2091 = vpack.c.bf16 %v2083, %v2082
    %v2092 = vlaneseq
    %v2093 = vshrl.u32 %v2092, 7
    %v2094 = vsub.s32 0, %v2093
    %v2095 = vrot.slane %v2085, %v2094
    %v2100 = vunpack.c.l.b16 %v2087
    %v2101 = vunpack.c.l.b16 %v2088
    %v2102 = vunpack.c.l.b16 %v2089
    %v2103 = vunpack.c.l.b16 %v2090
    %v2104 = vpack.c.b16 %v2101, %v2100
    %v2105 = vpack.c.b16 %v2103, %v2102
    %v2109 = vsel %vm58, %v2091, 0
    %2111 = vmatprep.subr.bf16.mxu0 0
    %2112 = vmatpush1.bf16.msra.mxu0 %v2104
    %2113 = vmatprep.subr.bf16.mxu0 0
    %2114 = vmatpush1.bf16.msra.mxu0 %v2105
    %2115 = vmatprep.subr.bf16.mxu0 0
    %2116 = vmatpush1.bf16.msra.mxu0 0
    %2117 = vmatprep.subr.bf16.mxu0 0
    %2118 = vmatpush1.bf16.msra.mxu0 0
    %2119 = vmatprep.subr.bf16.mxu0 0
    %2120 = vmatpush1.bf16.msra.mxu0 0
    %2121 = vmatprep.subr.bf16.mxu0 0
    %2122 = vmatpush1.bf16.msra.mxu0 0
    %2123 = vmatprep.subr.bf16.mxu0 0
    %2124 = vmatpush1.bf16.msra.mxu0 0
    %2125 = vmatprep.subr.bf16.mxu0 0
    %2126 = vmatpush1.bf16.msra.mxu0 0
    %2127 = vmatprep.subr.bf16.mxu0 0
    %2128 = vmatpush1.bf16.msra.mxu0 0
    %2129 = vmatprep.subr.bf16.mxu0 0
    %2130 = vmatpush1.bf16.msra.mxu0 0
    %2131 = vmatprep.subr.bf16.mxu0 0
    %2132 = vmatpush1.bf16.msra.mxu0 0
    %2133 = vmatprep.subr.bf16.mxu0 0
    %2134 = vmatpush1.bf16.msra.mxu0 0
    %2135 = vmatprep.subr.bf16.mxu0 0
    %2136 = vmatpush1.bf16.msra.mxu0 0
    %2137 = vmatprep.subr.bf16.mxu0 0
    %2138 = vmatpush1.bf16.msra.mxu0 0
    %2139 = vmatprep.subr.bf16.mxu0 0
    %2140 = vmatpush1.bf16.msra.mxu0 0
    %2141 = vmatprep.subr.bf16.mxu0 0
    %2142 = vmatpush1.bf16.msra.mxu0 0
    %2143 = vmatprep.mubr.bf16.mxu0 0
    %2144 = vmatmul.mubr.bf16.gmra.mrb[0].mxu0 %v2109
    %v2145 = vpop.f32.mrb[0].mxu0
    %v2146 = vadd.f32 %v2095, %v2145
    %v2147 = vpop.f32.mrb[0].mxu0
    %v2148 = vpop.f32.mrb[0].mxu0
    %v2149 = vadd.f32 %v2095, %v2148
    %v2150 = vpop.f32.mrb[0].mxu0
    %2151 = vdwg.mxu0
    %s2152 = scalar_lea.vmem %s4, 64
    %v2153 = vld [vmem:[%s2152] sm:$0xf]
    %v2154 = vld [vmem:[%s2152 + $0x4] sm:$0xf]
    %v2155 = vld [vmem:[%s2152 + $0x8] sm:$0xf]
    %v2156 = vld [vmem:[%s2152 + $0xc] sm:$0xf]
    %v2157 = vlaneseq
    %v2158 = vshrl.u32 %v2157, 7
    %v2159 = vsub.s32 1, %v2158
    %v2160 = vrot.slane %v2085, %v2159
    %v2165 = vunpack.c.l.b16 %v2153
    %v2166 = vunpack.c.l.b16 %v2154
    %v2167 = vunpack.c.l.b16 %v2155
    %v2168 = vunpack.c.l.b16 %v2156
    %v2169 = vpack.c.b16 %v2166, %v2165
    %v2170 = vpack.c.b16 %v2168, %v2167
    %2173 = vmatprep.subr.bf16.mxu0 0
    %2174 = vmatpush1.bf16.msra.mxu0 %v2169
    %2175 = vmatprep.subr.bf16.mxu0 0
    %2176 = vmatpush1.bf16.msra.mxu0 %v2170
    %2177 = vmatprep.subr.bf16.mxu0 0
    %2178 = vmatpush1.bf16.msra.mxu0 0
    %2179 = vmatprep.subr.bf16.mxu0 0
    %2180 = vmatpush1.bf16.msra.mxu0 0
    %2181 = vmatprep.subr.bf16.mxu0 0
    %2182 = vmatpush1.bf16.msra.mxu0 0
    %2183 = vmatprep.subr.bf16.mxu0 0
    %2184 = vmatpush1.bf16.msra.mxu0 0
    %2185 = vmatprep.subr.bf16.mxu0 0
    %2186 = vmatpush1.bf16.msra.mxu0 0
    %2187 = vmatprep.subr.bf16.mxu0 0
    %2188 = vmatpush1.bf16.msra.mxu0 0
    %2189 = vmatprep.subr.bf16.mxu0 0
    %2190 = vmatpush1.bf16.msra.mxu0 0
    %2191 = vmatprep.subr.bf16.mxu0 0
    %2192 = vmatpush1.bf16.msra.mxu0 0
    %2193 = vmatprep.subr.bf16.mxu0 0
    %2194 = vmatpush1.bf16.msra.mxu0 0
    %2195 = vmatprep.subr.bf16.mxu0 0
    %2196 = vmatpush1.bf16.msra.mxu0 0
    %2197 = vmatprep.subr.bf16.mxu0 0
    %2198 = vmatpush1.bf16.msra.mxu0 0
    %2199 = vmatprep.subr.bf16.mxu0 0
    %2200 = vmatpush1.bf16.msra.mxu0 0
    %2201 = vmatprep.subr.bf16.mxu0 0
    %2202 = vmatpush1.bf16.msra.mxu0 0
    %2203 = vmatprep.subr.bf16.mxu0 0
    %2204 = vmatpush1.bf16.msra.mxu0 0
    %2205 = vmatprep.mubr.bf16.mxu0 0
    %2206 = vmatmul.mubr.bf16.gmra.mrb[0].mxu0 %v2109
    %v2207 = vpop.f32.mrb[0].mxu0
    %v2208 = vadd.f32 %v2160, %v2207
    %v2209 = vpop.f32.mrb[0].mxu0
    %v2210 = vpop.f32.mrb[0].mxu0
    %v2211 = vadd.f32 %v2160, %v2210
    %v2212 = vpop.f32.mrb[0].mxu0
    %2213 = vdwg.mxu0
    %s2214 = scalar_lea.vmem %s5, 64
    %v2215 = vld [vmem:[%s2214] sm:$0xf]
    %v2216 = vld [vmem:[%s2214 + $0x4] sm:$0xf]
    %v2217 = vld [vmem:[%s2214 + $0x8] sm:$0xf]
    %v2218 = vld [vmem:[%s2214 + $0xc] sm:$0xf]
    %v2219 = vlaneseq
    %v2220 = vshrl.u32 %v2219, 7
    %v2221 = vsub.s32 2, %v2220
    %v2222 = vrot.slane %v2085, %v2221
    %v2227 = vunpack.c.l.b16 %v2215
    %v2228 = vunpack.c.l.b16 %v2216
    %v2229 = vunpack.c.l.b16 %v2217
    %v2230 = vunpack.c.l.b16 %v2218
    %v2231 = vpack.c.b16 %v2228, %v2227
    %v2232 = vpack.c.b16 %v2230, %v2229
    %2235 = vmatprep.subr.bf16.mxu0 0
    %2236 = vmatpush1.bf16.msra.mxu0 %v2231
    %2237 = vmatprep.subr.bf16.mxu0 0
    %2238 = vmatpush1.bf16.msra.mxu0 %v2232
    %2239 = vmatprep.subr.bf16.mxu0 0
    %2240 = vmatpush1.bf16.msra.mxu0 0
    %2241 = vmatprep.subr.bf16.mxu0 0
    %2242 = vmatpush1.bf16.msra.mxu0 0
    %2243 = vmatprep.subr.bf16.mxu0 0
    %2244 = vmatpush1.bf16.msra.mxu0 0
    %2245 = vmatprep.subr.bf16.mxu0 0
    %2246 = vmatpush1.bf16.msra.mxu0 0
    %2247 = vmatprep.subr.bf16.mxu0 0
    %2248 = vmatpush1.bf16.msra.mxu0 0
    %2249 = vmatprep.subr.bf16.mxu0 0
    %2250 = vmatpush1.bf16.msra.mxu0 0
    %2251 = vmatprep.subr.bf16.mxu0 0
    %2252 = vmatpush1.bf16.msra.mxu0 0
    %2253 = vmatprep.subr.bf16.mxu0 0
    %2254 = vmatpush1.bf16.msra.mxu0 0
    %2255 = vmatprep.subr.bf16.mxu0 0
    %2256 = vmatpush1.bf16.msra.mxu0 0
    %2257 = vmatprep.subr.bf16.mxu0 0
    %2258 = vmatpush1.bf16.msra.mxu0 0
    %2259 = vmatprep.subr.bf16.mxu0 0
    %2260 = vmatpush1.bf16.msra.mxu0 0
    %2261 = vmatprep.subr.bf16.mxu0 0
    %2262 = vmatpush1.bf16.msra.mxu0 0
    %2263 = vmatprep.subr.bf16.mxu0 0
    %2264 = vmatpush1.bf16.msra.mxu0 0
    %2265 = vmatprep.subr.bf16.mxu0 0
    %2266 = vmatpush1.bf16.msra.mxu0 0
    %2267 = vmatprep.mubr.bf16.mxu0 0
    %2268 = vmatmul.mubr.bf16.gmra.mrb[0].mxu0 %v2109
    %v2269 = vpop.f32.mrb[0].mxu0
    %v2270 = vadd.f32 %v2222, %v2269
    %v2271 = vpop.f32.mrb[0].mxu0
    %v2272 = vpop.f32.mrb[0].mxu0
    %v2273 = vadd.f32 %v2222, %v2272
    %v2274 = vpop.f32.mrb[0].mxu0
    %2275 = vdwg.mxu0
    %v2276 = vpack.c.bf16 %v2146, %v2146
    %v2277 = vpack.c.bf16 %v2149, %v2149
    %v2278 = vpack.c.bf16 %v2208, %v2208
    %v2279 = vpack.c.bf16 %v2211, %v2211
    %v2281 = vsel %vm292, %v2276, 0
    %v2284 = vsel %vm292, %v2278, 0
    %2286 = vmatprep.subr.bf16.mxu0 0
    %2287 = vmatpush1.bf16.xpose.msra.mxu0 %v2284
    %2288 = vmatprep.subr.bf16.mxu0 0
    %2289 = vmatpush1.bf16.xpose.msra.mxu0 0
    %2290 = vmatprep.subr.bf16.mxu0 0
    %2291 = vmatpush1.bf16.xpose.msra.mxu0 0
    %2292 = vmatprep.subr.bf16.mxu0 0
    %2293 = vmatpush1.bf16.xpose.msra.mxu0 0
    %2294 = vmatprep.subr.bf16.mxu0 0
    %2295 = vmatpush1.bf16.xpose.msra.mxu0 0
    %2296 = vmatprep.subr.bf16.mxu0 0
    %2297 = vmatpush1.bf16.xpose.msra.mxu0 0
    %2298 = vmatprep.subr.bf16.mxu0 0
    %2299 = vmatpush1.bf16.xpose.msra.mxu0 0
    %2300 = vmatprep.subr.bf16.mxu0 0
    %2301 = vmatpush1.bf16.xpose.msra.mxu0 0
    %2302 = vmatprep.subr.bf16.mxu0 0
    %2303 = vmatpush1.bf16.xpose.msra.mxu0 0
    %2304 = vmatprep.subr.bf16.mxu0 0
    %2305 = vmatpush1.bf16.xpose.msra.mxu0 0
    %2306 = vmatprep.subr.bf16.mxu0 0
    %2307 = vmatpush1.bf16.xpose.msra.mxu0 0
    %2308 = vmatprep.subr.bf16.mxu0 0
    %2309 = vmatpush1.bf16.xpose.msra.mxu0 0
    %2310 = vmatprep.subr.bf16.mxu0 0
    %2311 = vmatpush1.bf16.xpose.msra.mxu0 0
    %2312 = vmatprep.subr.bf16.mxu0 0
    %2313 = vmatpush1.bf16.xpose.msra.mxu0 0
    %2314 = vmatprep.subr.bf16.mxu0 0
    %2315 = vmatpush1.bf16.xpose.msra.mxu0 0
    %2316 = vmatprep.subr.bf16.mxu0 0
    %2317 = vmatpush1.bf16.xpose.msra.mxu0 0
    %2318 = vmatprep.mubr.bf16.mxu0 0
    %2319 = vmatmul.mubr.bf16.gmra.mrb[0].mxu0 %v2281
    %v2320 = vpop.f32.mrb[0].mxu0
    %v2321 = vadd.f32 0.0, %v2320
    %v2322 = vpop.f32.mrb[0].mxu0
    %v2323 = vpop.f32.mrb[0].mxu0
    %v2324 = vpop.f32.mrb[0].mxu0
    %2325 = vdwg.mxu0
    %v2327 = vsel %vm292, %v2277, 0
    %v2330 = vsel %vm292, %v2279, 0
    %2332 = vmatprep.subr.bf16.mxu0 0
    %2333 = vmatpush1.bf16.xpose.msra.mxu0 %v2330
    %2334 = vmatprep.subr.bf16.mxu0 0
    %2335 = vmatpush1.bf16.xpose.msra.mxu0 0
    %2336 = vmatprep.subr.bf16.mxu0 0
    %2337 = vmatpush1.bf16.xpose.msra.mxu0 0
    %2338 = vmatprep.subr.bf16.mxu0 0
    %2339 = vmatpush1.bf16.xpose.msra.mxu0 0
    %2340 = vmatprep.subr.bf16.mxu0 0
    %2341 = vmatpush1.bf16.xpose.msra.mxu0 0
    %2342 = vmatprep.subr.bf16.mxu0 0
    %2343 = vmatpush1.bf16.xpose.msra.mxu0 0
    %2344 = vmatprep.subr.bf16.mxu0 0
    %2345 = vmatpush1.bf16.xpose.msra.mxu0 0
    %2346 = vmatprep.subr.bf16.mxu0 0
    %2347 = vmatpush1.bf16.xpose.msra.mxu0 0
    %2348 = vmatprep.subr.bf16.mxu0 0
    %2349 = vmatpush1.bf16.xpose.msra.mxu0 0
    %2350 = vmatprep.subr.bf16.mxu0 0
    %2351 = vmatpush1.bf16.xpose.msra.mxu0 0
    %2352 = vmatprep.subr.bf16.mxu0 0
    %2353 = vmatpush1.bf16.xpose.msra.mxu0 0
    %2354 = vmatprep.subr.bf16.mxu0 0
    %2355 = vmatpush1.bf16.xpose.msra.mxu0 0
    %2356 = vmatprep.subr.bf16.mxu0 0
    %2357 = vmatpush1.bf16.xpose.msra.mxu0 0
    %2358 = vmatprep.subr.bf16.mxu0 0
    %2359 = vmatpush1.bf16.xpose.msra.mxu0 0
    %2360 = vmatprep.subr.bf16.mxu0 0
    %2361 = vmatpush1.bf16.xpose.msra.mxu0 0
    %2362 = vmatprep.subr.bf16.mxu0 0
    %2363 = vmatpush1.bf16.xpose.msra.mxu0 0
    %2364 = vmatprep.mubr.bf16.mxu0 0
    %2365 = vmatmul.mubr.bf16.gmra.mrb[0].mxu0 %v2327
    %v2366 = vpop.f32.mrb[0].mxu0
    %v2367 = vadd.f32 0.0, %v2366
    %v2368 = vpop.f32.mrb[0].mxu0
    %v2369 = vpop.f32.mrb[0].mxu0
    %v2370 = vpop.f32.mrb[0].mxu0
    %2371 = vdwg.mxu0
    %v2372 = vmul.f32 %v2321, 0.35355338
    %v2373 = vmul.f32 %v2367, 0.35355338
    %v2374 = vadd.f32 %v2372, %v392
    %v2375 = vadd.f32 %v2373, %v396
    %v2376 = vsel %vm292, %v2374, -inf
    %2377 = vmax.xlane.f32.xlu0 %v2376
    %v2378 = vpop.xlane.xlu0 %2377
    %v2379 = vsel %vm292, %v2375, -inf
    %2380 = vmax.xlane.f32.xlu0 %v2379
    %v2381 = vpop.xlane.xlu0 %2380
    %v2382 = vsub.f32 %v2374, %v2378
    %v2383 = vsub.f32 %v2375, %v2381
    %v2384 = vmul.f32 %v2382, 1.442695
    %v2385 = vpow.pop %v2384
    %v2386 = vmul.f32 %v2383, 1.442695
    %v2387 = vpow.pop %v2386
    %v2388 = vsel %vm292, %v2385, 0.0
    %2389 = vadd.xlane.f32.xlu0 %v2388
    %v2390 = vpop.xlane.xlu0 %2389
    %v2391 = vsel %vm292, %v2387, 0.0
    %2392 = vadd.xlane.f32.xlu0 %v2391
    %v2393 = vpop.xlane.xlu0 %2392
    %v2394 = vrcp.pop %v2390
    %v2395 = vrcp.pop %v2393
    %v2396 = vmul.f32 %v2385, %v2394
    %v2397 = vmul.f32 %v2387, %v2395
    %v2398 = vpack.c.bf16 %v2396, %v2396
    %v2399 = vpack.c.bf16 %v2397, %v2397
    %v2400 = vpack.c.bf16 %v2270, %v2270
    %v2401 = vpack.c.bf16 %v2273, %v2273
    %v2403 = vsel %vm292, %v2398, 0
    %v2406 = vsel %vm430, %v2400, 0
    %2408 = vmatprep.subr.bf16.mxu0 0
    %2409 = vmatpush1.bf16.msra.mxu0 %v2406
    %2410 = vmatprep.subr.bf16.mxu0 0
    %2411 = vmatpush1.bf16.msra.mxu0 0
    %2412 = vmatprep.subr.bf16.mxu0 0
    %2413 = vmatpush1.bf16.msra.mxu0 0
    %2414 = vmatprep.subr.bf16.mxu0 0
    %2415 = vmatpush1.bf16.msra.mxu0 0
    %2416 = vmatprep.subr.bf16.mxu0 0
    %2417 = vmatpush1.bf16.msra.mxu0 0
    %2418 = vmatprep.subr.bf16.mxu0 0
    %2419 = vmatpush1.bf16.msra.mxu0 0
    %2420 = vmatprep.subr.bf16.mxu0 0
    %2421 = vmatpush1.bf16.msra.mxu0 0
    %2422 = vmatprep.subr.bf16.mxu0 0
    %2423 = vmatpush1.bf16.msra.mxu0 0
    %2424 = vmatprep.subr.bf16.mxu0 0
    %2425 = vmatpush1.bf16.msra.mxu0 0
    %2426 = vmatprep.subr.bf16.mxu0 0
    %2427 = vmatpush1.bf16.msra.mxu0 0
    %2428 = vmatprep.subr.bf16.mxu0 0
    %2429 = vmatpush1.bf16.msra.mxu0 0
    %2430 = vmatprep.subr.bf16.mxu0 0
    %2431 = vmatpush1.bf16.msra.mxu0 0
    %2432 = vmatprep.subr.bf16.mxu0 0
    %2433 = vmatpush1.bf16.msra.mxu0 0
    %2434 = vmatprep.subr.bf16.mxu0 0
    %2435 = vmatpush1.bf16.msra.mxu0 0
    %2436 = vmatprep.subr.bf16.mxu0 0
    %2437 = vmatpush1.bf16.msra.mxu0 0
    %2438 = vmatprep.subr.bf16.mxu0 0
    %2439 = vmatpush1.bf16.msra.mxu0 0
    %2440 = vmatprep.mubr.bf16.mxu0 0
    %2441 = vmatmul.mubr.bf16.gmra.mrb[0].mxu0 %v2403
    %v2442 = vpop.f32.mrb[0].mxu0
    %v2443 = vadd.f32 0.0, %v2442
    %v2444 = vpop.f32.mrb[0].mxu0
    %v2445 = vpop.f32.mrb[0].mxu0
    %v2446 = vpop.f32.mrb[0].mxu0
    %2447 = vdwg.mxu0
    %v2449 = vsel %vm292, %v2399, 0
    %v2452 = vsel %vm430, %v2401, 0
    %2454 = vmatprep.subr.bf16.mxu0 0
    %2455 = vmatpush1.bf16.msra.mxu0 %v2452
    %2456 = vmatprep.subr.bf16.mxu0 0
    %2457 = vmatpush1.bf16.msra.mxu0 0
    %2458 = vmatprep.subr.bf16.mxu0 0
    %2459 = vmatpush1.bf16.msra.mxu0 0
    %2460 = vmatprep.subr.bf16.mxu0 0
    %2461 = vmatpush1.bf16.msra.mxu0 0
    %2462 = vmatprep.subr.bf16.mxu0 0
    %2463 = vmatpush1.bf16.msra.mxu0 0
    %2464 = vmatprep.subr.bf16.mxu0 0
    %2465 = vmatpush1.bf16.msra.mxu0 0
    %2466 = vmatprep.subr.bf16.mxu0 0
    %2467 = vmatpush1.bf16.msra.mxu0 0
    %2468 = vmatprep.subr.bf16.mxu0 0
    %2469 = vmatpush1.bf16.msra.mxu0 0
    %2470 = vmatprep.subr.bf16.mxu0 0
    %2471 = vmatpush1.bf16.msra.mxu0 0
    %2472 = vmatprep.subr.bf16.mxu0 0
    %2473 = vmatpush1.bf16.msra.mxu0 0
    %2474 = vmatprep.subr.bf16.mxu0 0
    %2475 = vmatpush1.bf16.msra.mxu0 0
    %2476 = vmatprep.subr.bf16.mxu0 0
    %2477 = vmatpush1.bf16.msra.mxu0 0
    %2478 = vmatprep.subr.bf16.mxu0 0
    %2479 = vmatpush1.bf16.msra.mxu0 0
    %2480 = vmatprep.subr.bf16.mxu0 0
    %2481 = vmatpush1.bf16.msra.mxu0 0
    %2482 = vmatprep.subr.bf16.mxu0 0
    %2483 = vmatpush1.bf16.msra.mxu0 0
    %2484 = vmatprep.subr.bf16.mxu0 0
    %2485 = vmatpush1.bf16.msra.mxu0 0
    %2486 = vmatprep.mubr.bf16.mxu0 0
    %2487 = vmatmul.mubr.bf16.gmra.mrb[0].mxu0 %v2449
    %v2488 = vpop.f32.mrb[0].mxu0
    %v2489 = vadd.f32 0.0, %v2488
    %v2490 = vpop.f32.mrb[0].mxu0
    %v2491 = vpop.f32.mrb[0].mxu0
    %v2492 = vpop.f32.mrb[0].mxu0
    %2493 = vdwg.mxu0
    %s2494 = scalar_lea.vmem %s6, 20
    %v2495 = vld [vmem:[%s2494] sm:$0x7]
    %s2496 = scalar_lea.vmem %s3, 80
    %v2497 = vld [vmem:[%s2496] sm:$0xf]
    %v2498 = vld [vmem:[%s2496 + $0x4] sm:$0xf]
    %v2499 = vld [vmem:[%s2496 + $0x8] sm:$0xf]
    %v2500 = vld [vmem:[%s2496 + $0xc] sm:$0xf]
    %v2501 = vlaneseq
    %v2502 = vshrl.u32 %v2501, 7
    %v2503 = vsub.s32 0, %v2502
    %v2504 = vrot.slane %v2495, %v2503
    %v2509 = vunpack.c.l.b16 %v2497
    %v2510 = vunpack.c.l.b16 %v2498
    %v2511 = vunpack.c.l.b16 %v2499
    %v2512 = vunpack.c.l.b16 %v2500
    %v2513 = vpack.c.b16 %v2510, %v2509
    %v2514 = vpack.c.b16 %v2512, %v2511
    %2517 = vmatprep.subr.bf16.mxu0 0
    %2518 = vmatpush1.bf16.msra.mxu0 %v2513
    %2519 = vmatprep.subr.bf16.mxu0 0
    %2520 = vmatpush1.bf16.msra.mxu0 %v2514
    %2521 = vmatprep.subr.bf16.mxu0 0
    %2522 = vmatpush1.bf16.msra.mxu0 0
    %2523 = vmatprep.subr.bf16.mxu0 0
    %2524 = vmatpush1.bf16.msra.mxu0 0
    %2525 = vmatprep.subr.bf16.mxu0 0
    %2526 = vmatpush1.bf16.msra.mxu0 0
    %2527 = vmatprep.subr.bf16.mxu0 0
    %2528 = vmatpush1.bf16.msra.mxu0 0
    %2529 = vmatprep.subr.bf16.mxu0 0
    %2530 = vmatpush1.bf16.msra.mxu0 0
    %2531 = vmatprep.subr.bf16.mxu0 0
    %2532 = vmatpush1.bf16.msra.mxu0 0
    %2533 = vmatprep.subr.bf16.mxu0 0
    %2534 = vmatpush1.bf16.msra.mxu0 0
    %2535 = vmatprep.subr.bf16.mxu0 0
    %2536 = vmatpush1.bf16.msra.mxu0 0
    %2537 = vmatprep.subr.bf16.mxu0 0
    %2538 = vmatpush1.bf16.msra.mxu0 0
    %2539 = vmatprep.subr.bf16.mxu0 0
    %2540 = vmatpush1.bf16.msra.mxu0 0
    %2541 = vmatprep.subr.bf16.mxu0 0
    %2542 = vmatpush1.bf16.msra.mxu0 0
    %2543 = vmatprep.subr.bf16.mxu0 0
    %2544 = vmatpush1.bf16.msra.mxu0 0
    %2545 = vmatprep.subr.bf16.mxu0 0
    %2546 = vmatpush1.bf16.msra.mxu0 0
    %2547 = vmatprep.subr.bf16.mxu0 0
    %2548 = vmatpush1.bf16.msra.mxu0 0
    %2549 = vmatprep.mubr.bf16.mxu0 0
    %2550 = vmatmul.mubr.bf16.gmra.mrb[0].mxu0 %v2109
    %v2551 = vpop.f32.mrb[0].mxu0
    %v2552 = vadd.f32 %v2504, %v2551
    %v2553 = vpop.f32.mrb[0].mxu0
    %v2554 = vpop.f32.mrb[0].mxu0
    %v2555 = vadd.f32 %v2504, %v2554
    %v2556 = vpop.f32.mrb[0].mxu0
    %2557 = vdwg.mxu0
    %s2558 = scalar_lea.vmem %s4, 80
    %v2559 = vld [vmem:[%s2558] sm:$0xf]
    %v2560 = vld [vmem:[%s2558 + $0x4] sm:$0xf]
    %v2561 = vld [vmem:[%s2558 + $0x8] sm:$0xf]
    %v2562 = vld [vmem:[%s2558 + $0xc] sm:$0xf]
    %v2563 = vlaneseq
    %v2564 = vshrl.u32 %v2563, 7
    %v2565 = vsub.s32 1, %v2564
    %v2566 = vrot.slane %v2495, %v2565
    %v2571 = vunpack.c.l.b16 %v2559
    %v2572 = vunpack.c.l.b16 %v2560
    %v2573 = vunpack.c.l.b16 %v2561
    %v2574 = vunpack.c.l.b16 %v2562
    %v2575 = vpack.c.b16 %v2572, %v2571
    %v2576 = vpack.c.b16 %v2574, %v2573
    %2579 = vmatprep.subr.bf16.mxu0 0
    %2580 = vmatpush1.bf16.msra.mxu0 %v2575
    %2581 = vmatprep.subr.bf16.mxu0 0
    %2582 = vmatpush1.bf16.msra.mxu0 %v2576
    %2583 = vmatprep.subr.bf16.mxu0 0
    %2584 = vmatpush1.bf16.msra.mxu0 0
    %2585 = vmatprep.subr.bf16.mxu0 0
    %2586 = vmatpush1.bf16.msra.mxu0 0
    %2587 = vmatprep.subr.bf16.mxu0 0
    %2588 = vmatpush1.bf16.msra.mxu0 0
    %2589 = vmatprep.subr.bf16.mxu0 0
    %2590 = vmatpush1.bf16.msra.mxu0 0
    %2591 = vmatprep.subr.bf16.mxu0 0
    %2592 = vmatpush1.bf16.msra.mxu0 0
    %2593 = vmatprep.subr.bf16.mxu0 0
    %2594 = vmatpush1.bf16.msra.mxu0 0
    %2595 = vmatprep.subr.bf16.mxu0 0
    %2596 = vmatpush1.bf16.msra.mxu0 0
    %2597 = vmatprep.subr.bf16.mxu0 0
    %2598 = vmatpush1.bf16.msra.mxu0 0
    %2599 = vmatprep.subr.bf16.mxu0 0
    %2600 = vmatpush1.bf16.msra.mxu0 0
    %2601 = vmatprep.subr.bf16.mxu0 0
    %2602 = vmatpush1.bf16.msra.mxu0 0
    %2603 = vmatprep.subr.bf16.mxu0 0
    %2604 = vmatpush1.bf16.msra.mxu0 0
    %2605 = vmatprep.subr.bf16.mxu0 0
    %2606 = vmatpush1.bf16.msra.mxu0 0
    %2607 = vmatprep.subr.bf16.mxu0 0
    %2608 = vmatpush1.bf16.msra.mxu0 0
    %2609 = vmatprep.subr.bf16.mxu0 0
    %2610 = vmatpush1.bf16.msra.mxu0 0
    %2611 = vmatprep.mubr.bf16.mxu0 0
    %2612 = vmatmul.mubr.bf16.gmra.mrb[0].mxu0 %v2109
    %v2613 = vpop.f32.mrb[0].mxu0
    %v2614 = vadd.f32 %v2566, %v2613
    %v2615 = vpop.f32.mrb[0].mxu0
    %v2616 = vpop.f32.mrb[0].mxu0
    %v2617 = vadd.f32 %v2566, %v2616
    %v2618 = vpop.f32.mrb[0].mxu0
    %2619 = vdwg.mxu0
    %s2620 = scalar_lea.vmem %s5, 80
    %v2621 = vld [vmem:[%s2620] sm:$0xf]
    %v2622 = vld [vmem:[%s2620 + $0x4] sm:$0xf]
    %v2623 = vld [vmem:[%s2620 + $0x8] sm:$0xf]
    %v2624 = vld [vmem:[%s2620 + $0xc] sm:$0xf]
    %v2625 = vlaneseq
    %v2626 = vshrl.u32 %v2625, 7
    %v2627 = vsub.s32 2, %v2626
    %v2628 = vrot.slane %v2495, %v2627
    %v2633 = vunpack.c.l.b16 %v2621
    %v2634 = vunpack.c.l.b16 %v2622
    %v2635 = vunpack.c.l.b16 %v2623
    %v2636 = vunpack.c.l.b16 %v2624
    %v2637 = vpack.c.b16 %v2634, %v2633
    %v2638 = vpack.c.b16 %v2636, %v2635
    %2641 = vmatprep.subr.bf16.mxu0 0
    %2642 = vmatpush1.bf16.msra.mxu0 %v2637
    %2643 = vmatprep.subr.bf16.mxu0 0
    %2644 = vmatpush1.bf16.msra.mxu0 %v2638
    %2645 = vmatprep.subr.bf16.mxu0 0
    %2646 = vmatpush1.bf16.msra.mxu0 0
    %2647 = vmatprep.subr.bf16.mxu0 0
    %2648 = vmatpush1.bf16.msra.mxu0 0
    %2649 = vmatprep.subr.bf16.mxu0 0
    %2650 = vmatpush1.bf16.msra.mxu0 0
    %2651 = vmatprep.subr.bf16.mxu0 0
    %2652 = vmatpush1.bf16.msra.mxu0 0
    %2653 = vmatprep.subr.bf16.mxu0 0
    %2654 = vmatpush1.bf16.msra.mxu0 0
    %2655 = vmatprep.subr.bf16.mxu0 0
    %2656 = vmatpush1.bf16.msra.mxu0 0
    %2657 = vmatprep.subr.bf16.mxu0 0
    %2658 = vmatpush1.bf16.msra.mxu0 0
    %2659 = vmatprep.subr.bf16.mxu0 0
    %2660 = vmatpush1.bf16.msra.mxu0 0
    %2661 = vmatprep.subr.bf16.mxu0 0
    %2662 = vmatpush1.bf16.msra.mxu0 0
    %2663 = vmatprep.subr.bf16.mxu0 0
    %2664 = vmatpush1.bf16.msra.mxu0 0
    %2665 = vmatprep.subr.bf16.mxu0 0
    %2666 = vmatpush1.bf16.msra.mxu0 0
    %2667 = vmatprep.subr.bf16.mxu0 0
    %2668 = vmatpush1.bf16.msra.mxu0 0
    %2669 = vmatprep.subr.bf16.mxu0 0
    %2670 = vmatpush1.bf16.msra.mxu0 0
    %2671 = vmatprep.subr.bf16.mxu0 0
    %2672 = vmatpush1.bf16.msra.mxu0 0
    %2673 = vmatprep.mubr.bf16.mxu0 0
    %2674 = vmatmul.mubr.bf16.gmra.mrb[0].mxu0 %v2109
    %v2675 = vpop.f32.mrb[0].mxu0
    %v2676 = vadd.f32 %v2628, %v2675
    %v2677 = vpop.f32.mrb[0].mxu0
    %v2678 = vpop.f32.mrb[0].mxu0
    %v2679 = vadd.f32 %v2628, %v2678
    %v2680 = vpop.f32.mrb[0].mxu0
    %2681 = vdwg.mxu0
    %v2682 = vpack.c.bf16 %v2552, %v2552
    %v2683 = vpack.c.bf16 %v2555, %v2555
    %v2684 = vpack.c.bf16 %v2614, %v2614
    %v2685 = vpack.c.bf16 %v2617, %v2617
    %v2687 = vsel %vm292, %v2682, 0
    %v2690 = vsel %vm292, %v2684, 0
    %2692 = vmatprep.subr.bf16.mxu0 0
    %2693 = vmatpush1.bf16.xpose.msra.mxu0 %v2690
    %2694 = vmatprep.subr.bf16.mxu0 0
    %2695 = vmatpush1.bf16.xpose.msra.mxu0 0
    %2696 = vmatprep.subr.bf16.mxu0 0
    %2697 = vmatpush1.bf16.xpose.msra.mxu0 0
    %2698 = vmatprep.subr.bf16.mxu0 0
    %2699 = vmatpush1.bf16.xpose.msra.mxu0 0
    %2700 = vmatprep.subr.bf16.mxu0 0
    %2701 = vmatpush1.bf16.xpose.msra.mxu0 0
    %2702 = vmatprep.subr.bf16.mxu0 0
    %2703 = vmatpush1.bf16.xpose.msra.mxu0 0
    %2704 = vmatprep.subr.bf16.mxu0 0
    %2705 = vmatpush1.bf16.xpose.msra.mxu0 0
    %2706 = vmatprep.subr.bf16.mxu0 0
    %2707 = vmatpush1.bf16.xpose.msra.mxu0 0
    %2708 = vmatprep.subr.bf16.mxu0 0
    %2709 = vmatpush1.bf16.xpose.msra.mxu0 0
    %2710 = vmatprep.subr.bf16.mxu0 0
    %2711 = vmatpush1.bf16.xpose.msra.mxu0 0
    %2712 = vmatprep.subr.bf16.mxu0 0
    %2713 = vmatpush1.bf16.xpose.msra.mxu0 0
    %2714 = vmatprep.subr.bf16.mxu0 0
    %2715 = vmatpush1.bf16.xpose.msra.mxu0 0
    %2716 = vmatprep.subr.bf16.mxu0 0
    %2717 = vmatpush1.bf16.xpose.msra.mxu0 0
    %2718 = vmatprep.subr.bf16.mxu0 0
    %2719 = vmatpush1.bf16.xpose.msra.mxu0 0
    %2720 = vmatprep.subr.bf16.mxu0 0
    %2721 = vmatpush1.bf16.xpose.msra.mxu0 0
    %2722 = vmatprep.subr.bf16.mxu0 0
    %2723 = vmatpush1.bf16.xpose.msra.mxu0 0
    %2724 = vmatprep.mubr.bf16.mxu0 0
    %2725 = vmatmul.mubr.bf16.gmra.mrb[0].mxu0 %v2687
    %v2726 = vpop.f32.mrb[0].mxu0
    %v2727 = vadd.f32 0.0, %v2726
    %v2728 = vpop.f32.mrb[0].mxu0
    %v2729 = vpop.f32.mrb[0].mxu0
    %v2730 = vpop.f32.mrb[0].mxu0
    %2731 = vdwg.mxu0
    %v2733 = vsel %vm292, %v2683, 0
    %v2736 = vsel %vm292, %v2685, 0
    %2738 = vmatprep.subr.bf16.mxu0 0
    %2739 = vmatpush1.bf16.xpose.msra.mxu0 %v2736
    %2740 = vmatprep.subr.bf16.mxu0 0
    %2741 = vmatpush1.bf16.xpose.msra.mxu0 0
    %2742 = vmatprep.subr.bf16.mxu0 0
    %2743 = vmatpush1.bf16.xpose.msra.mxu0 0
    %2744 = vmatprep.subr.bf16.mxu0 0
    %2745 = vmatpush1.bf16.xpose.msra.mxu0 0
    %2746 = vmatprep.subr.bf16.mxu0 0
    %2747 = vmatpush1.bf16.xpose.msra.mxu0 0
    %2748 = vmatprep.subr.bf16.mxu0 0
    %2749 = vmatpush1.bf16.xpose.msra.mxu0 0
    %2750 = vmatprep.subr.bf16.mxu0 0
    %2751 = vmatpush1.bf16.xpose.msra.mxu0 0
    %2752 = vmatprep.subr.bf16.mxu0 0
    %2753 = vmatpush1.bf16.xpose.msra.mxu0 0
    %2754 = vmatprep.subr.bf16.mxu0 0
    %2755 = vmatpush1.bf16.xpose.msra.mxu0 0
    %2756 = vmatprep.subr.bf16.mxu0 0
    %2757 = vmatpush1.bf16.xpose.msra.mxu0 0
    %2758 = vmatprep.subr.bf16.mxu0 0
    %2759 = vmatpush1.bf16.xpose.msra.mxu0 0
    %2760 = vmatprep.subr.bf16.mxu0 0
    %2761 = vmatpush1.bf16.xpose.msra.mxu0 0
    %2762 = vmatprep.subr.bf16.mxu0 0
    %2763 = vmatpush1.bf16.xpose.msra.mxu0 0
    %2764 = vmatprep.subr.bf16.mxu0 0
    %2765 = vmatpush1.bf16.xpose.msra.mxu0 0
    %2766 = vmatprep.subr.bf16.mxu0 0
    %2767 = vmatpush1.bf16.xpose.msra.mxu0 0
    %2768 = vmatprep.subr.bf16.mxu0 0
    %2769 = vmatpush1.bf16.xpose.msra.mxu0 0
    %2770 = vmatprep.mubr.bf16.mxu0 0
    %2771 = vmatmul.mubr.bf16.gmra.mrb[0].mxu0 %v2733
    %v2772 = vpop.f32.mrb[0].mxu0
    %v2773 = vadd.f32 0.0, %v2772
    %v2774 = vpop.f32.mrb[0].mxu0
    %v2775 = vpop.f32.mrb[0].mxu0
    %v2776 = vpop.f32.mrb[0].mxu0
    %2777 = vdwg.mxu0
    %v2778 = vmul.f32 %v2727, 0.35355338
    %v2779 = vmul.f32 %v2773, 0.35355338
    %v2780 = vadd.f32 %v2778, %v392
    %v2781 = vadd.f32 %v2779, %v396
    %v2782 = vsel %vm292, %v2780, -inf
    %2783 = vmax.xlane.f32.xlu0 %v2782
    %v2784 = vpop.xlane.xlu0 %2783
    %v2785 = vsel %vm292, %v2781, -inf
    %2786 = vmax.xlane.f32.xlu0 %v2785
    %v2787 = vpop.xlane.xlu0 %2786
    %v2788 = vsub.f32 %v2780, %v2784
    %v2789 = vsub.f32 %v2781, %v2787
    %v2790 = vmul.f32 %v2788, 1.442695
    %v2791 = vpow.pop %v2790
    %v2792 = vmul.f32 %v2789, 1.442695
    %v2793 = vpow.pop %v2792
    %v2794 = vsel %vm292, %v2791, 0.0
    %2795 = vadd.xlane.f32.xlu0 %v2794
    %v2796 = vpop.xlane.xlu0 %2795
    %v2797 = vsel %vm292, %v2793, 0.0
    %2798 = vadd.xlane.f32.xlu0 %v2797
    %v2799 = vpop.xlane.xlu0 %2798
    %v2800 = vrcp.pop %v2796
    %v2801 = vrcp.pop %v2799
    %v2802 = vmul.f32 %v2791, %v2800
    %v2803 = vmul.f32 %v2793, %v2801
    %v2804 = vpack.c.bf16 %v2802, %v2802
    %v2805 = vpack.c.bf16 %v2803, %v2803
    %v2806 = vpack.c.bf16 %v2676, %v2676
    %v2807 = vpack.c.bf16 %v2679, %v2679
    %v2809 = vsel %vm292, %v2804, 0
    %v2812 = vsel %vm430, %v2806, 0
    %2814 = vmatprep.subr.bf16.mxu0 0
    %2815 = vmatpush1.bf16.msra.mxu0 %v2812
    %2816 = vmatprep.subr.bf16.mxu0 0
    %2817 = vmatpush1.bf16.msra.mxu0 0
    %2818 = vmatprep.subr.bf16.mxu0 0
    %2819 = vmatpush1.bf16.msra.mxu0 0
    %2820 = vmatprep.subr.bf16.mxu0 0
    %2821 = vmatpush1.bf16.msra.mxu0 0
    %2822 = vmatprep.subr.bf16.mxu0 0
    %2823 = vmatpush1.bf16.msra.mxu0 0
    %2824 = vmatprep.subr.bf16.mxu0 0
    %2825 = vmatpush1.bf16.msra.mxu0 0
    %2826 = vmatprep.subr.bf16.mxu0 0
    %2827 = vmatpush1.bf16.msra.mxu0 0
    %2828 = vmatprep.subr.bf16.mxu0 0
    %2829 = vmatpush1.bf16.msra.mxu0 0
    %2830 = vmatprep.subr.bf16.mxu0 0
    %2831 = vmatpush1.bf16.msra.mxu0 0
    %2832 = vmatprep.subr.bf16.mxu0 0
    %2833 = vmatpush1.bf16.msra.mxu0 0
    %2834 = vmatprep.subr.bf16.mxu0 0
    %2835 = vmatpush1.bf16.msra.mxu0 0
    %2836 = vmatprep.subr.bf16.mxu0 0
    %2837 = vmatpush1.bf16.msra.mxu0 0
    %2838 = vmatprep.subr.bf16.mxu0 0
    %2839 = vmatpush1.bf16.msra.mxu0 0
    %2840 = vmatprep.subr.bf16.mxu0 0
    %2841 = vmatpush1.bf16.msra.mxu0 0
    %2842 = vmatprep.subr.bf16.mxu0 0
    %2843 = vmatpush1.bf16.msra.mxu0 0
    %2844 = vmatprep.subr.bf16.mxu0 0
    %2845 = vmatpush1.bf16.msra.mxu0 0
    %2846 = vmatprep.mubr.bf16.mxu0 0
    %2847 = vmatmul.mubr.bf16.gmra.mrb[0].mxu0 %v2809
    %v2848 = vpop.f32.mrb[0].mxu0
    %v2849 = vadd.f32 0.0, %v2848
    %v2850 = vpop.f32.mrb[0].mxu0
    %v2851 = vpop.f32.mrb[0].mxu0
    %v2852 = vpop.f32.mrb[0].mxu0
    %2853 = vdwg.mxu0
    %v2855 = vsel %vm292, %v2805, 0
    %v2858 = vsel %vm430, %v2807, 0
    %2860 = vmatprep.subr.bf16.mxu0 0
    %2861 = vmatpush1.bf16.msra.mxu0 %v2858
    %2862 = vmatprep.subr.bf16.mxu0 0
    %2863 = vmatpush1.bf16.msra.mxu0 0
    %2864 = vmatprep.subr.bf16.mxu0 0
    %2865 = vmatpush1.bf16.msra.mxu0 0
    %2866 = vmatprep.subr.bf16.mxu0 0
    %2867 = vmatpush1.bf16.msra.mxu0 0
    %2868 = vmatprep.subr.bf16.mxu0 0
    %2869 = vmatpush1.bf16.msra.mxu0 0
    %2870 = vmatprep.subr.bf16.mxu0 0
    %2871 = vmatpush1.bf16.msra.mxu0 0
    %2872 = vmatprep.subr.bf16.mxu0 0
    %2873 = vmatpush1.bf16.msra.mxu0 0
    %2874 = vmatprep.subr.bf16.mxu0 0
    %2875 = vmatpush1.bf16.msra.mxu0 0
    %2876 = vmatprep.subr.bf16.mxu0 0
    %2877 = vmatpush1.bf16.msra.mxu0 0
    %2878 = vmatprep.subr.bf16.mxu0 0
    %2879 = vmatpush1.bf16.msra.mxu0 0
    %2880 = vmatprep.subr.bf16.mxu0 0
    %2881 = vmatpush1.bf16.msra.mxu0 0
    %2882 = vmatprep.subr.bf16.mxu0 0
    %2883 = vmatpush1.bf16.msra.mxu0 0
    %2884 = vmatprep.subr.bf16.mxu0 0
    %2885 = vmatpush1.bf16.msra.mxu0 0
    %2886 = vmatprep.subr.bf16.mxu0 0
    %2887 = vmatpush1.bf16.msra.mxu0 0
    %2888 = vmatprep.subr.bf16.mxu0 0
    %2889 = vmatpush1.bf16.msra.mxu0 0
    %2890 = vmatprep.subr.bf16.mxu0 0
    %2891 = vmatpush1.bf16.msra.mxu0 0
    %2892 = vmatprep.mubr.bf16.mxu0 0
    %2893 = vmatmul.mubr.bf16.gmra.mrb[0].mxu0 %v2855
    %v2894 = vpop.f32.mrb[0].mxu0
    %v2895 = vadd.f32 0.0, %v2894
    %v2896 = vpop.f32.mrb[0].mxu0
    %v2897 = vpop.f32.mrb[0].mxu0
    %v2898 = vpop.f32.mrb[0].mxu0
    %2899 = vdwg.mxu0
    %s2900 = scalar_lea.vmem %s6, 24
    %v2901 = vld [vmem:[%s2900] sm:$0x7]
    %s2902 = scalar_lea.vmem %s3, 96
    %v2903 = vld [vmem:[%s2902] sm:$0xf]
    %v2904 = vld [vmem:[%s2902 + $0x4] sm:$0xf]
    %v2905 = vld [vmem:[%s2902 + $0x8] sm:$0xf]
    %v2906 = vld [vmem:[%s2902 + $0xc] sm:$0xf]
    %v2907 = vlaneseq
    %v2908 = vshrl.u32 %v2907, 7
    %v2909 = vsub.s32 0, %v2908
    %v2910 = vrot.slane %v2901, %v2909
    %v2915 = vunpack.c.l.b16 %v2903
    %v2916 = vunpack.c.l.b16 %v2904
    %v2917 = vunpack.c.l.b16 %v2905
    %v2918 = vunpack.c.l.b16 %v2906
    %v2919 = vpack.c.b16 %v2916, %v2915
    %v2920 = vpack.c.b16 %v2918, %v2917
    %2923 = vmatprep.subr.bf16.mxu0 0
    %2924 = vmatpush1.bf16.msra.mxu0 %v2919
    %2925 = vmatprep.subr.bf16.mxu0 0
    %2926 = vmatpush1.bf16.msra.mxu0 %v2920
    %2927 = vmatprep.subr.bf16.mxu0 0
    %2928 = vmatpush1.bf16.msra.mxu0 0
    %2929 = vmatprep.subr.bf16.mxu0 0
    %2930 = vmatpush1.bf16.msra.mxu0 0
    %2931 = vmatprep.subr.bf16.mxu0 0
    %2932 = vmatpush1.bf16.msra.mxu0 0
    %2933 = vmatprep.subr.bf16.mxu0 0
    %2934 = vmatpush1.bf16.msra.mxu0 0
    %2935 = vmatprep.subr.bf16.mxu0 0
    %2936 = vmatpush1.bf16.msra.mxu0 0
    %2937 = vmatprep.subr.bf16.mxu0 0
    %2938 = vmatpush1.bf16.msra.mxu0 0
    %2939 = vmatprep.subr.bf16.mxu0 0
    %2940 = vmatpush1.bf16.msra.mxu0 0
    %2941 = vmatprep.subr.bf16.mxu0 0
    %2942 = vmatpush1.bf16.msra.mxu0 0
    %2943 = vmatprep.subr.bf16.mxu0 0
    %2944 = vmatpush1.bf16.msra.mxu0 0
    %2945 = vmatprep.subr.bf16.mxu0 0
    %2946 = vmatpush1.bf16.msra.mxu0 0
    %2947 = vmatprep.subr.bf16.mxu0 0
    %2948 = vmatpush1.bf16.msra.mxu0 0
    %2949 = vmatprep.subr.bf16.mxu0 0
    %2950 = vmatpush1.bf16.msra.mxu0 0
    %2951 = vmatprep.subr.bf16.mxu0 0
    %2952 = vmatpush1.bf16.msra.mxu0 0
    %2953 = vmatprep.subr.bf16.mxu0 0
    %2954 = vmatpush1.bf16.msra.mxu0 0
    %2955 = vmatprep.mubr.bf16.mxu0 0
    %2956 = vmatmul.mubr.bf16.gmra.mrb[0].mxu0 %v2109
    %v2957 = vpop.f32.mrb[0].mxu0
    %v2958 = vadd.f32 %v2910, %v2957
    %v2959 = vpop.f32.mrb[0].mxu0
    %v2960 = vpop.f32.mrb[0].mxu0
    %v2961 = vadd.f32 %v2910, %v2960
    %v2962 = vpop.f32.mrb[0].mxu0
    %2963 = vdwg.mxu0
    %s2964 = scalar_lea.vmem %s4, 96
    %v2965 = vld [vmem:[%s2964] sm:$0xf]
    %v2966 = vld [vmem:[%s2964 + $0x4] sm:$0xf]
    %v2967 = vld [vmem:[%s2964 + $0x8] sm:$0xf]
    %v2968 = vld [vmem:[%s2964 + $0xc] sm:$0xf]
    %v2969 = vlaneseq
    %v2970 = vshrl.u32 %v2969, 7
    %v2971 = vsub.s32 1, %v2970
    %v2972 = vrot.slane %v2901, %v2971
    %v2977 = vunpack.c.l.b16 %v2965
    %v2978 = vunpack.c.l.b16 %v2966
    %v2979 = vunpack.c.l.b16 %v2967
    %v2980 = vunpack.c.l.b16 %v2968
    %v2981 = vpack.c.b16 %v2978, %v2977
    %v2982 = vpack.c.b16 %v2980, %v2979
    %2985 = vmatprep.subr.bf16.mxu0 0
    %2986 = vmatpush1.bf16.msra.mxu0 %v2981
    %2987 = vmatprep.subr.bf16.mxu0 0
    %2988 = vmatpush1.bf16.msra.mxu0 %v2982
    %2989 = vmatprep.subr.bf16.mxu0 0
    %2990 = vmatpush1.bf16.msra.mxu0 0
    %2991 = vmatprep.subr.bf16.mxu0 0
    %2992 = vmatpush1.bf16.msra.mxu0 0
    %2993 = vmatprep.subr.bf16.mxu0 0
    %2994 = vmatpush1.bf16.msra.mxu0 0
    %2995 = vmatprep.subr.bf16.mxu0 0
    %2996 = vmatpush1.bf16.msra.mxu0 0
    %2997 = vmatprep.subr.bf16.mxu0 0
    %2998 = vmatpush1.bf16.msra.mxu0 0
    %2999 = vmatprep.subr.bf16.mxu0 0
    %3000 = vmatpush1.bf16.msra.mxu0 0
    %3001 = vmatprep.subr.bf16.mxu0 0
    %3002 = vmatpush1.bf16.msra.mxu0 0
    %3003 = vmatprep.subr.bf16.mxu0 0
    %3004 = vmatpush1.bf16.msra.mxu0 0
    %3005 = vmatprep.subr.bf16.mxu0 0
    %3006 = vmatpush1.bf16.msra.mxu0 0
    %3007 = vmatprep.subr.bf16.mxu0 0
    %3008 = vmatpush1.bf16.msra.mxu0 0
    %3009 = vmatprep.subr.bf16.mxu0 0
    %3010 = vmatpush1.bf16.msra.mxu0 0
    %3011 = vmatprep.subr.bf16.mxu0 0
    %3012 = vmatpush1.bf16.msra.mxu0 0
    %3013 = vmatprep.subr.bf16.mxu0 0
    %3014 = vmatpush1.bf16.msra.mxu0 0
    %3015 = vmatprep.subr.bf16.mxu0 0
    %3016 = vmatpush1.bf16.msra.mxu0 0
    %3017 = vmatprep.mubr.bf16.mxu0 0
    %3018 = vmatmul.mubr.bf16.gmra.mrb[0].mxu0 %v2109
    %v3019 = vpop.f32.mrb[0].mxu0
    %v3020 = vadd.f32 %v2972, %v3019
    %v3021 = vpop.f32.mrb[0].mxu0
    %v3022 = vpop.f32.mrb[0].mxu0
    %v3023 = vadd.f32 %v2972, %v3022
    %v3024 = vpop.f32.mrb[0].mxu0
    %3025 = vdwg.mxu0
    %s3026 = scalar_lea.vmem %s5, 96
    %v3027 = vld [vmem:[%s3026] sm:$0xf]
    %v3028 = vld [vmem:[%s3026 + $0x4] sm:$0xf]
    %v3029 = vld [vmem:[%s3026 + $0x8] sm:$0xf]
    %v3030 = vld [vmem:[%s3026 + $0xc] sm:$0xf]
    %v3031 = vlaneseq
    %v3032 = vshrl.u32 %v3031, 7
    %v3033 = vsub.s32 2, %v3032
    %v3034 = vrot.slane %v2901, %v3033
    %v3039 = vunpack.c.l.b16 %v3027
    %v3040 = vunpack.c.l.b16 %v3028
    %v3041 = vunpack.c.l.b16 %v3029
    %v3042 = vunpack.c.l.b16 %v3030
    %v3043 = vpack.c.b16 %v3040, %v3039
    %v3044 = vpack.c.b16 %v3042, %v3041
    %3047 = vmatprep.subr.bf16.mxu0 0
    %3048 = vmatpush1.bf16.msra.mxu0 %v3043
    %3049 = vmatprep.subr.bf16.mxu0 0
    %3050 = vmatpush1.bf16.msra.mxu0 %v3044
    %3051 = vmatprep.subr.bf16.mxu0 0
    %3052 = vmatpush1.bf16.msra.mxu0 0
    %3053 = vmatprep.subr.bf16.mxu0 0
    %3054 = vmatpush1.bf16.msra.mxu0 0
    %3055 = vmatprep.subr.bf16.mxu0 0
    %3056 = vmatpush1.bf16.msra.mxu0 0
    %3057 = vmatprep.subr.bf16.mxu0 0
    %3058 = vmatpush1.bf16.msra.mxu0 0
    %3059 = vmatprep.subr.bf16.mxu0 0
    %3060 = vmatpush1.bf16.msra.mxu0 0
    %3061 = vmatprep.subr.bf16.mxu0 0
    %3062 = vmatpush1.bf16.msra.mxu0 0
    %3063 = vmatprep.subr.bf16.mxu0 0
    %3064 = vmatpush1.bf16.msra.mxu0 0
    %3065 = vmatprep.subr.bf16.mxu0 0
    %3066 = vmatpush1.bf16.msra.mxu0 0
    %3067 = vmatprep.subr.bf16.mxu0 0
    %3068 = vmatpush1.bf16.msra.mxu0 0
    %3069 = vmatprep.subr.bf16.mxu0 0
    %3070 = vmatpush1.bf16.msra.mxu0 0
    %3071 = vmatprep.subr.bf16.mxu0 0
    %3072 = vmatpush1.bf16.msra.mxu0 0
    %3073 = vmatprep.subr.bf16.mxu0 0
    %3074 = vmatpush1.bf16.msra.mxu0 0
    %3075 = vmatprep.subr.bf16.mxu0 0
    %3076 = vmatpush1.bf16.msra.mxu0 0
    %3077 = vmatprep.subr.bf16.mxu0 0
    %3078 = vmatpush1.bf16.msra.mxu0 0
    %3079 = vmatprep.mubr.bf16.mxu0 0
    %3080 = vmatmul.mubr.bf16.gmra.mrb[0].mxu0 %v2109
    %v3081 = vpop.f32.mrb[0].mxu0
    %v3082 = vadd.f32 %v3034, %v3081
    %v3083 = vpop.f32.mrb[0].mxu0
    %v3084 = vpop.f32.mrb[0].mxu0
    %v3085 = vadd.f32 %v3034, %v3084
    %v3086 = vpop.f32.mrb[0].mxu0
    %3087 = vdwg.mxu0
    %v3088 = vpack.c.bf16 %v2958, %v2958
    %v3089 = vpack.c.bf16 %v2961, %v2961
    %v3090 = vpack.c.bf16 %v3020, %v3020
    %v3091 = vpack.c.bf16 %v3023, %v3023
    %v3093 = vsel %vm292, %v3088, 0
    %v3096 = vsel %vm292, %v3090, 0
    %3098 = vmatprep.subr.bf16.mxu0 0
    %3099 = vmatpush1.bf16.xpose.msra.mxu0 %v3096
    %3100 = vmatprep.subr.bf16.mxu0 0
    %3101 = vmatpush1.bf16.xpose.msra.mxu0 0
    %3102 = vmatprep.subr.bf16.mxu0 0
    %3103 = vmatpush1.bf16.xpose.msra.mxu0 0
    %3104 = vmatprep.subr.bf16.mxu0 0
    %3105 = vmatpush1.bf16.xpose.msra.mxu0 0
    %3106 = vmatprep.subr.bf16.mxu0 0
    %3107 = vmatpush1.bf16.xpose.msra.mxu0 0
    %3108 = vmatprep.subr.bf16.mxu0 0
    %3109 = vmatpush1.bf16.xpose.msra.mxu0 0
    %3110 = vmatprep.subr.bf16.mxu0 0
    %3111 = vmatpush1.bf16.xpose.msra.mxu0 0
    %3112 = vmatprep.subr.bf16.mxu0 0
    %3113 = vmatpush1.bf16.xpose.msra.mxu0 0
    %3114 = vmatprep.subr.bf16.mxu0 0
    %3115 = vmatpush1.bf16.xpose.msra.mxu0 0
    %3116 = vmatprep.subr.bf16.mxu0 0
    %3117 = vmatpush1.bf16.xpose.msra.mxu0 0
    %3118 = vmatprep.subr.bf16.mxu0 0
    %3119 = vmatpush1.bf16.xpose.msra.mxu0 0
    %3120 = vmatprep.subr.bf16.mxu0 0
    %3121 = vmatpush1.bf16.xpose.msra.mxu0 0
    %3122 = vmatprep.subr.bf16.mxu0 0
    %3123 = vmatpush1.bf16.xpose.msra.mxu0 0
    %3124 = vmatprep.subr.bf16.mxu0 0
    %3125 = vmatpush1.bf16.xpose.msra.mxu0 0
    %3126 = vmatprep.subr.bf16.mxu0 0
    %3127 = vmatpush1.bf16.xpose.msra.mxu0 0
    %3128 = vmatprep.subr.bf16.mxu0 0
    %3129 = vmatpush1.bf16.xpose.msra.mxu0 0
    %3130 = vmatprep.mubr.bf16.mxu0 0
    %3131 = vmatmul.mubr.bf16.gmra.mrb[0].mxu0 %v3093
    %v3132 = vpop.f32.mrb[0].mxu0
    %v3133 = vadd.f32 0.0, %v3132
    %v3134 = vpop.f32.mrb[0].mxu0
    %v3135 = vpop.f32.mrb[0].mxu0
    %v3136 = vpop.f32.mrb[0].mxu0
    %3137 = vdwg.mxu0
    %v3139 = vsel %vm292, %v3089, 0
    %v3142 = vsel %vm292, %v3091, 0
    %3144 = vmatprep.subr.bf16.mxu0 0
    %3145 = vmatpush1.bf16.xpose.msra.mxu0 %v3142
    %3146 = vmatprep.subr.bf16.mxu0 0
    %3147 = vmatpush1.bf16.xpose.msra.mxu0 0
    %3148 = vmatprep.subr.bf16.mxu0 0
    %3149 = vmatpush1.bf16.xpose.msra.mxu0 0
    %3150 = vmatprep.subr.bf16.mxu0 0
    %3151 = vmatpush1.bf16.xpose.msra.mxu0 0
    %3152 = vmatprep.subr.bf16.mxu0 0
    %3153 = vmatpush1.bf16.xpose.msra.mxu0 0
    %3154 = vmatprep.subr.bf16.mxu0 0
    %3155 = vmatpush1.bf16.xpose.msra.mxu0 0
    %3156 = vmatprep.subr.bf16.mxu0 0
    %3157 = vmatpush1.bf16.xpose.msra.mxu0 0
    %3158 = vmatprep.subr.bf16.mxu0 0
    %3159 = vmatpush1.bf16.xpose.msra.mxu0 0
    %3160 = vmatprep.subr.bf16.mxu0 0
    %3161 = vmatpush1.bf16.xpose.msra.mxu0 0
    %3162 = vmatprep.subr.bf16.mxu0 0
    %3163 = vmatpush1.bf16.xpose.msra.mxu0 0
    %3164 = vmatprep.subr.bf16.mxu0 0
    %3165 = vmatpush1.bf16.xpose.msra.mxu0 0
    %3166 = vmatprep.subr.bf16.mxu0 0
    %3167 = vmatpush1.bf16.xpose.msra.mxu0 0
    %3168 = vmatprep.subr.bf16.mxu0 0
    %3169 = vmatpush1.bf16.xpose.msra.mxu0 0
    %3170 = vmatprep.subr.bf16.mxu0 0
    %3171 = vmatpush1.bf16.xpose.msra.mxu0 0
    %3172 = vmatprep.subr.bf16.mxu0 0
    %3173 = vmatpush1.bf16.xpose.msra.mxu0 0
    %3174 = vmatprep.subr.bf16.mxu0 0
    %3175 = vmatpush1.bf16.xpose.msra.mxu0 0
    %3176 = vmatprep.mubr.bf16.mxu0 0
    %3177 = vmatmul.mubr.bf16.gmra.mrb[0].mxu0 %v3139
    %v3178 = vpop.f32.mrb[0].mxu0
    %v3179 = vadd.f32 0.0, %v3178
    %v3180 = vpop.f32.mrb[0].mxu0
    %v3181 = vpop.f32.mrb[0].mxu0
    %v3182 = vpop.f32.mrb[0].mxu0
    %3183 = vdwg.mxu0
    %v3184 = vmul.f32 %v3133, 0.35355338
    %v3185 = vmul.f32 %v3179, 0.35355338
    %v3186 = vadd.f32 %v3184, %v392
    %v3187 = vadd.f32 %v3185, %v396
    %v3188 = vsel %vm292, %v3186, -inf
    %3189 = vmax.xlane.f32.xlu0 %v3188
    %v3190 = vpop.xlane.xlu0 %3189
    %v3191 = vsel %vm292, %v3187, -inf
    %3192 = vmax.xlane.f32.xlu0 %v3191
    %v3193 = vpop.xlane.xlu0 %3192
    %v3194 = vsub.f32 %v3186, %v3190
    %v3195 = vsub.f32 %v3187, %v3193
    %v3196 = vmul.f32 %v3194, 1.442695
    %v3197 = vpow.pop %v3196
    %v3198 = vmul.f32 %v3195, 1.442695
    %v3199 = vpow.pop %v3198
    %v3200 = vsel %vm292, %v3197, 0.0
    %3201 = vadd.xlane.f32.xlu0 %v3200
    %v3202 = vpop.xlane.xlu0 %3201
    %v3203 = vsel %vm292, %v3199, 0.0
    %3204 = vadd.xlane.f32.xlu0 %v3203
    %v3205 = vpop.xlane.xlu0 %3204
    %v3206 = vrcp.pop %v3202
    %v3207 = vrcp.pop %v3205
    %v3208 = vmul.f32 %v3197, %v3206
    %v3209 = vmul.f32 %v3199, %v3207
    %v3210 = vpack.c.bf16 %v3208, %v3208
    %v3211 = vpack.c.bf16 %v3209, %v3209
    %v3212 = vpack.c.bf16 %v3082, %v3082
    %v3213 = vpack.c.bf16 %v3085, %v3085
    %v3215 = vsel %vm292, %v3210, 0
    %v3218 = vsel %vm430, %v3212, 0
    %3220 = vmatprep.subr.bf16.mxu0 0
    %3221 = vmatpush1.bf16.msra.mxu0 %v3218
    %3222 = vmatprep.subr.bf16.mxu0 0
    %3223 = vmatpush1.bf16.msra.mxu0 0
    %3224 = vmatprep.subr.bf16.mxu0 0
    %3225 = vmatpush1.bf16.msra.mxu0 0
    %3226 = vmatprep.subr.bf16.mxu0 0
    %3227 = vmatpush1.bf16.msra.mxu0 0
    %3228 = vmatprep.subr.bf16.mxu0 0
    %3229 = vmatpush1.bf16.msra.mxu0 0
    %3230 = vmatprep.subr.bf16.mxu0 0
    %3231 = vmatpush1.bf16.msra.mxu0 0
    %3232 = vmatprep.subr.bf16.mxu0 0
    %3233 = vmatpush1.bf16.msra.mxu0 0
    %3234 = vmatprep.subr.bf16.mxu0 0
    %3235 = vmatpush1.bf16.msra.mxu0 0
    %3236 = vmatprep.subr.bf16.mxu0 0
    %3237 = vmatpush1.bf16.msra.mxu0 0
    %3238 = vmatprep.subr.bf16.mxu0 0
    %3239 = vmatpush1.bf16.msra.mxu0 0
    %3240 = vmatprep.subr.bf16.mxu0 0
    %3241 = vmatpush1.bf16.msra.mxu0 0
    %3242 = vmatprep.subr.bf16.mxu0 0
    %3243 = vmatpush1.bf16.msra.mxu0 0
    %3244 = vmatprep.subr.bf16.mxu0 0
    %3245 = vmatpush1.bf16.msra.mxu0 0
    %3246 = vmatprep.subr.bf16.mxu0 0
    %3247 = vmatpush1.bf16.msra.mxu0 0
    %3248 = vmatprep.subr.bf16.mxu0 0
    %3249 = vmatpush1.bf16.msra.mxu0 0
    %3250 = vmatprep.subr.bf16.mxu0 0
    %3251 = vmatpush1.bf16.msra.mxu0 0
    %3252 = vmatprep.mubr.bf16.mxu0 0
    %3253 = vmatmul.mubr.bf16.gmra.mrb[0].mxu0 %v3215
    %v3254 = vpop.f32.mrb[0].mxu0
    %v3255 = vadd.f32 0.0, %v3254
    %v3256 = vpop.f32.mrb[0].mxu0
    %v3257 = vpop.f32.mrb[0].mxu0
    %v3258 = vpop.f32.mrb[0].mxu0
    %3259 = vdwg.mxu0
    %v3261 = vsel %vm292, %v3211, 0
    %v3264 = vsel %vm430, %v3213, 0
    %3266 = vmatprep.subr.bf16.mxu0 0
    %3267 = vmatpush1.bf16.msra.mxu0 %v3264
    %3268 = vmatprep.subr.bf16.mxu0 0
    %3269 = vmatpush1.bf16.msra.mxu0 0
    %3270 = vmatprep.subr.bf16.mxu0 0
    %3271 = vmatpush1.bf16.msra.mxu0 0
    %3272 = vmatprep.subr.bf16.mxu0 0
    %3273 = vmatpush1.bf16.msra.mxu0 0
    %3274 = vmatprep.subr.bf16.mxu0 0
    %3275 = vmatpush1.bf16.msra.mxu0 0
    %3276 = vmatprep.subr.bf16.mxu0 0
    %3277 = vmatpush1.bf16.msra.mxu0 0
    %3278 = vmatprep.subr.bf16.mxu0 0
    %3279 = vmatpush1.bf16.msra.mxu0 0
    %3280 = vmatprep.subr.bf16.mxu0 0
    %3281 = vmatpush1.bf16.msra.mxu0 0
    %3282 = vmatprep.subr.bf16.mxu0 0
    %3283 = vmatpush1.bf16.msra.mxu0 0
    %3284 = vmatprep.subr.bf16.mxu0 0
    %3285 = vmatpush1.bf16.msra.mxu0 0
    %3286 = vmatprep.subr.bf16.mxu0 0
    %3287 = vmatpush1.bf16.msra.mxu0 0
    %3288 = vmatprep.subr.bf16.mxu0 0
    %3289 = vmatpush1.bf16.msra.mxu0 0
    %3290 = vmatprep.subr.bf16.mxu0 0
    %3291 = vmatpush1.bf16.msra.mxu0 0
    %3292 = vmatprep.subr.bf16.mxu0 0
    %3293 = vmatpush1.bf16.msra.mxu0 0
    %3294 = vmatprep.subr.bf16.mxu0 0
    %3295 = vmatpush1.bf16.msra.mxu0 0
    %3296 = vmatprep.subr.bf16.mxu0 0
    %3297 = vmatpush1.bf16.msra.mxu0 0
    %3298 = vmatprep.mubr.bf16.mxu0 0
    %3299 = vmatmul.mubr.bf16.gmra.mrb[0].mxu0 %v3261
    %v3300 = vpop.f32.mrb[0].mxu0
    %v3301 = vadd.f32 0.0, %v3300
    %v3302 = vpop.f32.mrb[0].mxu0
    %v3303 = vpop.f32.mrb[0].mxu0
    %v3304 = vpop.f32.mrb[0].mxu0
    %3305 = vdwg.mxu0
    %s3306 = scalar_lea.vmem %s6, 28
    %v3307 = vld [vmem:[%s3306] sm:$0x7]
    %s3308 = scalar_lea.vmem %s3, 112
    %v3309 = vld [vmem:[%s3308] sm:$0xf]
    %v3310 = vld [vmem:[%s3308 + $0x4] sm:$0xf]
    %v3311 = vld [vmem:[%s3308 + $0x8] sm:$0xf]
    %v3312 = vld [vmem:[%s3308 + $0xc] sm:$0xf]
    %v3313 = vlaneseq
    %v3314 = vshrl.u32 %v3313, 7
    %v3315 = vsub.s32 0, %v3314
    %v3316 = vrot.slane %v3307, %v3315
    %v3321 = vunpack.c.l.b16 %v3309
    %v3322 = vunpack.c.l.b16 %v3310
    %v3323 = vunpack.c.l.b16 %v3311
    %v3324 = vunpack.c.l.b16 %v3312
    %v3325 = vpack.c.b16 %v3322, %v3321
    %v3326 = vpack.c.b16 %v3324, %v3323
    %3329 = vmatprep.subr.bf16.mxu0 0
    %3330 = vmatpush1.bf16.msra.mxu0 %v3325
    %3331 = vmatprep.subr.bf16.mxu0 0
    %3332 = vmatpush1.bf16.msra.mxu0 %v3326
    %3333 = vmatprep.subr.bf16.mxu0 0
    %3334 = vmatpush1.bf16.msra.mxu0 0
    %3335 = vmatprep.subr.bf16.mxu0 0
    %3336 = vmatpush1.bf16.msra.mxu0 0
    %3337 = vmatprep.subr.bf16.mxu0 0
    %3338 = vmatpush1.bf16.msra.mxu0 0
    %3339 = vmatprep.subr.bf16.mxu0 0
    %3340 = vmatpush1.bf16.msra.mxu0 0
    %3341 = vmatprep.subr.bf16.mxu0 0
    %3342 = vmatpush1.bf16.msra.mxu0 0
    %3343 = vmatprep.subr.bf16.mxu0 0
    %3344 = vmatpush1.bf16.msra.mxu0 0
    %3345 = vmatprep.subr.bf16.mxu0 0
    %3346 = vmatpush1.bf16.msra.mxu0 0
    %3347 = vmatprep.subr.bf16.mxu0 0
    %3348 = vmatpush1.bf16.msra.mxu0 0
    %3349 = vmatprep.subr.bf16.mxu0 0
    %3350 = vmatpush1.bf16.msra.mxu0 0
    %3351 = vmatprep.subr.bf16.mxu0 0
    %3352 = vmatpush1.bf16.msra.mxu0 0
    %3353 = vmatprep.subr.bf16.mxu0 0
    %3354 = vmatpush1.bf16.msra.mxu0 0
    %3355 = vmatprep.subr.bf16.mxu0 0
    %3356 = vmatpush1.bf16.msra.mxu0 0
    %3357 = vmatprep.subr.bf16.mxu0 0
    %3358 = vmatpush1.bf16.msra.mxu0 0
    %3359 = vmatprep.subr.bf16.mxu0 0
    %3360 = vmatpush1.bf16.msra.mxu0 0
    %3361 = vmatprep.mubr.bf16.mxu0 0
    %3362 = vmatmul.mubr.bf16.gmra.mrb[0].mxu0 %v2109
    %v3363 = vpop.f32.mrb[0].mxu0
    %v3364 = vadd.f32 %v3316, %v3363
    %v3365 = vpop.f32.mrb[0].mxu0
    %v3366 = vpop.f32.mrb[0].mxu0
    %v3367 = vadd.f32 %v3316, %v3366
    %v3368 = vpop.f32.mrb[0].mxu0
    %3369 = vdwg.mxu0
    %s3370 = scalar_lea.vmem %s4, 112
    %v3371 = vld [vmem:[%s3370] sm:$0xf]
    %v3372 = vld [vmem:[%s3370 + $0x4] sm:$0xf]
    %v3373 = vld [vmem:[%s3370 + $0x8] sm:$0xf]
    %v3374 = vld [vmem:[%s3370 + $0xc] sm:$0xf]
    %v3375 = vlaneseq
    %v3376 = vshrl.u32 %v3375, 7
    %v3377 = vsub.s32 1, %v3376
    %v3378 = vrot.slane %v3307, %v3377
    %v3383 = vunpack.c.l.b16 %v3371
    %v3384 = vunpack.c.l.b16 %v3372
    %v3385 = vunpack.c.l.b16 %v3373
    %v3386 = vunpack.c.l.b16 %v3374
    %v3387 = vpack.c.b16 %v3384, %v3383
    %v3388 = vpack.c.b16 %v3386, %v3385
    %3391 = vmatprep.subr.bf16.mxu0 0
    %3392 = vmatpush1.bf16.msra.mxu0 %v3387
    %3393 = vmatprep.subr.bf16.mxu0 0
    %3394 = vmatpush1.bf16.msra.mxu0 %v3388
    %3395 = vmatprep.subr.bf16.mxu0 0
    %3396 = vmatpush1.bf16.msra.mxu0 0
    %3397 = vmatprep.subr.bf16.mxu0 0
    %3398 = vmatpush1.bf16.msra.mxu0 0
    %3399 = vmatprep.subr.bf16.mxu0 0
    %3400 = vmatpush1.bf16.msra.mxu0 0
    %3401 = vmatprep.subr.bf16.mxu0 0
    %3402 = vmatpush1.bf16.msra.mxu0 0
    %3403 = vmatprep.subr.bf16.mxu0 0
    %3404 = vmatpush1.bf16.msra.mxu0 0
    %3405 = vmatprep.subr.bf16.mxu0 0
    %3406 = vmatpush1.bf16.msra.mxu0 0
    %3407 = vmatprep.subr.bf16.mxu0 0
    %3408 = vmatpush1.bf16.msra.mxu0 0
    %3409 = vmatprep.subr.bf16.mxu0 0
    %3410 = vmatpush1.bf16.msra.mxu0 0
    %3411 = vmatprep.subr.bf16.mxu0 0
    %3412 = vmatpush1.bf16.msra.mxu0 0
    %3413 = vmatprep.subr.bf16.mxu0 0
    %3414 = vmatpush1.bf16.msra.mxu0 0
    %3415 = vmatprep.subr.bf16.mxu0 0
    %3416 = vmatpush1.bf16.msra.mxu0 0
    %3417 = vmatprep.subr.bf16.mxu0 0
    %3418 = vmatpush1.bf16.msra.mxu0 0
    %3419 = vmatprep.subr.bf16.mxu0 0
    %3420 = vmatpush1.bf16.msra.mxu0 0
    %3421 = vmatprep.subr.bf16.mxu0 0
    %3422 = vmatpush1.bf16.msra.mxu0 0
    %3423 = vmatprep.mubr.bf16.mxu0 0
    %3424 = vmatmul.mubr.bf16.gmra.mrb[0].mxu0 %v2109
    %v3425 = vpop.f32.mrb[0].mxu0
    %v3426 = vadd.f32 %v3378, %v3425
    %v3427 = vpop.f32.mrb[0].mxu0
    %v3428 = vpop.f32.mrb[0].mxu0
    %v3429 = vadd.f32 %v3378, %v3428
    %v3430 = vpop.f32.mrb[0].mxu0
    %3431 = vdwg.mxu0
    %s3432 = scalar_lea.vmem %s5, 112
    %v3433 = vld [vmem:[%s3432] sm:$0xf]
    %v3434 = vld [vmem:[%s3432 + $0x4] sm:$0xf]
    %v3435 = vld [vmem:[%s3432 + $0x8] sm:$0xf]
    %v3436 = vld [vmem:[%s3432 + $0xc] sm:$0xf]
    %v3437 = vlaneseq
    %v3438 = vshrl.u32 %v3437, 7
    %v3439 = vsub.s32 2, %v3438
    %v3440 = vrot.slane %v3307, %v3439
    %v3445 = vunpack.c.l.b16 %v3433
    %v3446 = vunpack.c.l.b16 %v3434
    %v3447 = vunpack.c.l.b16 %v3435
    %v3448 = vunpack.c.l.b16 %v3436
    %v3449 = vpack.c.b16 %v3446, %v3445
    %v3450 = vpack.c.b16 %v3448, %v3447
    %3453 = vmatprep.subr.bf16.mxu0 0
    %3454 = vmatpush1.bf16.msra.mxu0 %v3449
    %3455 = vmatprep.subr.bf16.mxu0 0
    %3456 = vmatpush1.bf16.msra.mxu0 %v3450
    %3457 = vmatprep.subr.bf16.mxu0 0
    %3458 = vmatpush1.bf16.msra.mxu0 0
    %3459 = vmatprep.subr.bf16.mxu0 0
    %3460 = vmatpush1.bf16.msra.mxu0 0
    %3461 = vmatprep.subr.bf16.mxu0 0
    %3462 = vmatpush1.bf16.msra.mxu0 0
    %3463 = vmatprep.subr.bf16.mxu0 0
    %3464 = vmatpush1.bf16.msra.mxu0 0
    %3465 = vmatprep.subr.bf16.mxu0 0
    %3466 = vmatpush1.bf16.msra.mxu0 0
    %3467 = vmatprep.subr.bf16.mxu0 0
    %3468 = vmatpush1.bf16.msra.mxu0 0
    %3469 = vmatprep.subr.bf16.mxu0 0
    %3470 = vmatpush1.bf16.msra.mxu0 0
    %3471 = vmatprep.subr.bf16.mxu0 0
    %3472 = vmatpush1.bf16.msra.mxu0 0
    %3473 = vmatprep.subr.bf16.mxu0 0
    %3474 = vmatpush1.bf16.msra.mxu0 0
    %3475 = vmatprep.subr.bf16.mxu0 0
    %3476 = vmatpush1.bf16.msra.mxu0 0
    %3477 = vmatprep.subr.bf16.mxu0 0
    %3478 = vmatpush1.bf16.msra.mxu0 0
    %3479 = vmatprep.subr.bf16.mxu0 0
    %3480 = vmatpush1.bf16.msra.mxu0 0
    %3481 = vmatprep.subr.bf16.mxu0 0
    %3482 = vmatpush1.bf16.msra.mxu0 0
    %3483 = vmatprep.subr.bf16.mxu0 0
    %3484 = vmatpush1.bf16.msra.mxu0 0
    %3485 = vmatprep.mubr.bf16.mxu0 0
    %3486 = vmatmul.mubr.bf16.gmra.mrb[0].mxu0 %v2109
    %v3487 = vpop.f32.mrb[0].mxu0
    %v3488 = vadd.f32 %v3440, %v3487
    %v3489 = vpop.f32.mrb[0].mxu0
    %v3490 = vpop.f32.mrb[0].mxu0
    %v3491 = vadd.f32 %v3440, %v3490
    %v3492 = vpop.f32.mrb[0].mxu0
    %3493 = vdwg.mxu0
    %v3494 = vpack.c.bf16 %v3364, %v3364
    %v3495 = vpack.c.bf16 %v3367, %v3367
    %v3496 = vpack.c.bf16 %v3426, %v3426
    %v3497 = vpack.c.bf16 %v3429, %v3429
    %v3499 = vsel %vm292, %v3494, 0
    %v3502 = vsel %vm292, %v3496, 0
    %3504 = vmatprep.subr.bf16.mxu0 0
    %3505 = vmatpush1.bf16.xpose.msra.mxu0 %v3502
    %3506 = vmatprep.subr.bf16.mxu0 0
    %3507 = vmatpush1.bf16.xpose.msra.mxu0 0
    %3508 = vmatprep.subr.bf16.mxu0 0
    %3509 = vmatpush1.bf16.xpose.msra.mxu0 0
    %3510 = vmatprep.subr.bf16.mxu0 0
    %3511 = vmatpush1.bf16.xpose.msra.mxu0 0
    %3512 = vmatprep.subr.bf16.mxu0 0
    %3513 = vmatpush1.bf16.xpose.msra.mxu0 0
    %3514 = vmatprep.subr.bf16.mxu0 0
    %3515 = vmatpush1.bf16.xpose.msra.mxu0 0
    %3516 = vmatprep.subr.bf16.mxu0 0
    %3517 = vmatpush1.bf16.xpose.msra.mxu0 0
    %3518 = vmatprep.subr.bf16.mxu0 0
    %3519 = vmatpush1.bf16.xpose.msra.mxu0 0
    %3520 = vmatprep.subr.bf16.mxu0 0
    %3521 = vmatpush1.bf16.xpose.msra.mxu0 0
    %3522 = vmatprep.subr.bf16.mxu0 0
    %3523 = vmatpush1.bf16.xpose.msra.mxu0 0
    %3524 = vmatprep.subr.bf16.mxu0 0
    %3525 = vmatpush1.bf16.xpose.msra.mxu0 0
    %3526 = vmatprep.subr.bf16.mxu0 0
    %3527 = vmatpush1.bf16.xpose.msra.mxu0 0
    %3528 = vmatprep.subr.bf16.mxu0 0
    %3529 = vmatpush1.bf16.xpose.msra.mxu0 0
    %3530 = vmatprep.subr.bf16.mxu0 0
    %3531 = vmatpush1.bf16.xpose.msra.mxu0 0
    %3532 = vmatprep.subr.bf16.mxu0 0
    %3533 = vmatpush1.bf16.xpose.msra.mxu0 0
    %3534 = vmatprep.subr.bf16.mxu0 0
    %3535 = vmatpush1.bf16.xpose.msra.mxu0 0
    %3536 = vmatprep.mubr.bf16.mxu0 0
    %3537 = vmatmul.mubr.bf16.gmra.mrb[0].mxu0 %v3499
    %v3538 = vpop.f32.mrb[0].mxu0
    %v3539 = vadd.f32 0.0, %v3538
    %v3540 = vpop.f32.mrb[0].mxu0
    %v3541 = vpop.f32.mrb[0].mxu0
    %v3542 = vpop.f32.mrb[0].mxu0
    %3543 = vdwg.mxu0
    %v3545 = vsel %vm292, %v3495, 0
    %v3548 = vsel %vm292, %v3497, 0
    %3550 = vmatprep.subr.bf16.mxu0 0
    %3551 = vmatpush1.bf16.xpose.msra.mxu0 %v3548
    %3552 = vmatprep.subr.bf16.mxu0 0
    %3553 = vmatpush1.bf16.xpose.msra.mxu0 0
    %3554 = vmatprep.subr.bf16.mxu0 0
    %3555 = vmatpush1.bf16.xpose.msra.mxu0 0
    %3556 = vmatprep.subr.bf16.mxu0 0
    %3557 = vmatpush1.bf16.xpose.msra.mxu0 0
    %3558 = vmatprep.subr.bf16.mxu0 0
    %3559 = vmatpush1.bf16.xpose.msra.mxu0 0
    %3560 = vmatprep.subr.bf16.mxu0 0
    %3561 = vmatpush1.bf16.xpose.msra.mxu0 0
    %3562 = vmatprep.subr.bf16.mxu0 0
    %3563 = vmatpush1.bf16.xpose.msra.mxu0 0
    %3564 = vmatprep.subr.bf16.mxu0 0
    %3565 = vmatpush1.bf16.xpose.msra.mxu0 0
    %3566 = vmatprep.subr.bf16.mxu0 0
    %3567 = vmatpush1.bf16.xpose.msra.mxu0 0
    %3568 = vmatprep.subr.bf16.mxu0 0
    %3569 = vmatpush1.bf16.xpose.msra.mxu0 0
    %3570 = vmatprep.subr.bf16.mxu0 0
    %3571 = vmatpush1.bf16.xpose.msra.mxu0 0
    %3572 = vmatprep.subr.bf16.mxu0 0
    %3573 = vmatpush1.bf16.xpose.msra.mxu0 0
    %3574 = vmatprep.subr.bf16.mxu0 0
    %3575 = vmatpush1.bf16.xpose.msra.mxu0 0
    %3576 = vmatprep.subr.bf16.mxu0 0
    %3577 = vmatpush1.bf16.xpose.msra.mxu0 0
    %3578 = vmatprep.subr.bf16.mxu0 0
    %3579 = vmatpush1.bf16.xpose.msra.mxu0 0
    %3580 = vmatprep.subr.bf16.mxu0 0
    %3581 = vmatpush1.bf16.xpose.msra.mxu0 0
    %3582 = vmatprep.mubr.bf16.mxu0 0
    %3583 = vmatmul.mubr.bf16.gmra.mrb[0].mxu0 %v3545
    %v3584 = vpop.f32.mrb[0].mxu0
    %v3585 = vadd.f32 0.0, %v3584
    %v3586 = vpop.f32.mrb[0].mxu0
    %v3587 = vpop.f32.mrb[0].mxu0
    %v3588 = vpop.f32.mrb[0].mxu0
    %3589 = vdwg.mxu0
    %v3590 = vmul.f32 %v3539, 0.35355338
    %v3591 = vmul.f32 %v3585, 0.35355338
    %v3592 = vadd.f32 %v3590, %v392
    %v3593 = vadd.f32 %v3591, %v396
    %v3594 = vsel %vm292, %v3592, -inf
    %3595 = vmax.xlane.f32.xlu0 %v3594
    %v3596 = vpop.xlane.xlu0 %3595
    %v3597 = vsel %vm292, %v3593, -inf
    %3598 = vmax.xlane.f32.xlu0 %v3597
    %v3599 = vpop.xlane.xlu0 %3598
    %v3600 = vsub.f32 %v3592, %v3596
    %v3601 = vsub.f32 %v3593, %v3599
    %v3602 = vmul.f32 %v3600, 1.442695
    %v3603 = vpow.pop %v3602
    %v3604 = vmul.f32 %v3601, 1.442695
    %v3605 = vpow.pop %v3604
    %v3606 = vsel %vm292, %v3603, 0.0
    %3607 = vadd.xlane.f32.xlu0 %v3606
    %v3608 = vpop.xlane.xlu0 %3607
    %v3609 = vsel %vm292, %v3605, 0.0
    %3610 = vadd.xlane.f32.xlu0 %v3609
    %v3611 = vpop.xlane.xlu0 %3610
    %v3612 = vrcp.pop %v3608
    %v3613 = vrcp.pop %v3611
    %v3614 = vmul.f32 %v3603, %v3612
    %v3615 = vmul.f32 %v3605, %v3613
    %v3616 = vpack.c.bf16 %v3614, %v3614
    %v3617 = vpack.c.bf16 %v3615, %v3615
    %v3618 = vpack.c.bf16 %v3488, %v3488
    %v3619 = vpack.c.bf16 %v3491, %v3491
    %v3621 = vsel %vm292, %v3616, 0
    %v3624 = vsel %vm430, %v3618, 0
    %3626 = vmatprep.subr.bf16.mxu0 0
    %3627 = vmatpush1.bf16.msra.mxu0 %v3624
    %3628 = vmatprep.subr.bf16.mxu0 0
    %3629 = vmatpush1.bf16.msra.mxu0 0
    %3630 = vmatprep.subr.bf16.mxu0 0
    %3631 = vmatpush1.bf16.msra.mxu0 0
    %3632 = vmatprep.subr.bf16.mxu0 0
    %3633 = vmatpush1.bf16.msra.mxu0 0
    %3634 = vmatprep.subr.bf16.mxu0 0
    %3635 = vmatpush1.bf16.msra.mxu0 0
    %3636 = vmatprep.subr.bf16.mxu0 0
    %3637 = vmatpush1.bf16.msra.mxu0 0
    %3638 = vmatprep.subr.bf16.mxu0 0
    %3639 = vmatpush1.bf16.msra.mxu0 0
    %3640 = vmatprep.subr.bf16.mxu0 0
    %3641 = vmatpush1.bf16.msra.mxu0 0
    %3642 = vmatprep.subr.bf16.mxu0 0
    %3643 = vmatpush1.bf16.msra.mxu0 0
    %3644 = vmatprep.subr.bf16.mxu0 0
    %3645 = vmatpush1.bf16.msra.mxu0 0
    %3646 = vmatprep.subr.bf16.mxu0 0
    %3647 = vmatpush1.bf16.msra.mxu0 0
    %3648 = vmatprep.subr.bf16.mxu0 0
    %3649 = vmatpush1.bf16.msra.mxu0 0
    %3650 = vmatprep.subr.bf16.mxu0 0
    %3651 = vmatpush1.bf16.msra.mxu0 0
    %3652 = vmatprep.subr.bf16.mxu0 0
    %3653 = vmatpush1.bf16.msra.mxu0 0
    %3654 = vmatprep.subr.bf16.mxu0 0
    %3655 = vmatpush1.bf16.msra.mxu0 0
    %3656 = vmatprep.subr.bf16.mxu0 0
    %3657 = vmatpush1.bf16.msra.mxu0 0
    %3658 = vmatprep.mubr.bf16.mxu0 0
    %3659 = vmatmul.mubr.bf16.gmra.mrb[0].mxu0 %v3621
    %v3660 = vpop.f32.mrb[0].mxu0
    %v3661 = vadd.f32 0.0, %v3660
    %v3662 = vpop.f32.mrb[0].mxu0
    %v3663 = vpop.f32.mrb[0].mxu0
    %v3664 = vpop.f32.mrb[0].mxu0
    %3665 = vdwg.mxu0
    %v3667 = vsel %vm292, %v3617, 0
    %v3670 = vsel %vm430, %v3619, 0
    %3672 = vmatprep.subr.bf16.mxu0 0
    %3673 = vmatpush1.bf16.msra.mxu0 %v3670
    %3674 = vmatprep.subr.bf16.mxu0 0
    %3675 = vmatpush1.bf16.msra.mxu0 0
    %3676 = vmatprep.subr.bf16.mxu0 0
    %3677 = vmatpush1.bf16.msra.mxu0 0
    %3678 = vmatprep.subr.bf16.mxu0 0
    %3679 = vmatpush1.bf16.msra.mxu0 0
    %3680 = vmatprep.subr.bf16.mxu0 0
    %3681 = vmatpush1.bf16.msra.mxu0 0
    %3682 = vmatprep.subr.bf16.mxu0 0
    %3683 = vmatpush1.bf16.msra.mxu0 0
    %3684 = vmatprep.subr.bf16.mxu0 0
    %3685 = vmatpush1.bf16.msra.mxu0 0
    %3686 = vmatprep.subr.bf16.mxu0 0
    %3687 = vmatpush1.bf16.msra.mxu0 0
    %3688 = vmatprep.subr.bf16.mxu0 0
    %3689 = vmatpush1.bf16.msra.mxu0 0
    %3690 = vmatprep.subr.bf16.mxu0 0
    %3691 = vmatpush1.bf16.msra.mxu0 0
    %3692 = vmatprep.subr.bf16.mxu0 0
    %3693 = vmatpush1.bf16.msra.mxu0 0
    %3694 = vmatprep.subr.bf16.mxu0 0
    %3695 = vmatpush1.bf16.msra.mxu0 0
    %3696 = vmatprep.subr.bf16.mxu0 0
    %3697 = vmatpush1.bf16.msra.mxu0 0
    %3698 = vmatprep.subr.bf16.mxu0 0
    %3699 = vmatpush1.bf16.msra.mxu0 0
    %3700 = vmatprep.subr.bf16.mxu0 0
    %3701 = vmatpush1.bf16.msra.mxu0 0
    %3702 = vmatprep.subr.bf16.mxu0 0
    %3703 = vmatpush1.bf16.msra.mxu0 0
    %3704 = vmatprep.mubr.bf16.mxu0 0
    %3705 = vmatmul.mubr.bf16.gmra.mrb[0].mxu0 %v3667
    %v3706 = vpop.f32.mrb[0].mxu0
    %v3707 = vadd.f32 0.0, %v3706
    %v3708 = vpop.f32.mrb[0].mxu0
    %v3709 = vpop.f32.mrb[0].mxu0
    %v3710 = vpop.f32.mrb[0].mxu0
    %3711 = vdwg.mxu0
    %3714 = vrot.lane.b32.xlu0 %v2849, 8
    %v3715 = vpop.permute.xlu0 %3714
    %3716 = vrot.lane.b32.xlu0 %v2895, 8
    %v3717 = vpop.permute.xlu0 %3716
    %3722 = vrot.lane.b32.xlu0 %v3255, 16
    %v3723 = vpop.permute.xlu0 %3722
    %3724 = vrot.lane.b32.xlu0 %v3301, 16
    %v3725 = vpop.permute.xlu0 %3724
    %3730 = vrot.lane.b32.xlu0 %v3661, 24
    %v3731 = vpop.permute.xlu0 %3730
    %3732 = vrot.lane.b32.xlu0 %v3707, 24
    %v3733 = vpop.permute.xlu0 %3732
    %v3736 = vsel %vm292, %v2443, %v3715
    %v3737 = vsel %vm292, %v2489, %v3717
    %v3738 = vsel %vm1764, %v3736, %v3723
    %v3739 = vsel %vm1764, %v3737, %v3725
    %v3740 = vsel %vm1767, %v3738, %v3731
    %v3741 = vsel %vm1767, %v3739, %v3733
    %s3742 = scalar_lea.vmem %s8, 8
    %v3743 = vld [vmem:[%s3742] sm:$0x3f]
    %s3744 = scalar_lea.vmem %s7, 16
    %v3745 = vld [vmem:[%s3744] sm:$0xf]
    %v3746 = vld [vmem:[%s3744 + $0x4] sm:$0xf]
    %v3747 = vld [vmem:[%s3744 + $0x8] sm:$0xf]
    %v3748 = vld [vmem:[%s3744 + $0xc] sm:$0xf]
    %v3749 = vpack.c.bf16 %v3741, %v3740
    %v3750 = vlaneseq
    %v3751 = vshrl.u32 %v3750, 7
    %v3752 = vsub.s32 0, %v3751
    %v3753 = vrot.slane %v3743, %v3752
    %v3758 = vunpack.c.l.b16 %v3745
    %v3759 = vunpack.c.l.b16 %v3746
    %v3760 = vunpack.c.l.b16 %v3747
    %v3761 = vunpack.c.l.b16 %v3748
    %v3762 = vpack.c.b16 %v3759, %v3758
    %v3763 = vpack.c.b16 %v3761, %v3760
    %v3767 = vsel %vm58, %v3749, 0
    %3769 = vmatprep.subr.bf16.mxu0 0
    %3770 = vmatpush1.bf16.msra.mxu0 %v3762
    %3771 = vmatprep.subr.bf16.mxu0 0
    %3772 = vmatpush1.bf16.msra.mxu0 %v3763
    %3773 = vmatprep.subr.bf16.mxu0 0
    %3774 = vmatpush1.bf16.msra.mxu0 0
    %3775 = vmatprep.subr.bf16.mxu0 0
    %3776 = vmatpush1.bf16.msra.mxu0 0
    %3777 = vmatprep.subr.bf16.mxu0 0
    %3778 = vmatpush1.bf16.msra.mxu0 0
    %3779 = vmatprep.subr.bf16.mxu0 0
    %3780 = vmatpush1.bf16.msra.mxu0 0
    %3781 = vmatprep.subr.bf16.mxu0 0
    %3782 = vmatpush1.bf16.msra.mxu0 0
    %3783 = vmatprep.subr.bf16.mxu0 0
    %3784 = vmatpush1.bf16.msra.mxu0 0
    %3785 = vmatprep.subr.bf16.mxu0 0
    %3786 = vmatpush1.bf16.msra.mxu0 0
    %3787 = vmatprep.subr.bf16.mxu0 0
    %3788 = vmatpush1.bf16.msra.mxu0 0
    %3789 = vmatprep.subr.bf16.mxu0 0
    %3790 = vmatpush1.bf16.msra.mxu0 0
    %3791 = vmatprep.subr.bf16.mxu0 0
    %3792 = vmatpush1.bf16.msra.mxu0 0
    %3793 = vmatprep.subr.bf16.mxu0 0
    %3794 = vmatpush1.bf16.msra.mxu0 0
    %3795 = vmatprep.subr.bf16.mxu0 0
    %3796 = vmatpush1.bf16.msra.mxu0 0
    %3797 = vmatprep.subr.bf16.mxu0 0
    %3798 = vmatpush1.bf16.msra.mxu0 0
    %3799 = vmatprep.subr.bf16.mxu0 0
    %3800 = vmatpush1.bf16.msra.mxu0 0
    %3801 = vmatprep.mubr.bf16.mxu0 0
    %3802 = vmatmul.mubr.bf16.gmra.mrb[0].mxu0 %v3767
    %v3803 = vpop.f32.mrb[0].mxu0
    %v3804 = vadd.f32 %v3753, %v3803
    %v3805 = vpop.f32.mrb[0].mxu0
    %v3806 = vpop.f32.mrb[0].mxu0
    %v3807 = vadd.f32 %v3753, %v3806
    %v3808 = vpop.f32.mrb[0].mxu0
    %3809 = vdwg.mxu0
    %v3810 = vadd.f32 %v2082, %v3804
    %v3811 = vadd.f32 %v2083, %v3807
    %v3812 = vsel %vm58, %v3810, 0.0
    %3813 = vadd.xlane.f32.xlu0 %v3812
    %v3814 = vpop.xlane.xlu0 %3813
    %v3815 = vsel %vm58, %v3811, 0.0
    %3816 = vadd.xlane.f32.xlu0 %v3815
    %v3817 = vpop.xlane.xlu0 %3816
    %v3818 = vmul.f32 %v3814, %v65
    %v3819 = vmul.f32 %v3817, %v65
    %v3820 = vsub.f32 %v3810, %v3818
    %v3821 = vsub.f32 %v3811, %v3819
    %v3822 = vmul.f32 %v3820, %v3820
    %v3823 = vmul.f32 %v3821, %v3821
    %v3824 = vsel %vm58, %v3822, 0.0
    %3825 = vadd.xlane.f32.xlu0 %v3824
    %v3826 = vpop.xlane.xlu0 %3825
    %v3827 = vsel %vm58, %v3823, 0.0
    %3828 = vadd.xlane.f32.xlu0 %v3827
    %v3829 = vpop.xlane.xlu0 %3828
    %v3830 = vmul.f32 %v3826, %v65
    %v3831 = vmul.f32 %v3829, %v65
    %v3832 = vadd.f32 %v3830, 1e-05
    %v3833 = vadd.f32 %v3831, 1e-05
    %v3834 = vrsqrt.pop %v3832
    %v3835 = vrsqrt.pop %v3833
    %v3836 = vmul.f32 %v3820, %v3834
    %v3837 = vmul.f32 %v3821, %v3835
    %v3838 = vlaneseq
    %v3839 = vshrl.u32 %v3838, 7
    %v3840 = vsub.s32 1, %v3839
    %v3841 = vrot.slane %v3743, %v3840
    %v3842 = vmul.f32 %v3836, %v3841
    %v3843 = vmul.f32 %v3837, %v3841
    %v3844 = vlaneseq
    %v3845 = vshrl.u32 %v3844, 7
    %v3846 = vsub.s32 2, %v3845
    %v3847 = vrot.slane %v3743, %v3846
    %v3848 = vadd.f32 %v3842, %v3847
    %v3849 = vadd.f32 %v3843, %v3847
    %s3850 = scalar_lea.vmem %s9, 16
    %v3851 = vld [vmem:[%s3850] sm:$0xf]
    %v3852 = vld [vmem:[%s3850 + $0x4] sm:$0xf]
    %v3853 = vld [vmem:[%s3850 + $0x8] sm:$0xf]
    %v3854 = vld [vmem:[%s3850 + $0xc] sm:$0xf]
    %v3855 = vpack.c.bf16 %v3849, %v3848
    %s3856 = scalar_lea.vmem %s10, 1
    %v3857 = vld [vmem:[%s3856] sm:$0x1]
    %v3859 = vlaneseq
    %v3860 = vshrl.u32 %v3859, 7
    %v3861 = vsub.s32 0, %v3860
    %v3862 = vrot.slane %v3857, %v3861
    %v3868 = vunpack.c.l.b16 %v3851
    %v3869 = vunpack.c.l.b16 %v3852
    %v3870 = vunpack.c.l.b16 %v3853
    %v3871 = vunpack.c.l.b16 %v3854
    %v3872 = vpack.c.b16 %v3869, %v3868
    %v3873 = vpack.c.b16 %v3871, %v3870
    %v3877 = vsel %vm58, %v3855, 0
    %3879 = vmatprep.subr.bf16.mxu0 0
    %3880 = vmatpush1.bf16.msra.mxu0 %v3872
    %3881 = vmatprep.subr.bf16.mxu0 0
    %3882 = vmatpush1.bf16.msra.mxu0 %v3873
    %3883 = vmatprep.subr.bf16.mxu0 0
    %3884 = vmatpush1.bf16.msra.mxu0 0
    %3885 = vmatprep.subr.bf16.mxu0 0
    %3886 = vmatpush1.bf16.msra.mxu0 0
    %3887 = vmatprep.subr.bf16.mxu0 0
    %3888 = vmatpush1.bf16.msra.mxu0 0
    %3889 = vmatprep.subr.bf16.mxu0 0
    %3890 = vmatpush1.bf16.msra.mxu0 0
    %3891 = vmatprep.subr.bf16.mxu0 0
    %3892 = vmatpush1.bf16.msra.mxu0 0
    %3893 = vmatprep.subr.bf16.mxu0 0
    %3894 = vmatpush1.bf16.msra.mxu0 0
    %3895 = vmatprep.subr.bf16.mxu0 0
    %3896 = vmatpush1.bf16.msra.mxu0 0
    %3897 = vmatprep.subr.bf16.mxu0 0
    %3898 = vmatpush1.bf16.msra.mxu0 0
    %3899 = vmatprep.subr.bf16.mxu0 0
    %3900 = vmatpush1.bf16.msra.mxu0 0
    %3901 = vmatprep.subr.bf16.mxu0 0
    %3902 = vmatpush1.bf16.msra.mxu0 0
    %3903 = vmatprep.subr.bf16.mxu0 0
    %3904 = vmatpush1.bf16.msra.mxu0 0
    %3905 = vmatprep.subr.bf16.mxu0 0
    %3906 = vmatpush1.bf16.msra.mxu0 0
    %3907 = vmatprep.subr.bf16.mxu0 0
    %3908 = vmatpush1.bf16.msra.mxu0 0
    %3909 = vmatprep.subr.bf16.mxu0 0
    %3910 = vmatpush1.bf16.msra.mxu0 0
    %3911 = vmatprep.mubr.bf16.mxu0 0
    %3912 = vmatmul.mubr.bf16.gmra.mrb[0].mxu0 %v3877
    %v3913 = vpop.f32.mrb[0].mxu0
    %v3914 = vadd.f32 %v3862, %v3913
    %v3915 = vpop.f32.mrb[0].mxu0
    %v3916 = vpop.f32.mrb[0].mxu0
    %v3917 = vadd.f32 %v3862, %v3916
    %v3918 = vpop.f32.mrb[0].mxu0
    %3919 = vdwg.mxu0
    %v3920 = vmul.f32 %v3914, 0.5
    %v3921 = vmul.f32 %v3917, 0.5
    %v3922 = vmul.f32 %v3914, 0.044715
    %v3923 = vmul.f32 %v3917, 0.044715
    %v3924 = vmul.f32 %v3922, %v3914
    %v3925 = vmul.f32 %v3923, %v3917
    %v3926 = vmul.f32 %v3924, %v3914
    %v3927 = vmul.f32 %v3925, %v3917
    %v3928 = vadd.f32 %v3914, %v3926
    %v3929 = vadd.f32 %v3917, %v3927
    %v3930 = vmul.f32 %v3928, 0.7978846
    %v3931 = vmul.f32 %v3929, 0.7978846
    %v3932 = vtanh.pop %v3930
    %v3933 = vtanh.pop %v3931
    %v3934 = vadd.f32 %v3932, 1.0
    %v3935 = vadd.f32 %v3933, 1.0
    %v3936 = vmul.f32 %v3920, %v3934
    %v3937 = vmul.f32 %v3921, %v3935
    %s3938 = scalar_lea.vmem %s11, 32
    %v3939 = vld [vmem:[%s3938] sm:$0xf]
    %v3940 = vld [vmem:[%s3938 + $0x4] sm:$0xf]
    %v3941 = vld [vmem:[%s3938 + $0x8] sm:$0xf]
    %v3942 = vld [vmem:[%s3938 + $0xc] sm:$0xf]
    %v3943 = vld [vmem:[%s3938 + $0x10] sm:$0xf]
    %v3944 = vld [vmem:[%s3938 + $0x14] sm:$0xf]
    %v3945 = vld [vmem:[%s3938 + $0x18] sm:$0xf]
    %v3946 = vld [vmem:[%s3938 + $0x1c] sm:$0xf]
    %v3947 = vpack.c.bf16 %v3937, %v3936
    %v3948 = vlaneseq
    %v3949 = vshrl.u32 %v3948, 7
    %v3950 = vsub.s32 3, %v3949
    %v3951 = vrot.slane %v3743, %v3950
    %v3960 = vunpack.c.l.b16 %v3939
    %v3961 = vunpack.c.l.b16 %v3940
    %v3962 = vunpack.c.l.b16 %v3941
    %v3963 = vunpack.c.l.b16 %v3942
    %v3964 = vunpack.c.l.b16 %v3943
    %v3965 = vunpack.c.l.b16 %v3944
    %v3966 = vunpack.c.l.b16 %v3945
    %v3967 = vunpack.c.l.b16 %v3946
    %v3968 = vpack.c.b16 %v3961, %v3960
    %v3969 = vpack.c.b16 %v3963, %v3962
    %v3970 = vpack.c.b16 %v3965, %v3964
    %v3971 = vpack.c.b16 %v3967, %v3966
    %v3977 = vsel %vm1999, %v3947, 0
    %3979 = vmatprep.subr.bf16.mxu0 0
    %3980 = vmatpush1.bf16.msra.mxu0 %v3968
    %3981 = vmatprep.subr.bf16.mxu0 0
    %3982 = vmatpush1.bf16.msra.mxu0 %v3969
    %3983 = vmatprep.subr.bf16.mxu0 0
    %3984 = vmatpush1.bf16.msra.mxu0 %v3970
    %3985 = vmatprep.subr.bf16.mxu0 0
    %3986 = vmatpush1.bf16.msra.mxu0 %v3971
    %3987 = vmatprep.subr.bf16.mxu0 0
    %3988 = vmatpush1.bf16.msra.mxu0 0
    %3989 = vmatprep.subr.bf16.mxu0 0
    %3990 = vmatpush1.bf16.msra.mxu0 0
    %3991 = vmatprep.subr.bf16.mxu0 0
    %3992 = vmatpush1.bf16.msra.mxu0 0
    %3993 = vmatprep.subr.bf16.mxu0 0
    %3994 = vmatpush1.bf16.msra.mxu0 0
    %3995 = vmatprep.subr.bf16.mxu0 0
    %3996 = vmatpush1.bf16.msra.mxu0 0
    %3997 = vmatprep.subr.bf16.mxu0 0
    %3998 = vmatpush1.bf16.msra.mxu0 0
    %3999 = vmatprep.subr.bf16.mxu0 0
    %4000 = vmatpush1.bf16.msra.mxu0 0
    %4001 = vmatprep.subr.bf16.mxu0 0
    %4002 = vmatpush1.bf16.msra.mxu0 0
    %4003 = vmatprep.subr.bf16.mxu0 0
    %4004 = vmatpush1.bf16.msra.mxu0 0
    %4005 = vmatprep.subr.bf16.mxu0 0
    %4006 = vmatpush1.bf16.msra.mxu0 0
    %4007 = vmatprep.subr.bf16.mxu0 0
    %4008 = vmatpush1.bf16.msra.mxu0 0
    %4009 = vmatprep.subr.bf16.mxu0 0
    %4010 = vmatpush1.bf16.msra.mxu0 0
    %4011 = vmatprep.mubr.bf16.mxu0 0
    %4012 = vmatmul.mubr.bf16.gmra.mrb[0].mxu0 %v3977
    %v4013 = vpop.f32.mrb[0].mxu0
    %v4014 = vadd.f32 %v3951, %v4013
    %v4015 = vpop.f32.mrb[0].mxu0
    %v4016 = vpop.f32.mrb[0].mxu0
    %v4017 = vadd.f32 %v3951, %v4016
    %v4018 = vpop.f32.mrb[0].mxu0
    %4019 = vdwg.mxu0
    %v4020 = vadd.f32 %v3848, %v4014
    %v4021 = vadd.f32 %v3849, %v4017
    %v4022 = vsel %vm58, %v4020, 0.0
    %4023 = vadd.xlane.f32.xlu0 %v4022
    %v4024 = vpop.xlane.xlu0 %4023
    %v4025 = vsel %vm58, %v4021, 0.0
    %4026 = vadd.xlane.f32.xlu0 %v4025
    %v4027 = vpop.xlane.xlu0 %4026
    %v4028 = vmul.f32 %v4024, %v65
    %v4029 = vmul.f32 %v4027, %v65
    %v4030 = vsub.f32 %v4020, %v4028
    %v4031 = vsub.f32 %v4021, %v4029
    %v4032 = vmul.f32 %v4030, %v4030
    %v4033 = vmul.f32 %v4031, %v4031
    %v4034 = vsel %vm58, %v4032, 0.0
    %4035 = vadd.xlane.f32.xlu0 %v4034
    %v4036 = vpop.xlane.xlu0 %4035
    %v4037 = vsel %vm58, %v4033, 0.0
    %4038 = vadd.xlane.f32.xlu0 %v4037
    %v4039 = vpop.xlane.xlu0 %4038
    %v4040 = vmul.f32 %v4036, %v65
    %v4041 = vmul.f32 %v4039, %v65
    %v4042 = vadd.f32 %v4040, 1e-05
    %v4043 = vadd.f32 %v4041, 1e-05
    %v4044 = vrsqrt.pop %v4042
    %v4045 = vrsqrt.pop %v4043
    %v4046 = vmul.f32 %v4030, %v4044
    %v4047 = vmul.f32 %v4031, %v4045
    %v4048 = vlaneseq
    %v4049 = vshrl.u32 %v4048, 7
    %v4050 = vsub.s32 4, %v4049
    %v4051 = vrot.slane %v3743, %v4050
    %v4052 = vmul.f32 %v4046, %v4051
    %v4053 = vmul.f32 %v4047, %v4051
    %v4054 = vlaneseq
    %v4055 = vshrl.u32 %v4054, 7
    %v4056 = vsub.s32 5, %v4055
    %v4057 = vrot.slane %v3743, %v4056
    %v4058 = vadd.f32 %v4052, %v4057
    %v4059 = vadd.f32 %v4053, %v4057
    %v4061 = vrot.slane %v4059, 7
    %vm4063 = vcmask 1040384
    %v4064 = vsel %vm4063, %v4058, %v4061
    %v4065 = vld [vmem:[%s12] sm:$0xf]
    %v4066 = vld [vmem:[%s12 + $0x4] sm:$0xf]
    %v4067 = vld [vmem:[%s12 + $0x8] sm:$0xf]
    %v4068 = vld [vmem:[%s12 + $0xc] sm:$0xf]
    %v4069 = vpack.c.bf16 %v4064, %v4064
    %v4070 = vld [vmem:[%s13] sm:$0x1]
    %v4072 = vlaneseq
    %v4073 = vshrl.u32 %v4072, 7
    %v4074 = vsub.s32 0, %v4073
    %v4075 = vrot.slane %v4070, %v4074
    %v4081 = vunpack.c.l.b16 %v4065
    %v4082 = vunpack.c.l.b16 %v4066
    %v4083 = vunpack.c.l.b16 %v4067
    %v4084 = vunpack.c.l.b16 %v4068
    %v4085 = vpack.c.b16 %v4082, %v4081
    %v4086 = vpack.c.b16 %v4084, %v4083
    %v4090 = vsel %vm58, %v4069, 0
    %4092 = vmatprep.subr.bf16.mxu0 0
    %4093 = vmatpush1.bf16.msra.mxu0 %v4085
    %4094 = vmatprep.subr.bf16.mxu0 0
    %4095 = vmatpush1.bf16.msra.mxu0 %v4086
    %4096 = vmatprep.subr.bf16.mxu0 0
    %4097 = vmatpush1.bf16.msra.mxu0 0
    %4098 = vmatprep.subr.bf16.mxu0 0
    %4099 = vmatpush1.bf16.msra.mxu0 0
    %4100 = vmatprep.subr.bf16.mxu0 0
    %4101 = vmatpush1.bf16.msra.mxu0 0
    %4102 = vmatprep.subr.bf16.mxu0 0
    %4103 = vmatpush1.bf16.msra.mxu0 0
    %4104 = vmatprep.subr.bf16.mxu0 0
    %4105 = vmatpush1.bf16.msra.mxu0 0
    %4106 = vmatprep.subr.bf16.mxu0 0
    %4107 = vmatpush1.bf16.msra.mxu0 0
    %4108 = vmatprep.subr.bf16.mxu0 0
    %4109 = vmatpush1.bf16.msra.mxu0 0
    %4110 = vmatprep.subr.bf16.mxu0 0
    %4111 = vmatpush1.bf16.msra.mxu0 0
    %4112 = vmatprep.subr.bf16.mxu0 0
    %4113 = vmatpush1.bf16.msra.mxu0 0
    %4114 = vmatprep.subr.bf16.mxu0 0
    %4115 = vmatpush1.bf16.msra.mxu0 0
    %4116 = vmatprep.subr.bf16.mxu0 0
    %4117 = vmatpush1.bf16.msra.mxu0 0
    %4118 = vmatprep.subr.bf16.mxu0 0
    %4119 = vmatpush1.bf16.msra.mxu0 0
    %4120 = vmatprep.subr.bf16.mxu0 0
    %4121 = vmatpush1.bf16.msra.mxu0 0
    %4122 = vmatprep.subr.bf16.mxu0 0
    %4123 = vmatpush1.bf16.msra.mxu0 0
    %4124 = vmatprep.mubr.bf16.mxu0 0
    %4125 = vmatmul.mubr.bf16.gmra.mrb[0].mxu0 %v4090
    %v4126 = vpop.f32.mrb[0].mxu0
    %v4127 = vadd.f32 %v4075, %v4126
    %v4128 = vpop.f32.mrb[0].mxu0
    %v4129 = vpop.f32.mrb[0].mxu0
    %v4130 = vpop.f32.mrb[0].mxu0
    %4131 = vdwg.mxu0
    %v4132 = vtanh.pop %v4127
    %v4133 = vld [vmem:[%s14] sm:$0xf]
    %v4134 = vld [vmem:[%s14 + $0x4] sm:$0xf]
    %v4135 = vld [vmem:[%s14 + $0x8] sm:$0xf]
    %v4136 = vld [vmem:[%s14 + $0xc] sm:$0xf]
    %v4137 = vpack.c.bf16 %v4132, %v4132
    %v4138 = vld [vmem:[%s15] sm:$0x1]
    %v4140 = vlaneseq
    %v4141 = vshrl.u32 %v4140, 7
    %v4142 = vsub.s32 0, %v4141
    %v4143 = vrot.slane %v4138, %v4142
    %v4149 = vunpack.c.l.b16 %v4133
    %v4150 = vunpack.c.l.b16 %v4134
    %v4151 = vunpack.c.l.b16 %v4135
    %v4152 = vunpack.c.l.b16 %v4136
    %v4153 = vpack.c.b16 %v4150, %v4149
    %v4154 = vpack.c.b16 %v4152, %v4151
    %v4158 = vsel %vm58, %v4137, 0
    %4160 = vmatprep.subr.bf16.mxu0 0
    %4161 = vmatpush1.bf16.msra.mxu0 %v4153
    %4162 = vmatprep.subr.bf16.mxu0 0
    %4163 = vmatpush1.bf16.msra.mxu0 %v4154
    %4164 = vmatprep.subr.bf16.mxu0 0
    %4165 = vmatpush1.bf16.msra.mxu0 0
    %4166 = vmatprep.subr.bf16.mxu0 0
    %4167 = vmatpush1.bf16.msra.mxu0 0
    %4168 = vmatprep.subr.bf16.mxu0 0
    %4169 = vmatpush1.bf16.msra.mxu0 0
    %4170 = vmatprep.subr.bf16.mxu0 0
    %4171 = vmatpush1.bf16.msra.mxu0 0
    %4172 = vmatprep.subr.bf16.mxu0 0
    %4173 = vmatpush1.bf16.msra.mxu0 0
    %4174 = vmatprep.subr.bf16.mxu0 0
    %4175 = vmatpush1.bf16.msra.mxu0 0
    %4176 = vmatprep.subr.bf16.mxu0 0
    %4177 = vmatpush1.bf16.msra.mxu0 0
    %4178 = vmatprep.subr.bf16.mxu0 0
    %4179 = vmatpush1.bf16.msra.mxu0 0
    %4180 = vmatprep.subr.bf16.mxu0 0
    %4181 = vmatpush1.bf16.msra.mxu0 0
    %4182 = vmatprep.subr.bf16.mxu0 0
    %4183 = vmatpush1.bf16.msra.mxu0 0
    %4184 = vmatprep.subr.bf16.mxu0 0
    %4185 = vmatpush1.bf16.msra.mxu0 0
    %4186 = vmatprep.subr.bf16.mxu0 0
    %4187 = vmatpush1.bf16.msra.mxu0 0
    %4188 = vmatprep.subr.bf16.mxu0 0
    %4189 = vmatpush1.bf16.msra.mxu0 0
    %4190 = vmatprep.subr.bf16.mxu0 0
    %4191 = vmatpush1.bf16.msra.mxu0 0
    %4192 = vmatprep.mubr.bf16.mxu0 0
    %4193 = vmatmul.mubr.bf16.gmra.mrb[0].mxu0 %v4158
    %v4194 = vpop.f32.mrb[0].mxu0
    %v4195 = vadd.f32 %v4143, %v4194
    %v4196 = vpop.f32.mrb[0].mxu0
    %v4197 = vpop.f32.mrb[0].mxu0
    %v4198 = vpop.f32.mrb[0].mxu0
    %4199 = vdwg.mxu0
    %4200 = vst [vmem:[#allocation2] sm:$0x3] %v4195
    // Predicated region
    $region66: #{forward.1} parent=1 // pred_check
      _
    $region67: #{forward.1} parent=1 // pred_check_branch
      %4202 = sbr.rel (0) target = $region69
    $region68: #{forward.1} parent=1 // pred_region
      %s4204 = ssub.s32 32, 32
      %4205 = vsyncadd [#allocation3], %s4204
      %s4207 = sshll.u32 [#allocation2], 4
      %s4208 = int_to_ptr.vmem [resolvable:$true] %s4207
      %4210 = dma.vmem_to_hbm [thread:$0]  %s4208, 32, %s16, [#allocation3]
    $region69: #{forward.1} parent=1 // pred_fallthru
      _
    // Predicated region
    $region70: #{forward.1} parent=1 // pred_check
      _
    $region71: #{forward.1} parent=1 // pred_check_branch
      %4212 = sbr.rel (0) target = $region73
    $region72: #{forward.1} parent=1 // pred_region
      %4213 = dma.done [#allocation3], 32
    $region73: #{forward.1} parent=1 // pred_fallthru
      _
    %4214 = vsyncpa [#allocation3], 1

</llo_original>
